<compile_context>
chip_gen: v7x
topology: tpu7x:2x2x1
jax: 0.10.0
libtpu: 0.0.40
codegen_flags: <defaults>
</compile_context>

<pallas_src>
import numpy as np
import jax
import jax.numpy as jnp
from jax import lax
from jax.experimental import pallas as pl
from jax.experimental.pallas import tpu as pltpu


def _ceil_to(x, m):
    return int(((x + m - 1) // m) * m)


# ------------------------- parameter initialisation -------------------------

def init_generator_params(key, z_dim=10, im_chan=1, hidden_dim=16):
    # (in_ch, out_ch, kernel, stride) per make_gen_block, exactly as in __init__
    cfgs = [(z_dim, hidden_dim * 4, 3, 2),
            (hidden_dim * 4, hidden_dim * 2, 4, 1),
            (hidden_dim * 2, hidden_dim, 3, 2),
            (hidden_dim, im_chan, 4, 2)]
    params = []
    for i, (cin, cout, k, s) in enumerate(cfgs):
        kw_, kb_, kg_, kt_ = jax.random.split(jax.random.fold_in(key, i), 4)
        w = 0.05 * jax.random.normal(kw_, (cin, cout, k, k), jnp.float32)   # torch layout
        b = 0.05 * jax.random.normal(kb_, (cout,), jnp.float32)
        gamma = 1.0 + 0.1 * jax.random.normal(kg_, (cout,), jnp.float32)
        beta = 0.1 * jax.random.normal(kt_, (cout,), jnp.float32)
        params.append(dict(w=w, b=b, gamma=gamma, beta=beta, stride=s))
    return params


def _geometry(params, n_batch):
    geo, hin, win = [], 1, 1
    for p in params:
        cin, cout, k, _ = p["w"].shape
        s = int(p["stride"])
        hout, wout = (hin - 1) * s + k, (win - 1) * s + k
        geo.append(dict(Cin=int(cin), Cout=int(cout), K=int(k), s=s,
                        Hin=hin, Win=win, Hout=hout, Wout=wout, N=n_batch))
        hin, win = hout, wout
    return geo


# ----------------- one-time preprocessing of kernel operands ----------------

def prepare_generator(params, n_batch):
    """Precompute (numpy, once) all matrices consumed by the fused kernel."""
    geo = _geometry(params, n_batch)
    n_layers = len(params)

    # ---- per-layer packing geometry ----
    infos = []
    for i, g in enumerate(geo):
        final = (i == n_layers - 1)
        wc_real = g["Wout"] * g["Cout"]
        wc = _ceil_to(wc_real, 128) if final else wc_real       # lane-dense final store
        nhin = n_batch * g["Hin"]
        nhout = n_batch * g["Hout"]
        rinpad = _ceil_to(nhin, 16)                              # bf16 sublane tile = 16
        infos.append(dict(final=final, K=g["K"], s=g["s"], Cin=g["Cin"],
                          Cout=g["Cout"], Hin=g["Hin"], Win=g["Win"],
                          Hout=g["Hout"], Wout=g["Wout"], wc=wc, wc_real=wc_real,
                          nhin=nhin, nhout=nhout, rinpad=rinpad))

    sm_cols = _ceil_to(max(inf["K"] * inf["rinpad"] for inf in infos), 128)
    scratch_cols = max(inf["wc"] for inf in infos)
    rm_cols = max([inf["Cout"] for inf in infos if not inf["final"]] + [8])

    smat_off = rmat_off = bmat_off = 0
    for inf in infos:
        inf["soff"] = smat_off
        smat_off += _ceil_to(inf["nhout"], 16)
        if not inf["final"]:
            inf["roff"] = rmat_off
            rmat_off += _ceil_to(inf["wc"], 8)
            inf["boff"] = bmat_off
            bmat_off += _ceil_to(inf["Cout"], 8)

    smat_pack = np.zeros((max(_ceil_to(smat_off, 16), 16), sm_cols), np.float32)
    rmat_pack = np.zeros((max(_ceil_to(rmat_off, 8), 8), rm_cols), np.float32)
    bmat_pack = np.zeros((max(_ceil_to(bmat_off, 8), 8), scratch_cols), np.float32)
    vec_pack = np.zeros((max(_ceil_to(2 * n_layers, 8), 8), scratch_cols), np.float32)

    wbigs = []
    for i, (p, inf) in enumerate(zip(params, infos)):
        k, s, cin, cout = inf["K"], inf["s"], inf["Cin"], inf["Cout"]
        hin, win, hout, wout = inf["Hin"], inf["Win"], inf["Hout"], inf["Wout"]
        wc, wc_real = inf["wc"], inf["wc_real"]
        w_np = np.asarray(p["w"], np.float32)                    # (Cin, Cout, K, K)

        # Per-tap GEMM weights with the W-axis col2im folded in (final layer is
        # zero-padded to a lane-dense 128-wide output):
        #   wbig[kh, iw*Cin + ci, ow*Cout + co] = w[ci, co, kh, ow - iw*s]
        wbig = np.zeros((k, win * cin, wc), np.float32)
        for kh in range(k):
            for iw in range(win):
                for kw in range(k):
                    ow = iw * s + kw
                    wbig[kh, iw * cin:(iw + 1) * cin,
                         ow * cout:(ow + 1) * cout] = w_np[:, :, kh, kw]
        wbigs.append(jnp.asarray(wbig, jnp.bfloat16))            # bf16 MXU operand

        # Combined H-axis placement matrix: all K taps concatenated along the
        # contraction axis -> a single placement matmul per layer.
        # TODO(synk): batch-block-diagonal, O(N^2); rebuild batch-independently
        # before scaling N (gating for v7x's 64 MiB VMEM).
        soff = inf["soff"]
        for kh in range(k):
            for bi in range(n_batch):
                for ih in range(hin):
                    smat_pack[soff + bi * hout + ih * s + kh,
                              kh * inf["rinpad"] + bi * hin + ih] = 1.0

        if inf["final"]:
            vec_pack[2 * i, :wc_real] = np.tile(np.asarray(p["b"], np.float32), wout)
        else:
            # Factored channel-mean: reduce (WC,Cout) with 1/count folded, then
            # broadcast (Cout,WC).  Conv bias dropped (no-op before batch-stat BN).
            cnt = float(n_batch * hout * wout)
            roff, boff = inf["roff"], inf["boff"]
            eye = np.eye(cout, dtype=np.float32)
            for ow in range(wout):
                rmat_pack[roff + ow * cout: roff + (ow + 1) * cout, :cout] = eye / cnt
                bmat_pack[boff: boff + cout, ow * cout:(ow + 1) * cout] = eye
            vec_pack[2 * i, :wc_real] = np.tile(np.asarray(p["gamma"], np.float32), wout)
            vec_pack[2 * i + 1, :wc_real] = np.tile(np.asarray(p["beta"], np.float32), wout)

    last = infos[-1]
    inputs = [*wbigs,
              jnp.asarray(smat_pack, jnp.bfloat16),
              jnp.asarray(rmat_pack, jnp.float32),
              jnp.asarray(bmat_pack, jnp.float32),
              jnp.asarray(vec_pack, jnp.float32)]
    return dict(inputs=inputs, infos=infos, out_shape=(last["nhout"], last["wc"]),
                sm_cols=sm_cols, scratch_cols=scratch_cols, n_batch=n_batch)


# ----------------------------- fused Pallas kernel --------------------------

def _make_fused_generator_kernel(infos):
    n_layers = len(infos)

    def kernel(*refs):
        x_ref = refs[0]
        wrefs = refs[1:1 + n_layers]
        smat_ref, rmat_ref, bmat_ref, vec_ref = refs[1 + n_layers:5 + n_layers]
        out_ref = refs[5 + n_layers]
        scratch = refs[6 + n_layers]

        # One-time zero: unused scratch entries are only ever hit with zero
        # placement weights, but uninitialised VMEM could hold non-finite bits.
        scratch[...] = jnp.zeros_like(scratch)

        x = x_ref[...]                                   # rows (n,h), cols (w,c), f32
        for li, inf in enumerate(infos):
            k, wc, nhin, nhout = inf["K"], inf["wc"], inf["nhin"], inf["nhout"]
            rinpad, soff = inf["rinpad"], inf["soff"]
            wref = wrefs[li]
            xb = x.astype(jnp.bfloat16)                  # bf16 only on MXU operands

            # ConvTranspose2d: per-tap GEMM (W-axis col2im folded into the weights),
            # results staged into the shared scratch at 16-aligned row offsets ...
            for kh in range(k):
                g = jnp.dot(xb, wref[kh], preferred_element_type=jnp.float32)
                scratch[kh * rinpad:kh * rinpad + nhin, :wc] = g.astype(jnp.bfloat16)

            # ... then ONE combined H-axis placement matmul over all K taps.
            smat = smat_ref[soff:soff + nhout, :]
            y = jnp.dot(smat, scratch[:, :wc], preferred_element_type=jnp.float32)

            if inf["final"]:
                bias_t = vec_ref[2 * li:2 * li + 1, :wc]
                out_ref[...] = jnp.tanh(y + bias_t)
            else:
                cout, roff, boff = inf["Cout"], inf["roff"], inf["boff"]
                gamma_t = vec_ref[2 * li:2 * li + 1, :wc]
                beta_t = vec_ref[2 * li + 1:2 * li + 2, :wc]
                rmat = rmat_ref[roff:roff + wc, :cout]       # (WC, Cout), 1/cnt folded
                bmat = bmat_ref[boff:boff + cout, :wc]       # (Cout, WC)

                # Training-mode BatchNorm2d, single-pass stats, all in f32.
                rs = jnp.sum(y, axis=0, keepdims=True)
                rs2 = jnp.sum(y * y, axis=0, keepdims=True)
                stats = jnp.concatenate([rs, rs2], axis=0)                     # (2, WC)
                stat_t = jnp.dot(jnp.dot(stats, rmat,
                                         preferred_element_type=jnp.float32),
                                 bmat, preferred_element_type=jnp.float32)     # (2, WC)
                mean_t = stat_t[0:1, :]
                var_t = jnp.maximum(stat_t[1:2, :] - mean_t * mean_t, 0.0)
                scale_t = gamma_t * lax.rsqrt(var_t + 1e-5)
                x = jnp.maximum((y - mean_t) * scale_t + beta_t, 0.0)          # ReLU

    return kernel


# ------------------------------ forward wrapper -----------------------------

def generator_forward(noise, prep):
    """noise: (N, z_dim) -> images (N, im_chan, H, W) in NCHW."""
    infos = prep["infos"]
    n = prep["n_batch"]
    assert noise.shape[0] == n, "prep was built for a different batch size"
    flat = [jnp.asarray(noise, jnp.float32)] + list(prep["inputs"])
    kernel = _make_fused_generator_kernel(infos)
    out = pl.pallas_call(
        kernel,
        out_shape=jax.ShapeDtypeStruct(prep["out_shape"], jnp.float32),
        in_specs=[pl.BlockSpec(memory_space=pltpu.MemorySpace.VMEM)] * len(flat),
        out_specs=pl.BlockSpec(memory_space=pltpu.MemorySpace.VMEM),
        scratch_shapes=[pltpu.VMEM((prep["sm_cols"], prep["scratch_cols"]),
                                   jnp.bfloat16)],
    )(*flat)
    last = infos[-1]
    img = out[:, :last["wc_real"]].reshape(n, last["Hout"], last["Wout"], last["Cout"])
    return img.transpose(0, 3, 1, 2)


# ------------------------- pure-JAX reference (check) ------------------------

def _reference_forward(noise, params):
    x = noise.reshape(noise.shape[0], noise.shape[1], 1, 1).astype(jnp.float32)
    n_layers = len(params)
    for i, p in enumerate(params):
        w, b, s = p["w"], p["b"], p["stride"]
        cin, cout, k, _ = w.shape
        n, _, h, wid = x.shape
        ho, wo = (h - 1) * s + k, (wid - 1) * s + k
        y = jnp.einsum("nchw,cokl->nohwkl", x, w)
        out = jnp.zeros((n, cout, ho, wo), jnp.float32)
        for kh in range(k):
            for kw in range(k):
                out = out.at[:, :, kh:kh + (h - 1) * s + 1:s,
                             kw:kw + (wid - 1) * s + 1:s].add(y[:, :, :, :, kh, kw])
        out = out + b.reshape(1, cout, 1, 1)
        if i == n_layers - 1:
            x = jnp.tanh(out)
        else:
            mean = jnp.mean(out, axis=(0, 2, 3), keepdims=True)
            var = jnp.mean((out - mean) ** 2, axis=(0, 2, 3), keepdims=True)
            xhat = (out - mean) * lax.rsqrt(var + 1e-5)
            x = jnp.maximum(xhat * p["gamma"].reshape(1, cout, 1, 1)
                            + p["beta"].reshape(1, cout, 1, 1), 0.0)
    return x


# ----------------------------------- main ------------------------------------

if __name__ == "__main__":
    key = jax.random.PRNGKey(0)
    k_noise, k_params = jax.random.split(key)

    N, Z_DIM, IM_CHAN, HIDDEN = 2, 10, 1, 16
    noise = jax.random.normal(k_noise, (N, Z_DIM), jnp.float32)
    params = init_generator_params(k_params, z_dim=Z_DIM, im_chan=IM_CHAN, hidden_dim=HIDDEN)
    prep = prepare_generator(params, N)

    imgs = generator_forward(noise, prep)
    imgs = jax.block_until_ready(imgs)

    assert imgs.shape == (N, IM_CHAN, 28, 28), imgs.shape
    assert bool(jnp.all(jnp.isfinite(imgs)))
    assert bool(jnp.all(jnp.abs(imgs) <= 1.0))     # tanh range

    ref = _reference_forward(noise, params)
    assert bool(jnp.max(jnp.abs(imgs - ref)) < 0.1), float(jnp.max(jnp.abs(imgs - ref)))

    print("KERNEL_OK")
</pallas_src>

<mosaic_0001>
module attributes {stable_mosaic.version = 11 : i64} {
  func.func @kernel(%arg0: memref<2x10xf32, #tpu.memory_space<vmem>>, %arg1: memref<3x10x192xbf16, #tpu.memory_space<vmem>>, %arg2: memref<4x192x192xbf16, #tpu.memory_space<vmem>>, %arg3: memref<3x192x208xbf16, #tpu.memory_space<vmem>>, %arg4: memref<4x208x128xbf16, #tpu.memory_space<vmem>>, %arg5: memref<128x128xbf16, #tpu.memory_space<vmem>>, %arg6: memref<592x64xf32, #tpu.memory_space<vmem>>, %arg7: memref<112x208xf32, #tpu.memory_space<vmem>>, %arg8: memref<8x208xf32, #tpu.memory_space<vmem>>, %arg9: memref<56x128xf32, #tpu.memory_space<vmem>>, %arg10: memref<128x208xbf16, #tpu.memory_space<vmem>>) attributes {dimension_semantics = [], scalar_prefetch = 0 : i64, scratch_operands = 1 : i64, tpu.core_type = #tpu.core_type<tc>} {
    %cst = arith.constant 0.000000e+00 : bf16
    %0 = vector.broadcast %cst : bf16 to vector<128x208xbf16>
    %c0 = arith.constant 0 : index
    %c0_0 = arith.constant 0 : index
    %1 = vector.load %arg10[%c0, %c0_0] : memref<128x208xbf16, #tpu.memory_space<vmem>>, vector<128x208xbf16>
    tpu.vector_store %arg10[%c0, %c0_0], %0 {strides = array<i32>} : memref<128x208xbf16, #tpu.memory_space<vmem>>, vector<128x208xbf16>,
    %c0_1 = arith.constant 0 : index
    %c0_2 = arith.constant 0 : index
    %2 = vector.load %arg0[%c0_1, %c0_2] : memref<2x10xf32, #tpu.memory_space<vmem>>, vector<2x10xf32>
    %3 = arith.truncf %2 : vector<2x10xf32> to vector<2x10xbf16>
    %c0_3 = arith.constant 0 : index
    %c0_4 = arith.constant 0 : index
    %c0_5 = arith.constant 0 : index
    %4 = vector.load %arg1[%c0_3, %c0_4, %c0_5] : memref<3x10x192xbf16, #tpu.memory_space<vmem>>, vector<1x10x192xbf16>
    %5 = vector.shape_cast %4 : vector<1x10x192xbf16> to vector<10x192xbf16>
    %cst_6 = arith.constant dense<0.000000e+00> : vector<2x192xf32>
    %6 = tpu.matmul %3, %5, %cst_6 {dimension_numbers = #tpu.dot_dimension_numbers<[1], [0], [0], [1], [0, 0, 1, 1], [], []>} : vector<2x10xbf16>, vector<10x192xbf16>, vector<2x192xf32> -> vector<2x192xf32>
    %7 = arith.truncf %6 : vector<2x192xf32> to vector<2x192xbf16>
    %c0_7 = arith.constant 0 : index
    %c0_8 = arith.constant 0 : index
    %8 = vector.load %arg10[%c0_7, %c0_8] : memref<128x208xbf16, #tpu.memory_space<vmem>>, vector<2x192xbf16>
    tpu.vector_store %arg10[%c0_7, %c0_8], %7 {strides = array<i32>} : memref<128x208xbf16, #tpu.memory_space<vmem>>, vector<2x192xbf16>,
    %c1 = arith.constant 1 : index
    %c0_9 = arith.constant 0 : index
    %c0_10 = arith.constant 0 : index
    %9 = vector.load %arg1[%c1, %c0_9, %c0_10] : memref<3x10x192xbf16, #tpu.memory_space<vmem>>, vector<1x10x192xbf16>
    %10 = vector.shape_cast %9 : vector<1x10x192xbf16> to vector<10x192xbf16>
    %cst_11 = arith.constant dense<0.000000e+00> : vector<2x192xf32>
    %11 = tpu.matmul %3, %10, %cst_11 {dimension_numbers = #tpu.dot_dimension_numbers<[1], [0], [0], [1], [0, 0, 1, 1], [], []>} : vector<2x10xbf16>, vector<10x192xbf16>, vector<2x192xf32> -> vector<2x192xf32>
    %12 = arith.truncf %11 : vector<2x192xf32> to vector<2x192xbf16>
    %c16 = arith.constant 16 : index
    %c0_12 = arith.constant 0 : index
    %13 = vector.load %arg10[%c16, %c0_12] : memref<128x208xbf16, #tpu.memory_space<vmem>>, vector<2x192xbf16>
    tpu.vector_store %arg10[%c16, %c0_12], %12 {strides = array<i32>} : memref<128x208xbf16, #tpu.memory_space<vmem>>, vector<2x192xbf16>,
    %c2 = arith.constant 2 : index
    %c0_13 = arith.constant 0 : index
    %c0_14 = arith.constant 0 : index
    %14 = vector.load %arg1[%c2, %c0_13, %c0_14] : memref<3x10x192xbf16, #tpu.memory_space<vmem>>, vector<1x10x192xbf16>
    %15 = vector.shape_cast %14 : vector<1x10x192xbf16> to vector<10x192xbf16>
    %cst_15 = arith.constant dense<0.000000e+00> : vector<2x192xf32>
    %16 = tpu.matmul %3, %15, %cst_15 {dimension_numbers = #tpu.dot_dimension_numbers<[1], [0], [0], [1], [0, 0, 1, 1], [], []>} : vector<2x10xbf16>, vector<10x192xbf16>, vector<2x192xf32> -> vector<2x192xf32>
    %17 = arith.truncf %16 : vector<2x192xf32> to vector<2x192xbf16>
    %c32 = arith.constant 32 : index
    %c0_16 = arith.constant 0 : index
    %18 = vector.load %arg10[%c32, %c0_16] : memref<128x208xbf16, #tpu.memory_space<vmem>>, vector<2x192xbf16>
    tpu.vector_store %arg10[%c32, %c0_16], %17 {strides = array<i32>} : memref<128x208xbf16, #tpu.memory_space<vmem>>, vector<2x192xbf16>,
    %c0_17 = arith.constant 0 : index
    %c0_18 = arith.constant 0 : index
    %19 = vector.load %arg5[%c0_17, %c0_18] : memref<128x128xbf16, #tpu.memory_space<vmem>>, vector<6x128xbf16>
    %c0_19 = arith.constant 0 : index
    %c0_20 = arith.constant 0 : index
    %20 = vector.load %arg10[%c0_19, %c0_20] : memref<128x208xbf16, #tpu.memory_space<vmem>>, vector<128x192xbf16>
    %cst_21 = arith.constant dense<0.000000e+00> : vector<6x192xf32>
    %21 = tpu.matmul %19, %20, %cst_21 {dimension_numbers = #tpu.dot_dimension_numbers<[1], [0], [0], [1], [0, 0, 1, 1], [], []>} : vector<6x128xbf16>, vector<128x192xbf16>, vector<6x192xf32> -> vector<6x192xf32>
    %c0_22 = arith.constant 0 : index
    %c0_23 = arith.constant 0 : index
    %22 = vector.load %arg8[%c0_22, %c0_23] : memref<8x208xf32, #tpu.memory_space<vmem>>, vector<1x192xf32>
    %c1_24 = arith.constant 1 : index
    %c0_25 = arith.constant 0 : index
    %23 = vector.load %arg8[%c1_24, %c0_25] : memref<8x208xf32, #tpu.memory_space<vmem>>, vector<1x192xf32>
    %c0_26 = arith.constant 0 : index
    %c0_27 = arith.constant 0 : index
    %24 = vector.load %arg6[%c0_26, %c0_27] : memref<592x64xf32, #tpu.memory_space<vmem>>, vector<192x64xf32>
    %c0_28 = arith.constant 0 : index
    %c0_29 = arith.constant 0 : index
    %25 = vector.load %arg7[%c0_28, %c0_29] : memref<112x208xf32, #tpu.memory_space<vmem>>, vector<64x192xf32>
    %cst_30 = arith.constant dense<0.000000e+00> : vector<192xf32>
    %26 = vector.multi_reduction <add>, %21, %cst_30 [0] : vector<6x192xf32> to vector<192xf32>
    %27 = vector.shape_cast %26 : vector<192xf32> to vector<1x192xf32>
    %28 = arith.mulf %21, %21 : vector<6x192xf32>
    %cst_31 = arith.constant dense<0.000000e+00> : vector<192xf32>
    %29 = vector.multi_reduction <add>, %28, %cst_31 [0] : vector<6x192xf32> to vector<192xf32>
    %30 = vector.shape_cast %29 : vector<192xf32> to vector<1x192xf32>
    %31 = tpu.concatenate %27, %30 in 0 : vector<1x192xf32>, vector<1x192xf32> -> vector<2x192xf32>
    %cst_32 = arith.constant dense<0.000000e+00> : vector<2x64xf32>
    %32 = tpu.matmul %31, %24, %cst_32 {dimension_numbers = #tpu.dot_dimension_numbers<[1], [0], [0], [1], [0, 0, 1, 1], [], []>} : vector<2x192xf32>, vector<192x64xf32>, vector<2x64xf32> -> vector<2x64xf32>
    %cst_33 = arith.constant dense<0.000000e+00> : vector<2x192xf32>
    %33 = tpu.matmul %32, %25, %cst_33 {dimension_numbers = #tpu.dot_dimension_numbers<[1], [0], [0], [1], [0, 0, 1, 1], [], []>} : vector<2x64xf32>, vector<64x192xf32>, vector<2x192xf32> -> vector<2x192xf32>
    %34 = vector.extract_strided_slice %33 {offsets = [0, 0], sizes = [1, 192], strides = [1, 1]} : vector<2x192xf32> to vector<1x192xf32>
    %35 = vector.extract_strided_slice %33 {offsets = [1, 0], sizes = [1, 192], strides = [1, 1]} : vector<2x192xf32> to vector<1x192xf32>
    %36 = arith.mulf %34, %34 : vector<1x192xf32>
    %37 = arith.subf %35, %36 : vector<1x192xf32>
    %cst_34 = arith.constant 0.000000e+00 : f32
    %38 = vector.broadcast %cst_34 : f32 to vector<1x192xf32>
    %39 = arith.maximumf %37, %38 : vector<1x192xf32>
    %cst_35 = arith.constant 9.99999974E-6 : f32
    %40 = vector.broadcast %cst_35 : f32 to vector<1x192xf32>
    %41 = arith.addf %39, %40 : vector<1x192xf32>
    %42 = math.rsqrt %41 : vector<1x192xf32>
    %43 = arith.mulf %22, %42 : vector<1x192xf32>
    %44 = vector.broadcast %34 : vector<1x192xf32> to vector<6x192xf32>
    %45 = arith.subf %21, %44 : vector<6x192xf32>
    %46 = vector.broadcast %43 : vector<1x192xf32> to vector<6x192xf32>
    %47 = arith.mulf %45, %46 : vector<6x192xf32>
    %48 = vector.broadcast %23 : vector<1x192xf32> to vector<6x192xf32>
    %49 = arith.addf %47, %48 : vector<6x192xf32>
    %cst_36 = arith.constant 0.000000e+00 : f32
    %50 = vector.broadcast %cst_36 : f32 to vector<6x192xf32>
    %51 = arith.maximumf %49, %50 : vector<6x192xf32>
    %52 = arith.truncf %51 : vector<6x192xf32> to vector<6x192xbf16>
    %c0_37 = arith.constant 0 : index
    %c0_38 = arith.constant 0 : index
    %c0_39 = arith.constant 0 : index
    %53 = vector.load %arg2[%c0_37, %c0_38, %c0_39] : memref<4x192x192xbf16, #tpu.memory_space<vmem>>, vector<1x192x192xbf16>
    %54 = vector.shape_cast %53 : vector<1x192x192xbf16> to vector<192x192xbf16>
    %cst_40 = arith.constant dense<0.000000e+00> : vector<6x192xf32>
    %55 = tpu.matmul %52, %54, %cst_40 {dimension_numbers = #tpu.dot_dimension_numbers<[1], [0], [0], [1], [0, 0, 1, 1], [], []>} : vector<6x192xbf16>, vector<192x192xbf16>, vector<6x192xf32> -> vector<6x192xf32>
    %56 = arith.truncf %55 : vector<6x192xf32> to vector<6x192xbf16>
    %c0_41 = arith.constant 0 : index
    %c0_42 = arith.constant 0 : index
    %57 = vector.load %arg10[%c0_41, %c0_42] : memref<128x208xbf16, #tpu.memory_space<vmem>>, vector<6x192xbf16>
    tpu.vector_store %arg10[%c0_41, %c0_42], %56 {strides = array<i32>} : memref<128x208xbf16, #tpu.memory_space<vmem>>, vector<6x192xbf16>,
    %c1_43 = arith.constant 1 : index
    %c0_44 = arith.constant 0 : index
    %c0_45 = arith.constant 0 : index
    %58 = vector.load %arg2[%c1_43, %c0_44, %c0_45] : memref<4x192x192xbf16, #tpu.memory_space<vmem>>, vector<1x192x192xbf16>
    %59 = vector.shape_cast %58 : vector<1x192x192xbf16> to vector<192x192xbf16>
    %cst_46 = arith.constant dense<0.000000e+00> : vector<6x192xf32>
    %60 = tpu.matmul %52, %59, %cst_46 {dimension_numbers = #tpu.dot_dimension_numbers<[1], [0], [0], [1], [0, 0, 1, 1], [], []>} : vector<6x192xbf16>, vector<192x192xbf16>, vector<6x192xf32> -> vector<6x192xf32>
    %61 = arith.truncf %60 : vector<6x192xf32> to vector<6x192xbf16>
    %c16_47 = arith.constant 16 : index
    %c0_48 = arith.constant 0 : index
    %62 = vector.load %arg10[%c16_47, %c0_48] : memref<128x208xbf16, #tpu.memory_space<vmem>>, vector<6x192xbf16>
    tpu.vector_store %arg10[%c16_47, %c0_48], %61 {strides = array<i32>} : memref<128x208xbf16, #tpu.memory_space<vmem>>, vector<6x192xbf16>,
    %c2_49 = arith.constant 2 : index
    %c0_50 = arith.constant 0 : index
    %c0_51 = arith.constant 0 : index
    %63 = vector.load %arg2[%c2_49, %c0_50, %c0_51] : memref<4x192x192xbf16, #tpu.memory_space<vmem>>, vector<1x192x192xbf16>
    %64 = vector.shape_cast %63 : vector<1x192x192xbf16> to vector<192x192xbf16>
    %cst_52 = arith.constant dense<0.000000e+00> : vector<6x192xf32>
    %65 = tpu.matmul %52, %64, %cst_52 {dimension_numbers = #tpu.dot_dimension_numbers<[1], [0], [0], [1], [0, 0, 1, 1], [], []>} : vector<6x192xbf16>, vector<192x192xbf16>, vector<6x192xf32> -> vector<6x192xf32>
    %66 = arith.truncf %65 : vector<6x192xf32> to vector<6x192xbf16>
    %c32_53 = arith.constant 32 : index
    %c0_54 = arith.constant 0 : index
    %67 = vector.load %arg10[%c32_53, %c0_54] : memref<128x208xbf16, #tpu.memory_space<vmem>>, vector<6x192xbf16>
    tpu.vector_store %arg10[%c32_53, %c0_54], %66 {strides = array<i32>} : memref<128x208xbf16, #tpu.memory_space<vmem>>, vector<6x192xbf16>,
    %c3 = arith.constant 3 : index
    %c0_55 = arith.constant 0 : index
    %c0_56 = arith.constant 0 : index
    %68 = vector.load %arg2[%c3, %c0_55, %c0_56] : memref<4x192x192xbf16, #tpu.memory_space<vmem>>, vector<1x192x192xbf16>
    %69 = vector.shape_cast %68 : vector<1x192x192xbf16> to vector<192x192xbf16>
    %cst_57 = arith.constant dense<0.000000e+00> : vector<6x192xf32>
    %70 = tpu.matmul %52, %69, %cst_57 {dimension_numbers = #tpu.dot_dimension_numbers<[1], [0], [0], [1], [0, 0, 1, 1], [], []>} : vector<6x192xbf16>, vector<192x192xbf16>, vector<6x192xf32> -> vector<6x192xf32>
    %71 = arith.truncf %70 : vector<6x192xf32> to vector<6x192xbf16>
    %c48 = arith.constant 48 : index
    %c0_58 = arith.constant 0 : index
    %72 = vector.load %arg10[%c48, %c0_58] : memref<128x208xbf16, #tpu.memory_space<vmem>>, vector<6x192xbf16>
    tpu.vector_store %arg10[%c48, %c0_58], %71 {strides = array<i32>} : memref<128x208xbf16, #tpu.memory_space<vmem>>, vector<6x192xbf16>,
    %c16_59 = arith.constant 16 : index
    %c0_60 = arith.constant 0 : index
    %73 = vector.load %arg5[%c16_59, %c0_60] : memref<128x128xbf16, #tpu.memory_space<vmem>>, vector<12x128xbf16>
    %c0_61 = arith.constant 0 : index
    %c0_62 = arith.constant 0 : index
    %74 = vector.load %arg10[%c0_61, %c0_62] : memref<128x208xbf16, #tpu.memory_space<vmem>>, vector<128x192xbf16>
    %cst_63 = arith.constant dense<0.000000e+00> : vector<12x192xf32>
    %75 = tpu.matmul %73, %74, %cst_63 {dimension_numbers = #tpu.dot_dimension_numbers<[1], [0], [0], [1], [0, 0, 1, 1], [], []>} : vector<12x128xbf16>, vector<128x192xbf16>, vector<12x192xf32> -> vector<12x192xf32>
    %c2_64 = arith.constant 2 : index
    %c0_65 = arith.constant 0 : index
    %76 = vector.load %arg8[%c2_64, %c0_65] : memref<8x208xf32, #tpu.memory_space<vmem>>, vector<1x192xf32>
    %c3_66 = arith.constant 3 : index
    %c0_67 = arith.constant 0 : index
    %77 = vector.load %arg8[%c3_66, %c0_67] : memref<8x208xf32, #tpu.memory_space<vmem>>, vector<1x192xf32>
    %c192 = arith.constant 192 : index
    %c0_68 = arith.constant 0 : index
    %78 = vector.load %arg6[%c192, %c0_68] : memref<592x64xf32, #tpu.memory_space<vmem>>, vector<192x32xf32>
    %c64 = arith.constant 64 : index
    %c0_69 = arith.constant 0 : index
    %79 = vector.load %arg7[%c64, %c0_69] : memref<112x208xf32, #tpu.memory_space<vmem>>, vector<32x192xf32>
    %cst_70 = arith.constant dense<0.000000e+00> : vector<192xf32>
    %80 = vector.multi_reduction <add>, %75, %cst_70 [0] : vector<12x192xf32> to vector<192xf32>
    %81 = vector.shape_cast %80 : vector<192xf32> to vector<1x192xf32>
    %82 = arith.mulf %75, %75 : vector<12x192xf32>
    %cst_71 = arith.constant dense<0.000000e+00> : vector<192xf32>
    %83 = vector.multi_reduction <add>, %82, %cst_71 [0] : vector<12x192xf32> to vector<192xf32>
    %84 = vector.shape_cast %83 : vector<192xf32> to vector<1x192xf32>
    %85 = tpu.concatenate %81, %84 in 0 : vector<1x192xf32>, vector<1x192xf32> -> vector<2x192xf32>
    %cst_72 = arith.constant dense<0.000000e+00> : vector<2x32xf32>
    %86 = tpu.matmul %85, %78, %cst_72 {dimension_numbers = #tpu.dot_dimension_numbers<[1], [0], [0], [1], [0, 0, 1, 1], [], []>} : vector<2x192xf32>, vector<192x32xf32>, vector<2x32xf32> -> vector<2x32xf32>
    %cst_73 = arith.constant dense<0.000000e+00> : vector<2x192xf32>
    %87 = tpu.matmul %86, %79, %cst_73 {dimension_numbers = #tpu.dot_dimension_numbers<[1], [0], [0], [1], [0, 0, 1, 1], [], []>} : vector<2x32xf32>, vector<32x192xf32>, vector<2x192xf32> -> vector<2x192xf32>
    %88 = vector.extract_strided_slice %87 {offsets = [0, 0], sizes = [1, 192], strides = [1, 1]} : vector<2x192xf32> to vector<1x192xf32>
    %89 = vector.extract_strided_slice %87 {offsets = [1, 0], sizes = [1, 192], strides = [1, 1]} : vector<2x192xf32> to vector<1x192xf32>
    %90 = arith.mulf %88, %88 : vector<1x192xf32>
    %91 = arith.subf %89, %90 : vector<1x192xf32>
    %cst_74 = arith.constant 0.000000e+00 : f32
    %92 = vector.broadcast %cst_74 : f32 to vector<1x192xf32>
    %93 = arith.maximumf %91, %92 : vector<1x192xf32>
    %cst_75 = arith.constant 9.99999974E-6 : f32
    %94 = vector.broadcast %cst_75 : f32 to vector<1x192xf32>
    %95 = arith.addf %93, %94 : vector<1x192xf32>
    %96 = math.rsqrt %95 : vector<1x192xf32>
    %97 = arith.mulf %76, %96 : vector<1x192xf32>
    %98 = vector.broadcast %88 : vector<1x192xf32> to vector<12x192xf32>
    %99 = arith.subf %75, %98 : vector<12x192xf32>
    %100 = vector.broadcast %97 : vector<1x192xf32> to vector<12x192xf32>
    %101 = arith.mulf %99, %100 : vector<12x192xf32>
    %102 = vector.broadcast %77 : vector<1x192xf32> to vector<12x192xf32>
    %103 = arith.addf %101, %102 : vector<12x192xf32>
    %cst_76 = arith.constant 0.000000e+00 : f32
    %104 = vector.broadcast %cst_76 : f32 to vector<12x192xf32>
    %105 = arith.maximumf %103, %104 : vector<12x192xf32>
    %106 = arith.truncf %105 : vector<12x192xf32> to vector<12x192xbf16>
    %c0_77 = arith.constant 0 : index
    %c0_78 = arith.constant 0 : index
    %c0_79 = arith.constant 0 : index
    %107 = vector.load %arg3[%c0_77, %c0_78, %c0_79] : memref<3x192x208xbf16, #tpu.memory_space<vmem>>, vector<1x192x208xbf16>
    %108 = vector.shape_cast %107 : vector<1x192x208xbf16> to vector<192x208xbf16>
    %cst_80 = arith.constant dense<0.000000e+00> : vector<12x208xf32>
    %109 = tpu.matmul %106, %108, %cst_80 {dimension_numbers = #tpu.dot_dimension_numbers<[1], [0], [0], [1], [0, 0, 1, 1], [], []>} : vector<12x192xbf16>, vector<192x208xbf16>, vector<12x208xf32> -> vector<12x208xf32>
    %110 = arith.truncf %109 : vector<12x208xf32> to vector<12x208xbf16>
    %c0_81 = arith.constant 0 : index
    %c0_82 = arith.constant 0 : index
    %111 = vector.load %arg10[%c0_81, %c0_82] : memref<128x208xbf16, #tpu.memory_space<vmem>>, vector<12x208xbf16>
    tpu.vector_store %arg10[%c0_81, %c0_82], %110 {strides = array<i32>} : memref<128x208xbf16, #tpu.memory_space<vmem>>, vector<12x208xbf16>,
    %c1_83 = arith.constant 1 : index
    %c0_84 = arith.constant 0 : index
    %c0_85 = arith.constant 0 : index
    %112 = vector.load %arg3[%c1_83, %c0_84, %c0_85] : memref<3x192x208xbf16, #tpu.memory_space<vmem>>, vector<1x192x208xbf16>
    %113 = vector.shape_cast %112 : vector<1x192x208xbf16> to vector<192x208xbf16>
    %cst_86 = arith.constant dense<0.000000e+00> : vector<12x208xf32>
    %114 = tpu.matmul %106, %113, %cst_86 {dimension_numbers = #tpu.dot_dimension_numbers<[1], [0], [0], [1], [0, 0, 1, 1], [], []>} : vector<12x192xbf16>, vector<192x208xbf16>, vector<12x208xf32> -> vector<12x208xf32>
    %115 = arith.truncf %114 : vector<12x208xf32> to vector<12x208xbf16>
    %c16_87 = arith.constant 16 : index
    %c0_88 = arith.constant 0 : index
    %116 = vector.load %arg10[%c16_87, %c0_88] : memref<128x208xbf16, #tpu.memory_space<vmem>>, vector<12x208xbf16>
    tpu.vector_store %arg10[%c16_87, %c0_88], %115 {strides = array<i32>} : memref<128x208xbf16, #tpu.memory_space<vmem>>, vector<12x208xbf16>,
    %c2_89 = arith.constant 2 : index
    %c0_90 = arith.constant 0 : index
    %c0_91 = arith.constant 0 : index
    %117 = vector.load %arg3[%c2_89, %c0_90, %c0_91] : memref<3x192x208xbf16, #tpu.memory_space<vmem>>, vector<1x192x208xbf16>
    %118 = vector.shape_cast %117 : vector<1x192x208xbf16> to vector<192x208xbf16>
    %cst_92 = arith.constant dense<0.000000e+00> : vector<12x208xf32>
    %119 = tpu.matmul %106, %118, %cst_92 {dimension_numbers = #tpu.dot_dimension_numbers<[1], [0], [0], [1], [0, 0, 1, 1], [], []>} : vector<12x192xbf16>, vector<192x208xbf16>, vector<12x208xf32> -> vector<12x208xf32>
    %120 = arith.truncf %119 : vector<12x208xf32> to vector<12x208xbf16>
    %c32_93 = arith.constant 32 : index
    %c0_94 = arith.constant 0 : index
    %121 = vector.load %arg10[%c32_93, %c0_94] : memref<128x208xbf16, #tpu.memory_space<vmem>>, vector<12x208xbf16>
    tpu.vector_store %arg10[%c32_93, %c0_94], %120 {strides = array<i32>} : memref<128x208xbf16, #tpu.memory_space<vmem>>, vector<12x208xbf16>,
    %c32_95 = arith.constant 32 : index
    %c0_96 = arith.constant 0 : index
    %122 = vector.load %arg5[%c32_95, %c0_96] : memref<128x128xbf16, #tpu.memory_space<vmem>>, vector<26x128xbf16>
    %c0_97 = arith.constant 0 : index
    %c0_98 = arith.constant 0 : index
    %123 = vector.load %arg10[%c0_97, %c0_98] : memref<128x208xbf16, #tpu.memory_space<vmem>>, vector<128x208xbf16>
    %cst_99 = arith.constant dense<0.000000e+00> : vector<26x208xf32>
    %124 = tpu.matmul %122, %123, %cst_99 {dimension_numbers = #tpu.dot_dimension_numbers<[1], [0], [0], [1], [0, 0, 1, 1], [], []>} : vector<26x128xbf16>, vector<128x208xbf16>, vector<26x208xf32> -> vector<26x208xf32>
    %c4 = arith.constant 4 : index
    %c0_100 = arith.constant 0 : index
    %125 = vector.load %arg8[%c4, %c0_100] : memref<8x208xf32, #tpu.memory_space<vmem>>, vector<1x208xf32>
    %c5 = arith.constant 5 : index
    %c0_101 = arith.constant 0 : index
    %126 = vector.load %arg8[%c5, %c0_101] : memref<8x208xf32, #tpu.memory_space<vmem>>, vector<1x208xf32>
    %c384 = arith.constant 384 : index
    %c0_102 = arith.constant 0 : index
    %127 = vector.load %arg6[%c384, %c0_102] : memref<592x64xf32, #tpu.memory_space<vmem>>, vector<208x16xf32>
    %c96 = arith.constant 96 : index
    %c0_103 = arith.constant 0 : index
    %128 = vector.load %arg7[%c96, %c0_103] : memref<112x208xf32, #tpu.memory_space<vmem>>, vector<16x208xf32>
    %cst_104 = arith.constant dense<0.000000e+00> : vector<208xf32>
    %129 = vector.multi_reduction <add>, %124, %cst_104 [0] : vector<26x208xf32> to vector<208xf32>
    %130 = vector.shape_cast %129 : vector<208xf32> to vector<1x208xf32>
    %131 = arith.mulf %124, %124 : vector<26x208xf32>
    %cst_105 = arith.constant dense<0.000000e+00> : vector<208xf32>
    %132 = vector.multi_reduction <add>, %131, %cst_105 [0] : vector<26x208xf32> to vector<208xf32>
    %133 = vector.shape_cast %132 : vector<208xf32> to vector<1x208xf32>
    %134 = tpu.concatenate %130, %133 in 0 : vector<1x208xf32>, vector<1x208xf32> -> vector<2x208xf32>
    %cst_106 = arith.constant dense<0.000000e+00> : vector<2x16xf32>
    %135 = tpu.matmul %134, %127, %cst_106 {dimension_numbers = #tpu.dot_dimension_numbers<[1], [0], [0], [1], [0, 0, 1, 1], [], []>} : vector<2x208xf32>, vector<208x16xf32>, vector<2x16xf32> -> vector<2x16xf32>
    %cst_107 = arith.constant dense<0.000000e+00> : vector<2x208xf32>
    %136 = tpu.matmul %135, %128, %cst_107 {dimension_numbers = #tpu.dot_dimension_numbers<[1], [0], [0], [1], [0, 0, 1, 1], [], []>} : vector<2x16xf32>, vector<16x208xf32>, vector<2x208xf32> -> vector<2x208xf32>
    %137 = vector.extract_strided_slice %136 {offsets = [0, 0], sizes = [1, 208], strides = [1, 1]} : vector<2x208xf32> to vector<1x208xf32>
    %138 = vector.extract_strided_slice %136 {offsets = [1, 0], sizes = [1, 208], strides = [1, 1]} : vector<2x208xf32> to vector<1x208xf32>
    %139 = arith.mulf %137, %137 : vector<1x208xf32>
    %140 = arith.subf %138, %139 : vector<1x208xf32>
    %cst_108 = arith.constant 0.000000e+00 : f32
    %141 = vector.broadcast %cst_108 : f32 to vector<1x208xf32>
    %142 = arith.maximumf %140, %141 : vector<1x208xf32>
    %cst_109 = arith.constant 9.99999974E-6 : f32
    %143 = vector.broadcast %cst_109 : f32 to vector<1x208xf32>
    %144 = arith.addf %142, %143 : vector<1x208xf32>
    %145 = math.rsqrt %144 : vector<1x208xf32>
    %146 = arith.mulf %125, %145 : vector<1x208xf32>
    %147 = vector.broadcast %137 : vector<1x208xf32> to vector<26x208xf32>
    %148 = arith.subf %124, %147 : vector<26x208xf32>
    %149 = vector.broadcast %146 : vector<1x208xf32> to vector<26x208xf32>
    %150 = arith.mulf %148, %149 : vector<26x208xf32>
    %151 = vector.broadcast %126 : vector<1x208xf32> to vector<26x208xf32>
    %152 = arith.addf %150, %151 : vector<26x208xf32>
    %cst_110 = arith.constant 0.000000e+00 : f32
    %153 = vector.broadcast %cst_110 : f32 to vector<26x208xf32>
    %154 = arith.maximumf %152, %153 : vector<26x208xf32>
    %155 = arith.truncf %154 : vector<26x208xf32> to vector<26x208xbf16>
    %c0_111 = arith.constant 0 : index
    %c0_112 = arith.constant 0 : index
    %c0_113 = arith.constant 0 : index
    %156 = vector.load %arg4[%c0_111, %c0_112, %c0_113] : memref<4x208x128xbf16, #tpu.memory_space<vmem>>, vector<1x208x128xbf16>
    %157 = vector.shape_cast %156 : vector<1x208x128xbf16> to vector<208x128xbf16>
    %cst_114 = arith.constant dense<0.000000e+00> : vector<26x128xf32>
    %158 = tpu.matmul %155, %157, %cst_114 {dimension_numbers = #tpu.dot_dimension_numbers<[1], [0], [0], [1], [0, 0, 1, 1], [], []>} : vector<26x208xbf16>, vector<208x128xbf16>, vector<26x128xf32> -> vector<26x128xf32>
    %159 = arith.truncf %158 : vector<26x128xf32> to vector<26x128xbf16>
    %c0_115 = arith.constant 0 : index
    %c0_116 = arith.constant 0 : index
    %160 = vector.load %arg10[%c0_115, %c0_116] : memref<128x208xbf16, #tpu.memory_space<vmem>>, vector<26x128xbf16>
    tpu.vector_store %arg10[%c0_115, %c0_116], %159 {strides = array<i32>} : memref<128x208xbf16, #tpu.memory_space<vmem>>, vector<26x128xbf16>,
    %c1_117 = arith.constant 1 : index
    %c0_118 = arith.constant 0 : index
    %c0_119 = arith.constant 0 : index
    %161 = vector.load %arg4[%c1_117, %c0_118, %c0_119] : memref<4x208x128xbf16, #tpu.memory_space<vmem>>, vector<1x208x128xbf16>
    %162 = vector.shape_cast %161 : vector<1x208x128xbf16> to vector<208x128xbf16>
    %cst_120 = arith.constant dense<0.000000e+00> : vector<26x128xf32>
    %163 = tpu.matmul %155, %162, %cst_120 {dimension_numbers = #tpu.dot_dimension_numbers<[1], [0], [0], [1], [0, 0, 1, 1], [], []>} : vector<26x208xbf16>, vector<208x128xbf16>, vector<26x128xf32> -> vector<26x128xf32>
    %164 = arith.truncf %163 : vector<26x128xf32> to vector<26x128xbf16>
    %c32_121 = arith.constant 32 : index
    %c0_122 = arith.constant 0 : index
    %165 = vector.load %arg10[%c32_121, %c0_122] : memref<128x208xbf16, #tpu.memory_space<vmem>>, vector<26x128xbf16>
    tpu.vector_store %arg10[%c32_121, %c0_122], %164 {strides = array<i32>} : memref<128x208xbf16, #tpu.memory_space<vmem>>, vector<26x128xbf16>,
    %c2_123 = arith.constant 2 : index
    %c0_124 = arith.constant 0 : index
    %c0_125 = arith.constant 0 : index
    %166 = vector.load %arg4[%c2_123, %c0_124, %c0_125] : memref<4x208x128xbf16, #tpu.memory_space<vmem>>, vector<1x208x128xbf16>
    %167 = vector.shape_cast %166 : vector<1x208x128xbf16> to vector<208x128xbf16>
    %cst_126 = arith.constant dense<0.000000e+00> : vector<26x128xf32>
    %168 = tpu.matmul %155, %167, %cst_126 {dimension_numbers = #tpu.dot_dimension_numbers<[1], [0], [0], [1], [0, 0, 1, 1], [], []>} : vector<26x208xbf16>, vector<208x128xbf16>, vector<26x128xf32> -> vector<26x128xf32>
    %169 = arith.truncf %168 : vector<26x128xf32> to vector<26x128xbf16>
    %c64_127 = arith.constant 64 : index
    %c0_128 = arith.constant 0 : index
    %170 = vector.load %arg10[%c64_127, %c0_128] : memref<128x208xbf16, #tpu.memory_space<vmem>>, vector<26x128xbf16>
    tpu.vector_store %arg10[%c64_127, %c0_128], %169 {strides = array<i32>} : memref<128x208xbf16, #tpu.memory_space<vmem>>, vector<26x128xbf16>,
    %c3_129 = arith.constant 3 : index
    %c0_130 = arith.constant 0 : index
    %c0_131 = arith.constant 0 : index
    %171 = vector.load %arg4[%c3_129, %c0_130, %c0_131] : memref<4x208x128xbf16, #tpu.memory_space<vmem>>, vector<1x208x128xbf16>
    %172 = vector.shape_cast %171 : vector<1x208x128xbf16> to vector<208x128xbf16>
    %cst_132 = arith.constant dense<0.000000e+00> : vector<26x128xf32>
    %173 = tpu.matmul %155, %172, %cst_132 {dimension_numbers = #tpu.dot_dimension_numbers<[1], [0], [0], [1], [0, 0, 1, 1], [], []>} : vector<26x208xbf16>, vector<208x128xbf16>, vector<26x128xf32> -> vector<26x128xf32>
    %174 = arith.truncf %173 : vector<26x128xf32> to vector<26x128xbf16>
    %c96_133 = arith.constant 96 : index
    %c0_134 = arith.constant 0 : index
    %175 = vector.load %arg10[%c96_133, %c0_134] : memref<128x208xbf16, #tpu.memory_space<vmem>>, vector<26x128xbf16>
    tpu.vector_store %arg10[%c96_133, %c0_134], %174 {strides = array<i32>} : memref<128x208xbf16, #tpu.memory_space<vmem>>, vector<26x128xbf16>,
    %c64_135 = arith.constant 64 : index
    %c0_136 = arith.constant 0 : index
    %176 = vector.load %arg5[%c64_135, %c0_136] : memref<128x128xbf16, #tpu.memory_space<vmem>>, vector<56x128xbf16>
    %c0_137 = arith.constant 0 : index
    %c0_138 = arith.constant 0 : index
    %177 = vector.load %arg10[%c0_137, %c0_138] : memref<128x208xbf16, #tpu.memory_space<vmem>>, vector<128x128xbf16>
    %cst_139 = arith.constant dense<0.000000e+00> : vector<56x128xf32>
    %178 = tpu.matmul %176, %177, %cst_139 {dimension_numbers = #tpu.dot_dimension_numbers<[1], [0], [0], [1], [0, 0, 1, 1], [], []>} : vector<56x128xbf16>, vector<128x128xbf16>, vector<56x128xf32> -> vector<56x128xf32>
    %c6 = arith.constant 6 : index
    %c0_140 = arith.constant 0 : index
    %179 = vector.load %arg8[%c6, %c0_140] : memref<8x208xf32, #tpu.memory_space<vmem>>, vector<1x128xf32>
    %180 = vector.broadcast %179 : vector<1x128xf32> to vector<56x128xf32>
    %181 = arith.addf %178, %180 : vector<56x128xf32>
    %182 = math.tanh %181 : vector<56x128xf32>
    %c0_141 = arith.constant 0 : index
    %c0_142 = arith.constant 0 : index
    %183 = vector.load %arg9[%c0_141, %c0_142] : memref<56x128xf32, #tpu.memory_space<vmem>>, vector<56x128xf32>
    tpu.vector_store %arg9[%c0_141, %c0_142], %182 {strides = array<i32>} : memref<56x128xf32, #tpu.memory_space<vmem>>, vector<56x128xf32>,
    return
  }
}

</mosaic_0001>

<llo_original>
// kernel: tpu_custom_call.1
$region0: #{tpu_custom_call.1}
  #allocation0 [shape = 'u32[]', space=smem, size = 0x4, offset = 0x4, fixed_abs, tag = 'smem constant byte address 0x4 - core index']
  #allocation1 [shape = 'u32[144,128]{1,0:T(1,128)}', space=vmem, size = 0x12000, scoped, tag = 'internal scratch']
  #allocation2 [shape = 'bf16[128,208]{1,0:T(16,128)(2,1)}', space=vmem, size = 0x10000, scoped, tag = 'scratch operand']
  %s0 = inlined_call_operand.vmem [shape: f32[2,10], index: 0, kind: input, shape index: {}]
  %s1 = inlined_call_operand.vmem [shape: bf16[3,10,192], index: 1, kind: input, shape index: {}]
  %s2 = inlined_call_operand.vmem [shape: bf16[4,192,192], index: 2, kind: input, shape index: {}]
  %s3 = inlined_call_operand.vmem [shape: bf16[3,192,208], index: 3, kind: input, shape index: {}]
  %s4 = inlined_call_operand.hbm [shape: bf16[4,208,128], index: 4, kind: input, shape index: {}]
  %s5 = inlined_call_operand.vmem [shape: bf16[128,128], index: 5, kind: input, shape index: {}]
  %s6 = inlined_call_operand.vmem [shape: f32[592,64], index: 6, kind: input, shape index: {}]
  %s7 = inlined_call_operand.vmem [shape: f32[112,208], index: 7, kind: input, shape index: {}]
  %s8 = inlined_call_operand.vmem [shape: f32[8,208], index: 8, kind: input, shape index: {}]
  %s9 = inlined_call_operand.hbm [shape: f32[56,128], index: 9, kind: output, shape index: {}]
  %s10 = sld [smem:[#allocation0]]
  $region50: #{tpu_custom_call.1} parent=0
    _
  %s12 = ssub.s32 1, %s10
  %s13 = scalar_select 0, %s12, %s10
  $region1: #{tpu_custom_call.1} parent=0
    #allocation3 [shape = 'u8[212992]{0}', space=vmem, size = 0x34000, scoped, tag = 'input window, operand 4, single buffered']
    #allocation4 [shape = 's32[1]{0}', space=sflag, size = 0x4, scoped, tag = 'scoped memory for tpu_custom_call.1']
    #allocation5 [shape = 's32[1]{0}', space=sflag, size = 0x4, scoped, tag = 'scoped memory for tpu_custom_call.1']
    #allocation6 [shape = 'u8[28672]{0}', space=vmem, size = 0x7000, scoped, tag = 'output window, operand 0, single buffered']
    %14 = vsyncpa [#allocation4], 0
    %15 = vsyncpa [#allocation5], 0
    // Predicated region
    $region2: #{tpu_custom_call.1} parent=1 // pred_check
      _
    $region3: #{tpu_custom_call.1} parent=1 // pred_check_branch
      %17 = sbr.rel (0) target = $region5
    $region4: #{tpu_custom_call.1} parent=1 // pred_region
      _
    $region5: #{tpu_custom_call.1} parent=1 // pred_fallthru
      _
    // Predicated region
    $region6: #{tpu_custom_call.1} parent=1 // pred_check
      _
    $region7: #{tpu_custom_call.1} parent=1 // pred_check_branch
      %19 = sbr.rel (0) target = $region9
    $region8: #{tpu_custom_call.1} parent=1 // pred_region
      _
    $region9: #{tpu_custom_call.1} parent=1 // pred_fallthru
      _
    // Predicated region
    $region10: #{tpu_custom_call.1} parent=1 // pred_check
      _
    $region11: #{tpu_custom_call.1} parent=1 // pred_check_branch
      %21 = sbr.rel (0) target = $region13
    $region12: #{tpu_custom_call.1} parent=1 // pred_region
      _
    $region13: #{tpu_custom_call.1} parent=1 // pred_fallthru
      _
    // Predicated region
    $region14: #{tpu_custom_call.1} parent=1 // pred_check
      _
    $region15: #{tpu_custom_call.1} parent=1 // pred_check_branch
      %23 = sbr.rel (0) target = $region17
    $region16: #{tpu_custom_call.1} parent=1 // pred_region
      _
    $region17: #{tpu_custom_call.1} parent=1 // pred_fallthru
      _
    // Predicated region
    $region18: #{tpu_custom_call.1} parent=1 // pred_check
      _
    $region19: #{tpu_custom_call.1} parent=1 // pred_check_branch
      %25 = sbr.rel (0) target = $region21
    $region20: #{tpu_custom_call.1} parent=1 // pred_region
      %s27 = ssub.s32 6656, 6656
      %28 = vsyncadd [#allocation4], %s27
      %s29 = sshll.u32 [#allocation3], 4
      %s30 = int_to_ptr.vmem [resolvable:$true] %s29
      %35 = dma.hbm_to_vmem [thread:$0]  %s4, 6656, %s30, [#allocation4], 64, 64, 4
    $region21: #{tpu_custom_call.1} parent=1 // pred_fallthru
      _
    // Predicated region
    $region22: #{tpu_custom_call.1} parent=1 // pred_check
      _
    $region23: #{tpu_custom_call.1} parent=1 // pred_check_branch
      %37 = sbr.rel (0) target = $region25
    $region24: #{tpu_custom_call.1} parent=1 // pred_region
      _
    $region25: #{tpu_custom_call.1} parent=1 // pred_fallthru
      _
    // Predicated region
    $region26: #{tpu_custom_call.1} parent=1 // pred_check
      _
    $region27: #{tpu_custom_call.1} parent=1 // pred_check_branch
      %39 = sbr.rel (0) target = $region29
    $region28: #{tpu_custom_call.1} parent=1 // pred_region
      _
    $region29: #{tpu_custom_call.1} parent=1 // pred_fallthru
      _
    // Predicated region
    $region30: #{tpu_custom_call.1} parent=1 // pred_check
      _
    $region31: #{tpu_custom_call.1} parent=1 // pred_check_branch
      %41 = sbr.rel (0) target = $region33
    $region32: #{tpu_custom_call.1} parent=1 // pred_region
      _
    $region33: #{tpu_custom_call.1} parent=1 // pred_fallthru
      _
    // Predicated region
    $region34: #{tpu_custom_call.1} parent=1 // pred_check
      _
    $region35: #{tpu_custom_call.1} parent=1 // pred_check_branch
      %43 = sbr.rel (0) target = $region37
    $region36: #{tpu_custom_call.1} parent=1 // pred_region
      _
    $region37: #{tpu_custom_call.1} parent=1 // pred_fallthru
      _
    // Predicated region
    $region38: #{tpu_custom_call.1} parent=1 // pred_check
      _
    $region39: #{tpu_custom_call.1} parent=1 // pred_check_branch
      %45 = sbr.rel (0) target = $region41
    $region40: #{tpu_custom_call.1} parent=1 // pred_region
      %46 = dma.done [#allocation4], 6656
    $region41: #{tpu_custom_call.1} parent=1 // pred_fallthru
      _
    %48 = vst [vmem:[#allocation2] sm:$0xff] 0
    %vm49 = vcmask 654336
    %50 = vst.msk [vmem:[#allocation2 + $0x8] sm:$0xff] %vm49, 0
    %51 = vst [vmem:[#allocation2 + $0x10] sm:$0xff] 0
    %52 = vst.msk [vmem:[#allocation2 + $0x18] sm:$0xff] %vm49, 0
    %53 = vst [vmem:[#allocation2 + $0x20] sm:$0xff] 0
    %54 = vst.msk [vmem:[#allocation2 + $0x28] sm:$0xff] %vm49, 0
    %55 = vst [vmem:[#allocation2 + $0x30] sm:$0xff] 0
    %56 = vst.msk [vmem:[#allocation2 + $0x38] sm:$0xff] %vm49, 0
    %57 = vst [vmem:[#allocation2 + $0x40] sm:$0xff] 0
    %58 = vst.msk [vmem:[#allocation2 + $0x48] sm:$0xff] %vm49, 0
    %59 = vst [vmem:[#allocation2 + $0x50] sm:$0xff] 0
    %60 = vst.msk [vmem:[#allocation2 + $0x58] sm:$0xff] %vm49, 0
    %61 = vst [vmem:[#allocation2 + $0x60] sm:$0xff] 0
    %62 = vst.msk [vmem:[#allocation2 + $0x68] sm:$0xff] %vm49, 0
    %63 = vst [vmem:[#allocation2 + $0x70] sm:$0xff] 0
    %64 = vst.msk [vmem:[#allocation2 + $0x78] sm:$0xff] %vm49, 0
    %v65 = vld [vmem:[%s0] sm:$0x3]
    %v66 = vpack.c.bf16 %v65, %v65
    %v67 = vld [vmem:[%s1] sm:$0xff]
    %v68 = vld [vmem:[%s1 + $0x8] sm:$0x11]
    %v71 = vunpack.c.l.b16 %v67
    %v72 = vunpack.c.h.b16 %v67
    %v73 = vunpack.c.l.b16 %v68
    %v74 = vunpack.c.h.b16 %v68
    %v75 = vpack.c.b16 %v73, %v71
    %v76 = vpack.c.b16 %v74, %v72
    %vm77 = vcmask 80896
    %v79 = vsel %vm77, %v66, 0
    %vm81 = vcmask 1044480
    %v83 = vsel %vm81, %v75, 0
    %v86 = vsel %vm81, %v76, 0
    %88 = vmatprep.subr.bf16.mxu0 %v86
    %89 = vmatpush1.bf16.msra.mxu0 %v83
    %90 = vmatprep.subr.bf16.mxu0 0
    %91 = vmatpush1.bf16.msra.mxu0 0
    %92 = vmatprep.subr.bf16.mxu0 0
    %93 = vmatpush1.bf16.msra.mxu0 0
    %94 = vmatprep.subr.bf16.mxu0 0
    %95 = vmatpush1.bf16.msra.mxu0 0
    %96 = vmatprep.subr.bf16.mxu0 0
    %97 = vmatpush1.bf16.msra.mxu0 0
    %98 = vmatprep.subr.bf16.mxu0 0
    %99 = vmatpush1.bf16.msra.mxu0 0
    %100 = vmatprep.subr.bf16.mxu0 0
    %101 = vmatpush1.bf16.msra.mxu0 0
    %102 = vmatprep.subr.bf16.mxu0 0
    %103 = vmatpush1.bf16.msra.mxu0 0
    %104 = vmatprep.subr.bf16.mxu0 0
    %105 = vmatpush1.bf16.msra.mxu0 0
    %106 = vmatprep.subr.bf16.mxu0 0
    %107 = vmatpush1.bf16.msra.mxu0 0
    %108 = vmatprep.subr.bf16.mxu0 0
    %109 = vmatpush1.bf16.msra.mxu0 0
    %110 = vmatprep.subr.bf16.mxu0 0
    %111 = vmatpush1.bf16.msra.mxu0 0
    %112 = vmatprep.subr.bf16.mxu0 0
    %113 = vmatpush1.bf16.msra.mxu0 0
    %114 = vmatprep.subr.bf16.mxu0 0
    %115 = vmatpush1.bf16.msra.mxu0 0
    %116 = vmatprep.subr.bf16.mxu0 0
    %117 = vmatpush1.bf16.msra.mxu0 0
    %118 = vmatprep.subr.bf16.mxu0 0
    %119 = vmatpush1.bf16.msra.mxu0 0
    %120 = vmatprep.mubr.bf16.mxu0 0
    %121 = vmatmul.mubr.bf16.gmra.mrb[0].mxu0 %v79
    %v122 = vpop.f32.mrb[0].mxu0
    %v123 = vadd.f32 0.0, %v122
    %v124 = vpop.f32.mrb[0].mxu0
    %v125 = vadd.f32 0.0, %v124
    %v126 = vpop.f32.mrb[0].mxu0
    %v127 = vpop.f32.mrb[0].mxu0
    %128 = vdwg.mxu0
    %v129 = vpack.c.bf16 %v123, %v123
    %v130 = vpack.c.bf16 %v125, %v125
    %131 = vst [vmem:[#allocation2] sm:$0x1] %v129
    %vm132 = vcmask 516096
    %133 = vst.msk [vmem:[#allocation2 + $0x8] sm:$0x1] %vm132, %v130
    %s134 = scalar_lea.vmem %s1, 16
    %v135 = vld [vmem:[%s134] sm:$0xff]
    %v136 = vld [vmem:[%s134 + $0x8] sm:$0x11]
    %v139 = vunpack.c.l.b16 %v135
    %v140 = vunpack.c.h.b16 %v135
    %v141 = vunpack.c.l.b16 %v136
    %v142 = vunpack.c.h.b16 %v136
    %v143 = vpack.c.b16 %v141, %v139
    %v144 = vpack.c.b16 %v142, %v140
    %v146 = vsel %vm81, %v143, 0
    %v149 = vsel %vm81, %v144, 0
    %151 = vmatprep.subr.bf16.mxu0 %v149
    %152 = vmatpush1.bf16.msra.mxu0 %v146
    %153 = vmatprep.subr.bf16.mxu0 0
    %154 = vmatpush1.bf16.msra.mxu0 0
    %155 = vmatprep.subr.bf16.mxu0 0
    %156 = vmatpush1.bf16.msra.mxu0 0
    %157 = vmatprep.subr.bf16.mxu0 0
    %158 = vmatpush1.bf16.msra.mxu0 0
    %159 = vmatprep.subr.bf16.mxu0 0
    %160 = vmatpush1.bf16.msra.mxu0 0
    %161 = vmatprep.subr.bf16.mxu0 0
    %162 = vmatpush1.bf16.msra.mxu0 0
    %163 = vmatprep.subr.bf16.mxu0 0
    %164 = vmatpush1.bf16.msra.mxu0 0
    %165 = vmatprep.subr.bf16.mxu0 0
    %166 = vmatpush1.bf16.msra.mxu0 0
    %167 = vmatprep.subr.bf16.mxu0 0
    %168 = vmatpush1.bf16.msra.mxu0 0
    %169 = vmatprep.subr.bf16.mxu0 0
    %170 = vmatpush1.bf16.msra.mxu0 0
    %171 = vmatprep.subr.bf16.mxu0 0
    %172 = vmatpush1.bf16.msra.mxu0 0
    %173 = vmatprep.subr.bf16.mxu0 0
    %174 = vmatpush1.bf16.msra.mxu0 0
    %175 = vmatprep.subr.bf16.mxu0 0
    %176 = vmatpush1.bf16.msra.mxu0 0
    %177 = vmatprep.subr.bf16.mxu0 0
    %178 = vmatpush1.bf16.msra.mxu0 0
    %179 = vmatprep.subr.bf16.mxu0 0
    %180 = vmatpush1.bf16.msra.mxu0 0
    %181 = vmatprep.subr.bf16.mxu0 0
    %182 = vmatpush1.bf16.msra.mxu0 0
    %183 = vmatprep.mubr.bf16.mxu0 0
    %184 = vmatmul.mubr.bf16.gmra.mrb[0].mxu0 %v79
    %v185 = vpop.f32.mrb[0].mxu0
    %v186 = vadd.f32 0.0, %v185
    %v187 = vpop.f32.mrb[0].mxu0
    %v188 = vadd.f32 0.0, %v187
    %v189 = vpop.f32.mrb[0].mxu0
    %v190 = vpop.f32.mrb[0].mxu0
    %191 = vdwg.mxu0
    %v192 = vpack.c.bf16 %v186, %v186
    %v193 = vpack.c.bf16 %v188, %v188
    %194 = vst [vmem:[#allocation2 + $0x10] sm:$0x1] %v192
    %195 = vst.msk [vmem:[#allocation2 + $0x18] sm:$0x1] %vm132, %v193
    %s196 = scalar_lea.vmem %s1, 32
    %v197 = vld [vmem:[%s196] sm:$0xff]
    %v198 = vld [vmem:[%s196 + $0x8] sm:$0x11]
    %v201 = vunpack.c.l.b16 %v197
    %v202 = vunpack.c.h.b16 %v197
    %v203 = vunpack.c.l.b16 %v198
    %v204 = vunpack.c.h.b16 %v198
    %v205 = vpack.c.b16 %v203, %v201
    %v206 = vpack.c.b16 %v204, %v202
    %v208 = vsel %vm81, %v205, 0
    %v211 = vsel %vm81, %v206, 0
    %213 = vmatprep.subr.bf16.mxu0 %v211
    %214 = vmatpush1.bf16.msra.mxu0 %v208
    %215 = vmatprep.subr.bf16.mxu0 0
    %216 = vmatpush1.bf16.msra.mxu0 0
    %217 = vmatprep.subr.bf16.mxu0 0
    %218 = vmatpush1.bf16.msra.mxu0 0
    %219 = vmatprep.subr.bf16.mxu0 0
    %220 = vmatpush1.bf16.msra.mxu0 0
    %221 = vmatprep.subr.bf16.mxu0 0
    %222 = vmatpush1.bf16.msra.mxu0 0
    %223 = vmatprep.subr.bf16.mxu0 0
    %224 = vmatpush1.bf16.msra.mxu0 0
    %225 = vmatprep.subr.bf16.mxu0 0
    %226 = vmatpush1.bf16.msra.mxu0 0
    %227 = vmatprep.subr.bf16.mxu0 0
    %228 = vmatpush1.bf16.msra.mxu0 0
    %229 = vmatprep.subr.bf16.mxu0 0
    %230 = vmatpush1.bf16.msra.mxu0 0
    %231 = vmatprep.subr.bf16.mxu0 0
    %232 = vmatpush1.bf16.msra.mxu0 0
    %233 = vmatprep.subr.bf16.mxu0 0
    %234 = vmatpush1.bf16.msra.mxu0 0
    %235 = vmatprep.subr.bf16.mxu0 0
    %236 = vmatpush1.bf16.msra.mxu0 0
    %237 = vmatprep.subr.bf16.mxu0 0
    %238 = vmatpush1.bf16.msra.mxu0 0
    %239 = vmatprep.subr.bf16.mxu0 0
    %240 = vmatpush1.bf16.msra.mxu0 0
    %241 = vmatprep.subr.bf16.mxu0 0
    %242 = vmatpush1.bf16.msra.mxu0 0
    %243 = vmatprep.subr.bf16.mxu0 0
    %244 = vmatpush1.bf16.msra.mxu0 0
    %245 = vmatprep.mubr.bf16.mxu0 0
    %246 = vmatmul.mubr.bf16.gmra.mrb[0].mxu0 %v79
    %v247 = vpop.f32.mrb[0].mxu0
    %v248 = vadd.f32 0.0, %v247
    %v249 = vpop.f32.mrb[0].mxu0
    %v250 = vadd.f32 0.0, %v249
    %v251 = vpop.f32.mrb[0].mxu0
    %v252 = vpop.f32.mrb[0].mxu0
    %253 = vdwg.mxu0
    %v254 = vpack.c.bf16 %v248, %v248
    %v255 = vpack.c.bf16 %v250, %v250
    %256 = vst [vmem:[#allocation2 + $0x20] sm:$0x1] %v254
    %257 = vst.msk [vmem:[#allocation2 + $0x28] sm:$0x1] %vm132, %v255
    %v258 = vld [vmem:[%s5] sm:$0x7]
    %v259 = vld [vmem:[#allocation2] sm:$0xff]
    %v260 = vld [vmem:[#allocation2 + $0x8] sm:$0xff]
    %v261 = vld [vmem:[#allocation2 + $0x10] sm:$0xff]
    %v262 = vld [vmem:[#allocation2 + $0x18] sm:$0xff]
    %v263 = vld [vmem:[#allocation2 + $0x20] sm:$0xff]
    %v264 = vld [vmem:[#allocation2 + $0x28] sm:$0xff]
    %v265 = vld [vmem:[#allocation2 + $0x30] sm:$0xff]
    %v266 = vld [vmem:[#allocation2 + $0x38] sm:$0xff]
    %v267 = vld [vmem:[#allocation2 + $0x40] sm:$0xff]
    %v268 = vld [vmem:[#allocation2 + $0x48] sm:$0xff]
    %v269 = vld [vmem:[#allocation2 + $0x50] sm:$0xff]
    %v270 = vld [vmem:[#allocation2 + $0x58] sm:$0xff]
    %v271 = vld [vmem:[#allocation2 + $0x60] sm:$0xff]
    %v272 = vld [vmem:[#allocation2 + $0x68] sm:$0xff]
    %v273 = vld [vmem:[#allocation2 + $0x70] sm:$0xff]
    %v274 = vld [vmem:[#allocation2 + $0x78] sm:$0xff]
    %275 = vmatprep.subr.bf16.mxu0 %v260
    %276 = vmatpush1.bf16.msra.mxu0 %v259
    %277 = vmatprep.subr.bf16.mxu0 %v262
    %278 = vmatpush1.bf16.msra.mxu0 %v261
    %279 = vmatprep.subr.bf16.mxu0 %v264
    %280 = vmatpush1.bf16.msra.mxu0 %v263
    %281 = vmatprep.subr.bf16.mxu0 %v266
    %282 = vmatpush1.bf16.msra.mxu0 %v265
    %283 = vmatprep.subr.bf16.mxu0 %v268
    %284 = vmatpush1.bf16.msra.mxu0 %v267
    %285 = vmatprep.subr.bf16.mxu0 %v270
    %286 = vmatpush1.bf16.msra.mxu0 %v269
    %287 = vmatprep.subr.bf16.mxu0 %v272
    %288 = vmatpush1.bf16.msra.mxu0 %v271
    %289 = vmatprep.subr.bf16.mxu0 %v274
    %290 = vmatpush1.bf16.msra.mxu0 %v273
    %291 = vmatprep.subr.bf16.mxu0 0
    %292 = vmatpush1.bf16.msra.mxu0 0
    %293 = vmatprep.subr.bf16.mxu0 0
    %294 = vmatpush1.bf16.msra.mxu0 0
    %295 = vmatprep.subr.bf16.mxu0 0
    %296 = vmatpush1.bf16.msra.mxu0 0
    %297 = vmatprep.subr.bf16.mxu0 0
    %298 = vmatpush1.bf16.msra.mxu0 0
    %299 = vmatprep.subr.bf16.mxu0 0
    %300 = vmatpush1.bf16.msra.mxu0 0
    %301 = vmatprep.subr.bf16.mxu0 0
    %302 = vmatpush1.bf16.msra.mxu0 0
    %303 = vmatprep.subr.bf16.mxu0 0
    %304 = vmatpush1.bf16.msra.mxu0 0
    %305 = vmatprep.subr.bf16.mxu0 0
    %306 = vmatpush1.bf16.msra.mxu0 0
    %307 = vmatprep.mubr.bf16.mxu0 0
    %308 = vmatmul.mubr.bf16.gmra.mrb[0].mxu0 %v258
    %v309 = vpop.f32.mrb[0].mxu0
    %v310 = vadd.f32 0.0, %v309
    %v311 = vpop.f32.mrb[0].mxu0
    %v312 = vadd.f32 0.0, %v311
    %v313 = vpop.f32.mrb[0].mxu0
    %v314 = vpop.f32.mrb[0].mxu0
    %315 = vdwg.mxu0
    %v316 = vld [vmem:[%s8] ss:$8 sm:$0x3]
    %s317 = scalar_lea.vmem %s8, 1
    %v318 = vld [vmem:[%s317] ss:$8 sm:$0x3]
    %v319 = vld [vmem:[%s6] sm:$0xff]
    %v320 = vld [vmem:[%s6 + $0x8] sm:$0xff]
    %v321 = vld [vmem:[%s6 + $0x10] sm:$0xff]
    %v322 = vld [vmem:[%s6 + $0x18] sm:$0xff]
    %v323 = vld [vmem:[%s6 + $0x20] sm:$0xff]
    %v324 = vld [vmem:[%s6 + $0x28] sm:$0xff]
    %v325 = vld [vmem:[%s6 + $0x30] sm:$0xff]
    %v326 = vld [vmem:[%s6 + $0x38] sm:$0xff]
    %v327 = vld [vmem:[%s6 + $0x40] sm:$0xff]
    %v328 = vld [vmem:[%s6 + $0x48] sm:$0xff]
    %v329 = vld [vmem:[%s6 + $0x50] sm:$0xff]
    %v330 = vld [vmem:[%s6 + $0x58] sm:$0xff]
    %v331 = vld [vmem:[%s6 + $0x60] sm:$0xff]
    %v332 = vld [vmem:[%s6 + $0x68] sm:$0xff]
    %v333 = vld [vmem:[%s6 + $0x70] sm:$0xff]
    %v334 = vld [vmem:[%s6 + $0x78] sm:$0xff]
    %v335 = vld [vmem:[%s6 + $0x80] sm:$0xff]
    %v336 = vld [vmem:[%s6 + $0x88] sm:$0xff]
    %v337 = vld [vmem:[%s6 + $0x90] sm:$0xff]
    %v338 = vld [vmem:[%s6 + $0x98] sm:$0xff]
    %v339 = vld [vmem:[%s6 + $0xa0] sm:$0xff]
    %v340 = vld [vmem:[%s6 + $0xa8] sm:$0xff]
    %v341 = vld [vmem:[%s6 + $0xb0] sm:$0xff]
    %v342 = vld [vmem:[%s6 + $0xb8] sm:$0xff]
    %v343 = vld [vmem:[%s7] sm:$0xff]
    %v344 = vld [vmem:[%s7 + $0x8] sm:$0xff]
    %v345 = vld [vmem:[%s7 + $0x10] sm:$0xff]
    %v346 = vld [vmem:[%s7 + $0x18] sm:$0xff]
    %v347 = vld [vmem:[%s7 + $0x20] sm:$0xff]
    %v348 = vld [vmem:[%s7 + $0x28] sm:$0xff]
    %v349 = vld [vmem:[%s7 + $0x30] sm:$0xff]
    %v350 = vld [vmem:[%s7 + $0x38] sm:$0xff]
    %v351 = vld [vmem:[%s7 + $0x40] sm:$0xff]
    %v352 = vld [vmem:[%s7 + $0x48] sm:$0xff]
    %v353 = vld [vmem:[%s7 + $0x50] sm:$0xff]
    %v354 = vld [vmem:[%s7 + $0x58] sm:$0xff]
    %v355 = vld [vmem:[%s7 + $0x60] sm:$0xff]
    %v356 = vld [vmem:[%s7 + $0x68] sm:$0xff]
    %v357 = vld [vmem:[%s7 + $0x70] sm:$0xff]
    %v358 = vld [vmem:[%s7 + $0x78] sm:$0xff]
    %vm359 = vcmask 1045504
    %v360 = vsel %vm359, %v310, 0.0
    %v361 = vrot.slane %v360, 4
    %v362 = vadd.f32 %v360, %v361
    %v363 = vrot.slane %v362, 2
    %v364 = vadd.f32 %v362, %v363
    %v365 = vrot.slane %v364, 1
    %v366 = vadd.f32 %v364, %v365
    %vm367 = vcmask 521216
    %v368 = vsel %vm367, %v312, 0.0
    %v369 = vrot.slane %v368, 4
    %v370 = vadd.f32 %v368, %v369
    %v371 = vrot.slane %v370, 2
    %v372 = vadd.f32 %v370, %v371
    %v373 = vrot.slane %v372, 1
    %v374 = vadd.f32 %v372, %v373
    %v375 = vmul.f32 %v310, %v310
    %v376 = vmul.f32 %v312, %v312
    %v377 = vsel %vm359, %v375, 0.0
    %v378 = vrot.slane %v377, 4
    %v379 = vadd.f32 %v377, %v378
    %v380 = vrot.slane %v379, 2
    %v381 = vadd.f32 %v379, %v380
    %v382 = vrot.slane %v381, 1
    %v383 = vadd.f32 %v381, %v382
    %v384 = vsel %vm367, %v376, 0.0
    %v385 = vrot.slane %v384, 4
    %v386 = vadd.f32 %v384, %v385
    %v387 = vrot.slane %v386, 2
    %v388 = vadd.f32 %v386, %v387
    %v389 = vrot.slane %v388, 1
    %v390 = vadd.f32 %v388, %v389
    %vm391 = vcmask 1040384
    %v392 = vsel %vm391, %v366, %v383
    %v393 = vsel %vm391, %v374, %v390
    %vm394 = vcmask 523264
    %v396 = vsel %vm394, %v393, 0
    %398 = vmatprep.subr.mxu0 0.0
    %399 = vmatpush1.msra.mxu0 %v319
    %400 = vmatprep.subr.mxu0 0.0
    %401 = vmatpush1.msra.mxu0 %v320
    %402 = vmatprep.subr.mxu0 0.0
    %403 = vmatpush1.msra.mxu0 %v321
    %404 = vmatprep.subr.mxu0 0.0
    %405 = vmatpush1.msra.mxu0 %v322
    %406 = vmatprep.subr.mxu0 0.0
    %407 = vmatpush1.msra.mxu0 %v323
    %408 = vmatprep.subr.mxu0 0.0
    %409 = vmatpush1.msra.mxu0 %v324
    %410 = vmatprep.subr.mxu0 0.0
    %411 = vmatpush1.msra.mxu0 %v325
    %412 = vmatprep.subr.mxu0 0.0
    %413 = vmatpush1.msra.mxu0 %v326
    %414 = vmatprep.subr.mxu0 0.0
    %415 = vmatpush1.msra.mxu0 %v327
    %416 = vmatprep.subr.mxu0 0.0
    %417 = vmatpush1.msra.mxu0 %v328
    %418 = vmatprep.subr.mxu0 0.0
    %419 = vmatpush1.msra.mxu0 %v329
    %420 = vmatprep.subr.mxu0 0.0
    %421 = vmatpush1.msra.mxu0 %v330
    %422 = vmatprep.subr.mxu0 0.0
    %423 = vmatpush1.msra.mxu0 %v331
    %424 = vmatprep.subr.mxu0 0.0
    %425 = vmatpush1.msra.mxu0 %v332
    %426 = vmatprep.subr.mxu0 0.0
    %427 = vmatpush1.msra.mxu0 %v333
    %428 = vmatprep.subr.mxu0 0.0
    %429 = vmatpush1.msra.mxu0 %v334
    %430 = vmatprep.subr.mxu0 0.0
    %431 = vmatpush1.msra.mxu0 %v335
    %432 = vmatprep.subr.mxu0 0.0
    %433 = vmatpush1.msra.mxu0 %v336
    %434 = vmatprep.subr.mxu0 0.0
    %435 = vmatpush1.msra.mxu0 %v337
    %436 = vmatprep.subr.mxu0 0.0
    %437 = vmatpush1.msra.mxu0 %v338
    %438 = vmatprep.subr.mxu0 0.0
    %439 = vmatpush1.msra.mxu0 %v339
    %440 = vmatprep.subr.mxu0 0.0
    %441 = vmatpush1.msra.mxu0 %v340
    %442 = vmatprep.subr.mxu0 0.0
    %443 = vmatpush1.msra.mxu0 %v341
    %444 = vmatprep.subr.mxu0 0.0
    %445 = vmatpush1.msra.mxu0 %v342
    %446 = vmatprep.subr.mxu0 0.0
    %447 = vmatpush1.msra.mxu0 0.0
    %448 = vmatprep.subr.mxu0 0.0
    %449 = vmatpush1.msra.mxu0 0.0
    %450 = vmatprep.subr.mxu0 0.0
    %451 = vmatpush1.msra.mxu0 0.0
    %452 = vmatprep.subr.mxu0 0.0
    %453 = vmatpush1.msra.mxu0 0.0
    %454 = vmatprep.subr.mxu0 0.0
    %455 = vmatpush1.msra.mxu0 0.0
    %456 = vmatprep.subr.mxu0 0.0
    %457 = vmatpush1.msra.mxu0 0.0
    %458 = vmatprep.subr.mxu0 0.0
    %459 = vmatpush1.msra.mxu0 0.0
    %460 = vmatprep.subr.mxu0 0.0
    %461 = vmatpush1.msra.mxu0 0.0
    %462 = vmatprep.mubr.f32.mxu0 %v396
    %463 = vmatmul.mubr.f32.gmra.mrb[0].mxu0 %v392
    %v464 = vpop.f32.mrb[0].mxu0
    %v465 = vadd.f32 0.0, %v464
    %v466 = vpop.f32.mrb[0].mxu0
    %467 = vdwg.mxu0
    %v469 = vsel %vm394, %v465, 0
    %471 = vmatprep.subr.mxu0 %v344
    %472 = vmatpush1.msra.mxu0 %v343
    %473 = vmatprep.subr.mxu0 %v346
    %474 = vmatpush1.msra.mxu0 %v345
    %475 = vmatprep.subr.mxu0 %v348
    %476 = vmatpush1.msra.mxu0 %v347
    %477 = vmatprep.subr.mxu0 %v350
    %478 = vmatpush1.msra.mxu0 %v349
    %479 = vmatprep.subr.mxu0 %v352
    %480 = vmatpush1.msra.mxu0 %v351
    %481 = vmatprep.subr.mxu0 %v354
    %482 = vmatpush1.msra.mxu0 %v353
    %483 = vmatprep.subr.mxu0 %v356
    %484 = vmatpush1.msra.mxu0 %v355
    %485 = vmatprep.subr.mxu0 %v358
    %486 = vmatpush1.msra.mxu0 %v357
    %487 = vmatprep.subr.mxu0 0.0
    %488 = vmatpush1.msra.mxu0 0.0
    %489 = vmatprep.subr.mxu0 0.0
    %490 = vmatpush1.msra.mxu0 0.0
    %491 = vmatprep.subr.mxu0 0.0
    %492 = vmatpush1.msra.mxu0 0.0
    %493 = vmatprep.subr.mxu0 0.0
    %494 = vmatpush1.msra.mxu0 0.0
    %495 = vmatprep.subr.mxu0 0.0
    %496 = vmatpush1.msra.mxu0 0.0
    %497 = vmatprep.subr.mxu0 0.0
    %498 = vmatpush1.msra.mxu0 0.0
    %499 = vmatprep.subr.mxu0 0.0
    %500 = vmatpush1.msra.mxu0 0.0
    %501 = vmatprep.subr.mxu0 0.0
    %502 = vmatpush1.msra.mxu0 0.0
    %503 = vmatprep.subr.mxu0 0.0
    %504 = vmatpush1.msra.mxu0 0.0
    %505 = vmatprep.subr.mxu0 0.0
    %506 = vmatpush1.msra.mxu0 0.0
    %507 = vmatprep.subr.mxu0 0.0
    %508 = vmatpush1.msra.mxu0 0.0
    %509 = vmatprep.subr.mxu0 0.0
    %510 = vmatpush1.msra.mxu0 0.0
    %511 = vmatprep.subr.mxu0 0.0
    %512 = vmatpush1.msra.mxu0 0.0
    %513 = vmatprep.subr.mxu0 0.0
    %514 = vmatpush1.msra.mxu0 0.0
    %515 = vmatprep.subr.mxu0 0.0
    %516 = vmatpush1.msra.mxu0 0.0
    %517 = vmatprep.subr.mxu0 0.0
    %518 = vmatpush1.msra.mxu0 0.0
    %519 = vmatprep.subr.mxu0 0.0
    %520 = vmatpush1.msra.mxu0 0.0
    %521 = vmatprep.subr.mxu0 0.0
    %522 = vmatpush1.msra.mxu0 0.0
    %523 = vmatprep.subr.mxu0 0.0
    %524 = vmatpush1.msra.mxu0 0.0
    %525 = vmatprep.subr.mxu0 0.0
    %526 = vmatpush1.msra.mxu0 0.0
    %527 = vmatprep.subr.mxu0 0.0
    %528 = vmatpush1.msra.mxu0 0.0
    %529 = vmatprep.subr.mxu0 0.0
    %530 = vmatpush1.msra.mxu0 0.0
    %531 = vmatprep.subr.mxu0 0.0
    %532 = vmatpush1.msra.mxu0 0.0
    %533 = vmatprep.subr.mxu0 0.0
    %534 = vmatpush1.msra.mxu0 0.0
    %535 = vmatprep.mubr.f32.mxu0 0.0
    %536 = vmatmul.mubr.f32.gmra.mrb[0].mxu0 %v469
    %v537 = vpop.f32.mrb[0].mxu0
    %v538 = vadd.f32 0.0, %v537
    %v539 = vpop.f32.mrb[0].mxu0
    %v540 = vadd.f32 0.0, %v539
    %541 = vdwg.mxu0
    %v542 = vmul.f32 %v538, %v538
    %v543 = vmul.f32 %v540, %v540
    %v546 = vrot.slane %v542, 7
    %v547 = vrot.slane %v543, 7
    %v550 = vsub.f32 %v538, %v546
    %v551 = vsub.f32 %v540, %v547
    %v552 = vmax.f32 %v550, 0.0
    %v553 = vmax.f32 %v551, 0.0
    %v554 = vadd.f32 %v552, 1e-05
    %v555 = vadd.f32 %v553, 1e-05
    %v556 = vrsqrt.pop %v554
    %v557 = vrsqrt.pop %v555
    %v560 = vcombine.low %v556, %v557
    %v562 = vunpack.c.l.s4 1966171168
    %v563 = vunpack.c.0.s8 %v562
    %v564 = vlaneseq
    %v565 = vshrl.u32 %v564, 7
    %v566 = vsub.s32 %v563, %v565
    %v567 = vrot.slane %v560, %v566
    %v568 = vcombine.high %v567, %v567
    %v570 = vunpack.c.l.s4 1966171168
    %v571 = vunpack.c.0.s8 %v570
    %v572 = vlaneseq
    %v573 = vshrl.u32 %v572, 7
    %v574 = vsub.s32 %v571, %v573
    %v575 = vrot.slane %v568, %v574
    %v577 = vmul.f32 %v316, %v575
    %v578 = vlaneseq
    %v579 = vshrl.u32 %v578, 7
    %v580 = vsub.s32 0, %v579
    %v581 = vrot.slane %v538, %v580
    %v582 = vlaneseq
    %v583 = vshrl.u32 %v582, 7
    %v584 = vsub.s32 0, %v583
    %v585 = vrot.slane %v540, %v584
    %v586 = vsub.f32 %v310, %v581
    %v587 = vsub.f32 %v312, %v585
    %v589 = vlaneseq
    %v590 = vshrl.u32 %v589, 7
    %v591 = vsub.s32 0, %v590
    %v592 = vrot.slane %v577, %v591
    %v593 = vlaneseq
    %v594 = vshrl.u32 %v593, 7
    %v595 = vsub.s32 1, %v594
    %v596 = vrot.slane %v577, %v595
    %v599 = vmul.f32 %v586, %v592
    %v600 = vmul.f32 %v587, %v596
    %v602 = vlaneseq
    %v603 = vshrl.u32 %v602, 7
    %v604 = vsub.s32 0, %v603
    %v605 = vrot.slane %v318, %v604
    %v606 = vlaneseq
    %v607 = vshrl.u32 %v606, 7
    %v608 = vsub.s32 1, %v607
    %v609 = vrot.slane %v318, %v608
    %v612 = vadd.f32 %v599, %v605
    %v613 = vadd.f32 %v600, %v609
    %v614 = vmax.f32 %v612, 0.0
    %v615 = vmax.f32 %v613, 0.0
    %v616 = vpack.c.bf16 %v614, %v614
    %v617 = vpack.c.bf16 %v615, %v615
    %v618 = vld [vmem:[%s2] sm:$0xff]
    %v619 = vld [vmem:[%s2 + $0x8] sm:$0xff]
    %v620 = vld [vmem:[%s2 + $0x10] sm:$0xff]
    %v621 = vld [vmem:[%s2 + $0x18] sm:$0xff]
    %v622 = vld [vmem:[%s2 + $0x20] sm:$0xff]
    %v623 = vld [vmem:[%s2 + $0x28] sm:$0xff]
    %v624 = vld [vmem:[%s2 + $0x30] sm:$0xff]
    %v625 = vld [vmem:[%s2 + $0x38] sm:$0xff]
    %v626 = vld [vmem:[%s2 + $0x40] sm:$0xff]
    %v627 = vld [vmem:[%s2 + $0x48] sm:$0xff]
    %v628 = vld [vmem:[%s2 + $0x50] sm:$0xff]
    %v629 = vld [vmem:[%s2 + $0x58] sm:$0xff]
    %v630 = vld [vmem:[%s2 + $0x60] sm:$0xff]
    %v631 = vld [vmem:[%s2 + $0x68] sm:$0xff]
    %v632 = vld [vmem:[%s2 + $0x70] sm:$0xff]
    %v633 = vld [vmem:[%s2 + $0x78] sm:$0xff]
    %v634 = vld [vmem:[%s2 + $0x80] sm:$0xff]
    %v635 = vld [vmem:[%s2 + $0x88] sm:$0xff]
    %v636 = vld [vmem:[%s2 + $0x90] sm:$0xff]
    %v637 = vld [vmem:[%s2 + $0x98] sm:$0xff]
    %v638 = vld [vmem:[%s2 + $0xa0] sm:$0xff]
    %v639 = vld [vmem:[%s2 + $0xa8] sm:$0xff]
    %v640 = vld [vmem:[%s2 + $0xb0] sm:$0xff]
    %v641 = vld [vmem:[%s2 + $0xb8] sm:$0xff]
    %v666 = vunpack.c.l.b16 %v618
    %v667 = vunpack.c.h.b16 %v618
    %v668 = vunpack.c.l.b16 %v619
    %v669 = vunpack.c.h.b16 %v619
    %v670 = vunpack.c.l.b16 %v620
    %v671 = vunpack.c.h.b16 %v620
    %v672 = vunpack.c.l.b16 %v621
    %v673 = vunpack.c.h.b16 %v621
    %v674 = vunpack.c.l.b16 %v622
    %v675 = vunpack.c.h.b16 %v622
    %v676 = vunpack.c.l.b16 %v623
    %v677 = vunpack.c.h.b16 %v623
    %v678 = vunpack.c.l.b16 %v624
    %v679 = vunpack.c.h.b16 %v624
    %v680 = vunpack.c.l.b16 %v625
    %v681 = vunpack.c.h.b16 %v625
    %v682 = vunpack.c.l.b16 %v626
    %v683 = vunpack.c.h.b16 %v626
    %v684 = vunpack.c.l.b16 %v627
    %v685 = vunpack.c.h.b16 %v627
    %v686 = vunpack.c.l.b16 %v628
    %v687 = vunpack.c.h.b16 %v628
    %v688 = vunpack.c.l.b16 %v629
    %v689 = vunpack.c.h.b16 %v629
    %v690 = vunpack.c.l.b16 %v630
    %v691 = vunpack.c.h.b16 %v630
    %v692 = vunpack.c.l.b16 %v631
    %v693 = vunpack.c.h.b16 %v631
    %v694 = vunpack.c.l.b16 %v632
    %v695 = vunpack.c.h.b16 %v632
    %v696 = vunpack.c.l.b16 %v633
    %v697 = vunpack.c.h.b16 %v633
    %v698 = vunpack.c.l.b16 %v634
    %v699 = vunpack.c.h.b16 %v634
    %v700 = vunpack.c.l.b16 %v635
    %v701 = vunpack.c.h.b16 %v635
    %v702 = vunpack.c.l.b16 %v636
    %v703 = vunpack.c.h.b16 %v636
    %v704 = vunpack.c.l.b16 %v637
    %v705 = vunpack.c.h.b16 %v637
    %v706 = vunpack.c.l.b16 %v638
    %v707 = vunpack.c.h.b16 %v638
    %v708 = vunpack.c.l.b16 %v639
    %v709 = vunpack.c.h.b16 %v639
    %v710 = vunpack.c.l.b16 %v640
    %v711 = vunpack.c.h.b16 %v640
    %v712 = vunpack.c.l.b16 %v641
    %v713 = vunpack.c.h.b16 %v641
    %v714 = vpack.c.b16 %v668, %v666
    %v715 = vpack.c.b16 %v669, %v667
    %v716 = vpack.c.b16 %v672, %v670
    %v717 = vpack.c.b16 %v673, %v671
    %v718 = vpack.c.b16 %v676, %v674
    %v719 = vpack.c.b16 %v677, %v675
    %v720 = vpack.c.b16 %v680, %v678
    %v721 = vpack.c.b16 %v681, %v679
    %v722 = vpack.c.b16 %v684, %v682
    %v723 = vpack.c.b16 %v685, %v683
    %v724 = vpack.c.b16 %v688, %v686
    %v725 = vpack.c.b16 %v689, %v687
    %v726 = vpack.c.b16 %v692, %v690
    %v727 = vpack.c.b16 %v693, %v691
    %v728 = vpack.c.b16 %v696, %v694
    %v729 = vpack.c.b16 %v697, %v695
    %v730 = vpack.c.b16 %v700, %v698
    %v731 = vpack.c.b16 %v701, %v699
    %v732 = vpack.c.b16 %v704, %v702
    %v733 = vpack.c.b16 %v705, %v703
    %v734 = vpack.c.b16 %v708, %v706
    %v735 = vpack.c.b16 %v709, %v707
    %v736 = vpack.c.b16 %v712, %v710
    %v737 = vpack.c.b16 %v713, %v711
    %v763 = vsel %vm394, %v617, 0
    %765 = vmatprep.subr.bf16.mxu0 %v715
    %766 = vmatpush1.bf16.msra.mxu0 %v714
    %767 = vmatprep.subr.bf16.mxu0 %v717
    %768 = vmatpush1.bf16.msra.mxu0 %v716
    %769 = vmatprep.subr.bf16.mxu0 %v719
    %770 = vmatpush1.bf16.msra.mxu0 %v718
    %771 = vmatprep.subr.bf16.mxu0 %v721
    %772 = vmatpush1.bf16.msra.mxu0 %v720
    %773 = vmatprep.subr.bf16.mxu0 %v723
    %774 = vmatpush1.bf16.msra.mxu0 %v722
    %775 = vmatprep.subr.bf16.mxu0 %v725
    %776 = vmatpush1.bf16.msra.mxu0 %v724
    %777 = vmatprep.subr.bf16.mxu0 %v727
    %778 = vmatpush1.bf16.msra.mxu0 %v726
    %779 = vmatprep.subr.bf16.mxu0 %v729
    %780 = vmatpush1.bf16.msra.mxu0 %v728
    %781 = vmatprep.subr.bf16.mxu0 %v731
    %782 = vmatpush1.bf16.msra.mxu0 %v730
    %783 = vmatprep.subr.bf16.mxu0 %v733
    %784 = vmatpush1.bf16.msra.mxu0 %v732
    %785 = vmatprep.subr.bf16.mxu0 %v735
    %786 = vmatpush1.bf16.msra.mxu0 %v734
    %787 = vmatprep.subr.bf16.mxu0 %v737
    %788 = vmatpush1.bf16.msra.mxu0 %v736
    %789 = vmatprep.subr.bf16.mxu0 0
    %790 = vmatpush1.bf16.msra.mxu0 0
    %791 = vmatprep.subr.bf16.mxu0 0
    %792 = vmatpush1.bf16.msra.mxu0 0
    %793 = vmatprep.subr.bf16.mxu0 0
    %794 = vmatpush1.bf16.msra.mxu0 0
    %795 = vmatprep.subr.bf16.mxu0 0
    %796 = vmatpush1.bf16.msra.mxu0 0
    %797 = vmatprep.mubr.bf16.mxu0 %v763
    %798 = vmatmul.mubr.bf16.gmra.mrb[0].mxu0 %v616
    %v799 = vpop.f32.mrb[0].mxu0
    %v800 = vadd.f32 0.0, %v799
    %v801 = vpop.f32.mrb[0].mxu0
    %v802 = vadd.f32 0.0, %v801
    %v803 = vpop.f32.mrb[0].mxu0
    %v804 = vpop.f32.mrb[0].mxu0
    %805 = vdwg.mxu0
    %v806 = vpack.c.bf16 %v800, %v800
    %v807 = vpack.c.bf16 %v802, %v802
    %808 = vst [vmem:[#allocation2] sm:$0x7] %v806
    %vm809 = vcmask 518144
    %810 = vst.msk [vmem:[#allocation2 + $0x8] sm:$0x7] %vm809, %v807
    %s811 = scalar_lea.vmem %s2, 192
    %v812 = vld [vmem:[%s811] sm:$0xff]
    %v813 = vld [vmem:[%s811 + $0x8] sm:$0xff]
    %v814 = vld [vmem:[%s811 + $0x10] sm:$0xff]
    %v815 = vld [vmem:[%s811 + $0x18] sm:$0xff]
    %v816 = vld [vmem:[%s811 + $0x20] sm:$0xff]
    %v817 = vld [vmem:[%s811 + $0x28] sm:$0xff]
    %v818 = vld [vmem:[%s811 + $0x30] sm:$0xff]
    %v819 = vld [vmem:[%s811 + $0x38] sm:$0xff]
    %v820 = vld [vmem:[%s811 + $0x40] sm:$0xff]
    %v821 = vld [vmem:[%s811 + $0x48] sm:$0xff]
    %v822 = vld [vmem:[%s811 + $0x50] sm:$0xff]
    %v823 = vld [vmem:[%s811 + $0x58] sm:$0xff]
    %v824 = vld [vmem:[%s811 + $0x60] sm:$0xff]
    %v825 = vld [vmem:[%s811 + $0x68] sm:$0xff]
    %v826 = vld [vmem:[%s811 + $0x70] sm:$0xff]
    %v827 = vld [vmem:[%s811 + $0x78] sm:$0xff]
    %v828 = vld [vmem:[%s811 + $0x80] sm:$0xff]
    %v829 = vld [vmem:[%s811 + $0x88] sm:$0xff]
    %v830 = vld [vmem:[%s811 + $0x90] sm:$0xff]
    %v831 = vld [vmem:[%s811 + $0x98] sm:$0xff]
    %v832 = vld [vmem:[%s811 + $0xa0] sm:$0xff]
    %v833 = vld [vmem:[%s811 + $0xa8] sm:$0xff]
    %v834 = vld [vmem:[%s811 + $0xb0] sm:$0xff]
    %v835 = vld [vmem:[%s811 + $0xb8] sm:$0xff]
    %v860 = vunpack.c.l.b16 %v812
    %v861 = vunpack.c.h.b16 %v812
    %v862 = vunpack.c.l.b16 %v813
    %v863 = vunpack.c.h.b16 %v813
    %v864 = vunpack.c.l.b16 %v814
    %v865 = vunpack.c.h.b16 %v814
    %v866 = vunpack.c.l.b16 %v815
    %v867 = vunpack.c.h.b16 %v815
    %v868 = vunpack.c.l.b16 %v816
    %v869 = vunpack.c.h.b16 %v816
    %v870 = vunpack.c.l.b16 %v817
    %v871 = vunpack.c.h.b16 %v817
    %v872 = vunpack.c.l.b16 %v818
    %v873 = vunpack.c.h.b16 %v818
    %v874 = vunpack.c.l.b16 %v819
    %v875 = vunpack.c.h.b16 %v819
    %v876 = vunpack.c.l.b16 %v820
    %v877 = vunpack.c.h.b16 %v820
    %v878 = vunpack.c.l.b16 %v821
    %v879 = vunpack.c.h.b16 %v821
    %v880 = vunpack.c.l.b16 %v822
    %v881 = vunpack.c.h.b16 %v822
    %v882 = vunpack.c.l.b16 %v823
    %v883 = vunpack.c.h.b16 %v823
    %v884 = vunpack.c.l.b16 %v824
    %v885 = vunpack.c.h.b16 %v824
    %v886 = vunpack.c.l.b16 %v825
    %v887 = vunpack.c.h.b16 %v825
    %v888 = vunpack.c.l.b16 %v826
    %v889 = vunpack.c.h.b16 %v826
    %v890 = vunpack.c.l.b16 %v827
    %v891 = vunpack.c.h.b16 %v827
    %v892 = vunpack.c.l.b16 %v828
    %v893 = vunpack.c.h.b16 %v828
    %v894 = vunpack.c.l.b16 %v829
    %v895 = vunpack.c.h.b16 %v829
    %v896 = vunpack.c.l.b16 %v830
    %v897 = vunpack.c.h.b16 %v830
    %v898 = vunpack.c.l.b16 %v831
    %v899 = vunpack.c.h.b16 %v831
    %v900 = vunpack.c.l.b16 %v832
    %v901 = vunpack.c.h.b16 %v832
    %v902 = vunpack.c.l.b16 %v833
    %v903 = vunpack.c.h.b16 %v833
    %v904 = vunpack.c.l.b16 %v834
    %v905 = vunpack.c.h.b16 %v834
    %v906 = vunpack.c.l.b16 %v835
    %v907 = vunpack.c.h.b16 %v835
    %v908 = vpack.c.b16 %v862, %v860
    %v909 = vpack.c.b16 %v863, %v861
    %v910 = vpack.c.b16 %v866, %v864
    %v911 = vpack.c.b16 %v867, %v865
    %v912 = vpack.c.b16 %v870, %v868
    %v913 = vpack.c.b16 %v871, %v869
    %v914 = vpack.c.b16 %v874, %v872
    %v915 = vpack.c.b16 %v875, %v873
    %v916 = vpack.c.b16 %v878, %v876
    %v917 = vpack.c.b16 %v879, %v877
    %v918 = vpack.c.b16 %v882, %v880
    %v919 = vpack.c.b16 %v883, %v881
    %v920 = vpack.c.b16 %v886, %v884
    %v921 = vpack.c.b16 %v887, %v885
    %v922 = vpack.c.b16 %v890, %v888
    %v923 = vpack.c.b16 %v891, %v889
    %v924 = vpack.c.b16 %v894, %v892
    %v925 = vpack.c.b16 %v895, %v893
    %v926 = vpack.c.b16 %v898, %v896
    %v927 = vpack.c.b16 %v899, %v897
    %v928 = vpack.c.b16 %v902, %v900
    %v929 = vpack.c.b16 %v903, %v901
    %v930 = vpack.c.b16 %v906, %v904
    %v931 = vpack.c.b16 %v907, %v905
    %956 = vmatprep.subr.bf16.mxu0 %v909
    %957 = vmatpush1.bf16.msra.mxu0 %v908
    %958 = vmatprep.subr.bf16.mxu0 %v911
    %959 = vmatpush1.bf16.msra.mxu0 %v910
    %960 = vmatprep.subr.bf16.mxu0 %v913
    %961 = vmatpush1.bf16.msra.mxu0 %v912
    %962 = vmatprep.subr.bf16.mxu0 %v915
    %963 = vmatpush1.bf16.msra.mxu0 %v914
    %964 = vmatprep.subr.bf16.mxu0 %v917
    %965 = vmatpush1.bf16.msra.mxu0 %v916
    %966 = vmatprep.subr.bf16.mxu0 %v919
    %967 = vmatpush1.bf16.msra.mxu0 %v918
    %968 = vmatprep.subr.bf16.mxu0 %v921
    %969 = vmatpush1.bf16.msra.mxu0 %v920
    %970 = vmatprep.subr.bf16.mxu0 %v923
    %971 = vmatpush1.bf16.msra.mxu0 %v922
    %972 = vmatprep.subr.bf16.mxu0 %v925
    %973 = vmatpush1.bf16.msra.mxu0 %v924
    %974 = vmatprep.subr.bf16.mxu0 %v927
    %975 = vmatpush1.bf16.msra.mxu0 %v926
    %976 = vmatprep.subr.bf16.mxu0 %v929
    %977 = vmatpush1.bf16.msra.mxu0 %v928
    %978 = vmatprep.subr.bf16.mxu0 %v931
    %979 = vmatpush1.bf16.msra.mxu0 %v930
    %980 = vmatprep.subr.bf16.mxu0 0
    %981 = vmatpush1.bf16.msra.mxu0 0
    %982 = vmatprep.subr.bf16.mxu0 0
    %983 = vmatpush1.bf16.msra.mxu0 0
    %984 = vmatprep.subr.bf16.mxu0 0
    %985 = vmatpush1.bf16.msra.mxu0 0
    %986 = vmatprep.subr.bf16.mxu0 0
    %987 = vmatpush1.bf16.msra.mxu0 0
    %988 = vmatprep.mubr.bf16.mxu0 %v763
    %989 = vmatmul.mubr.bf16.gmra.mrb[0].mxu0 %v616
    %v990 = vpop.f32.mrb[0].mxu0
    %v991 = vadd.f32 0.0, %v990
    %v992 = vpop.f32.mrb[0].mxu0
    %v993 = vadd.f32 0.0, %v992
    %v994 = vpop.f32.mrb[0].mxu0
    %v995 = vpop.f32.mrb[0].mxu0
    %996 = vdwg.mxu0
    %v997 = vpack.c.bf16 %v991, %v991
    %v998 = vpack.c.bf16 %v993, %v993
    %999 = vst [vmem:[#allocation2 + $0x10] sm:$0x7] %v997
    %1000 = vst.msk [vmem:[#allocation2 + $0x18] sm:$0x7] %vm809, %v998
    %s1001 = scalar_lea.vmem %s2, 384
    %v1002 = vld [vmem:[%s1001] sm:$0xff]
    %v1003 = vld [vmem:[%s1001 + $0x8] sm:$0xff]
    %v1004 = vld [vmem:[%s1001 + $0x10] sm:$0xff]
    %v1005 = vld [vmem:[%s1001 + $0x18] sm:$0xff]
    %v1006 = vld [vmem:[%s1001 + $0x20] sm:$0xff]
    %v1007 = vld [vmem:[%s1001 + $0x28] sm:$0xff]
    %v1008 = vld [vmem:[%s1001 + $0x30] sm:$0xff]
    %v1009 = vld [vmem:[%s1001 + $0x38] sm:$0xff]
    %v1010 = vld [vmem:[%s1001 + $0x40] sm:$0xff]
    %v1011 = vld [vmem:[%s1001 + $0x48] sm:$0xff]
    %v1012 = vld [vmem:[%s1001 + $0x50] sm:$0xff]
    %v1013 = vld [vmem:[%s1001 + $0x58] sm:$0xff]
    %v1014 = vld [vmem:[%s1001 + $0x60] sm:$0xff]
    %v1015 = vld [vmem:[%s1001 + $0x68] sm:$0xff]
    %v1016 = vld [vmem:[%s1001 + $0x70] sm:$0xff]
    %v1017 = vld [vmem:[%s1001 + $0x78] sm:$0xff]
    %v1018 = vld [vmem:[%s1001 + $0x80] sm:$0xff]
    %v1019 = vld [vmem:[%s1001 + $0x88] sm:$0xff]
    %v1020 = vld [vmem:[%s1001 + $0x90] sm:$0xff]
    %v1021 = vld [vmem:[%s1001 + $0x98] sm:$0xff]
    %v1022 = vld [vmem:[%s1001 + $0xa0] sm:$0xff]
    %v1023 = vld [vmem:[%s1001 + $0xa8] sm:$0xff]
    %v1024 = vld [vmem:[%s1001 + $0xb0] sm:$0xff]
    %v1025 = vld [vmem:[%s1001 + $0xb8] sm:$0xff]
    %v1050 = vunpack.c.l.b16 %v1002
    %v1051 = vunpack.c.h.b16 %v1002
    %v1052 = vunpack.c.l.b16 %v1003
    %v1053 = vunpack.c.h.b16 %v1003
    %v1054 = vunpack.c.l.b16 %v1004
    %v1055 = vunpack.c.h.b16 %v1004
    %v1056 = vunpack.c.l.b16 %v1005
    %v1057 = vunpack.c.h.b16 %v1005
    %v1058 = vunpack.c.l.b16 %v1006
    %v1059 = vunpack.c.h.b16 %v1006
    %v1060 = vunpack.c.l.b16 %v1007
    %v1061 = vunpack.c.h.b16 %v1007
    %v1062 = vunpack.c.l.b16 %v1008
    %v1063 = vunpack.c.h.b16 %v1008
    %v1064 = vunpack.c.l.b16 %v1009
    %v1065 = vunpack.c.h.b16 %v1009
    %v1066 = vunpack.c.l.b16 %v1010
    %v1067 = vunpack.c.h.b16 %v1010
    %v1068 = vunpack.c.l.b16 %v1011
    %v1069 = vunpack.c.h.b16 %v1011
    %v1070 = vunpack.c.l.b16 %v1012
    %v1071 = vunpack.c.h.b16 %v1012
    %v1072 = vunpack.c.l.b16 %v1013
    %v1073 = vunpack.c.h.b16 %v1013
    %v1074 = vunpack.c.l.b16 %v1014
    %v1075 = vunpack.c.h.b16 %v1014
    %v1076 = vunpack.c.l.b16 %v1015
    %v1077 = vunpack.c.h.b16 %v1015
    %v1078 = vunpack.c.l.b16 %v1016
    %v1079 = vunpack.c.h.b16 %v1016
    %v1080 = vunpack.c.l.b16 %v1017
    %v1081 = vunpack.c.h.b16 %v1017
    %v1082 = vunpack.c.l.b16 %v1018
    %v1083 = vunpack.c.h.b16 %v1018
    %v1084 = vunpack.c.l.b16 %v1019
    %v1085 = vunpack.c.h.b16 %v1019
    %v1086 = vunpack.c.l.b16 %v1020
    %v1087 = vunpack.c.h.b16 %v1020
    %v1088 = vunpack.c.l.b16 %v1021
    %v1089 = vunpack.c.h.b16 %v1021
    %v1090 = vunpack.c.l.b16 %v1022
    %v1091 = vunpack.c.h.b16 %v1022
    %v1092 = vunpack.c.l.b16 %v1023
    %v1093 = vunpack.c.h.b16 %v1023
    %v1094 = vunpack.c.l.b16 %v1024
    %v1095 = vunpack.c.h.b16 %v1024
    %v1096 = vunpack.c.l.b16 %v1025
    %v1097 = vunpack.c.h.b16 %v1025
    %v1098 = vpack.c.b16 %v1052, %v1050
    %v1099 = vpack.c.b16 %v1053, %v1051
    %v1100 = vpack.c.b16 %v1056, %v1054
    %v1101 = vpack.c.b16 %v1057, %v1055
    %v1102 = vpack.c.b16 %v1060, %v1058
    %v1103 = vpack.c.b16 %v1061, %v1059
    %v1104 = vpack.c.b16 %v1064, %v1062
    %v1105 = vpack.c.b16 %v1065, %v1063
    %v1106 = vpack.c.b16 %v1068, %v1066
    %v1107 = vpack.c.b16 %v1069, %v1067
    %v1108 = vpack.c.b16 %v1072, %v1070
    %v1109 = vpack.c.b16 %v1073, %v1071
    %v1110 = vpack.c.b16 %v1076, %v1074
    %v1111 = vpack.c.b16 %v1077, %v1075
    %v1112 = vpack.c.b16 %v1080, %v1078
    %v1113 = vpack.c.b16 %v1081, %v1079
    %v1114 = vpack.c.b16 %v1084, %v1082
    %v1115 = vpack.c.b16 %v1085, %v1083
    %v1116 = vpack.c.b16 %v1088, %v1086
    %v1117 = vpack.c.b16 %v1089, %v1087
    %v1118 = vpack.c.b16 %v1092, %v1090
    %v1119 = vpack.c.b16 %v1093, %v1091
    %v1120 = vpack.c.b16 %v1096, %v1094
    %v1121 = vpack.c.b16 %v1097, %v1095
    %1146 = vmatprep.subr.bf16.mxu0 %v1099
    %1147 = vmatpush1.bf16.msra.mxu0 %v1098
    %1148 = vmatprep.subr.bf16.mxu0 %v1101
    %1149 = vmatpush1.bf16.msra.mxu0 %v1100
    %1150 = vmatprep.subr.bf16.mxu0 %v1103
    %1151 = vmatpush1.bf16.msra.mxu0 %v1102
    %1152 = vmatprep.subr.bf16.mxu0 %v1105
    %1153 = vmatpush1.bf16.msra.mxu0 %v1104
    %1154 = vmatprep.subr.bf16.mxu0 %v1107
    %1155 = vmatpush1.bf16.msra.mxu0 %v1106
    %1156 = vmatprep.subr.bf16.mxu0 %v1109
    %1157 = vmatpush1.bf16.msra.mxu0 %v1108
    %1158 = vmatprep.subr.bf16.mxu0 %v1111
    %1159 = vmatpush1.bf16.msra.mxu0 %v1110
    %1160 = vmatprep.subr.bf16.mxu0 %v1113
    %1161 = vmatpush1.bf16.msra.mxu0 %v1112
    %1162 = vmatprep.subr.bf16.mxu0 %v1115
    %1163 = vmatpush1.bf16.msra.mxu0 %v1114
    %1164 = vmatprep.subr.bf16.mxu0 %v1117
    %1165 = vmatpush1.bf16.msra.mxu0 %v1116
    %1166 = vmatprep.subr.bf16.mxu0 %v1119
    %1167 = vmatpush1.bf16.msra.mxu0 %v1118
    %1168 = vmatprep.subr.bf16.mxu0 %v1121
    %1169 = vmatpush1.bf16.msra.mxu0 %v1120
    %1170 = vmatprep.subr.bf16.mxu0 0
    %1171 = vmatpush1.bf16.msra.mxu0 0
    %1172 = vmatprep.subr.bf16.mxu0 0
    %1173 = vmatpush1.bf16.msra.mxu0 0
    %1174 = vmatprep.subr.bf16.mxu0 0
    %1175 = vmatpush1.bf16.msra.mxu0 0
    %1176 = vmatprep.subr.bf16.mxu0 0
    %1177 = vmatpush1.bf16.msra.mxu0 0
    %1178 = vmatprep.mubr.bf16.mxu0 %v763
    %1179 = vmatmul.mubr.bf16.gmra.mrb[0].mxu0 %v616
    %v1180 = vpop.f32.mrb[0].mxu0
    %v1181 = vadd.f32 0.0, %v1180
    %v1182 = vpop.f32.mrb[0].mxu0
    %v1183 = vadd.f32 0.0, %v1182
    %v1184 = vpop.f32.mrb[0].mxu0
    %v1185 = vpop.f32.mrb[0].mxu0
    %1186 = vdwg.mxu0
    %v1187 = vpack.c.bf16 %v1181, %v1181
    %v1188 = vpack.c.bf16 %v1183, %v1183
    %1189 = vst [vmem:[#allocation2 + $0x20] sm:$0x7] %v1187
    %1190 = vst.msk [vmem:[#allocation2 + $0x28] sm:$0x7] %vm809, %v1188
    %s1191 = scalar_lea.vmem %s2, 576
    %v1192 = vld [vmem:[%s1191] sm:$0xff]
    %v1193 = vld [vmem:[%s1191 + $0x8] sm:$0xff]
    %v1194 = vld [vmem:[%s1191 + $0x10] sm:$0xff]
    %v1195 = vld [vmem:[%s1191 + $0x18] sm:$0xff]
    %v1196 = vld [vmem:[%s1191 + $0x20] sm:$0xff]
    %v1197 = vld [vmem:[%s1191 + $0x28] sm:$0xff]
    %v1198 = vld [vmem:[%s1191 + $0x30] sm:$0xff]
    %v1199 = vld [vmem:[%s1191 + $0x38] sm:$0xff]
    %v1200 = vld [vmem:[%s1191 + $0x40] sm:$0xff]
    %v1201 = vld [vmem:[%s1191 + $0x48] sm:$0xff]
    %v1202 = vld [vmem:[%s1191 + $0x50] sm:$0xff]
    %v1203 = vld [vmem:[%s1191 + $0x58] sm:$0xff]
    %v1204 = vld [vmem:[%s1191 + $0x60] sm:$0xff]
    %v1205 = vld [vmem:[%s1191 + $0x68] sm:$0xff]
    %v1206 = vld [vmem:[%s1191 + $0x70] sm:$0xff]
    %v1207 = vld [vmem:[%s1191 + $0x78] sm:$0xff]
    %v1208 = vld [vmem:[%s1191 + $0x80] sm:$0xff]
    %v1209 = vld [vmem:[%s1191 + $0x88] sm:$0xff]
    %v1210 = vld [vmem:[%s1191 + $0x90] sm:$0xff]
    %v1211 = vld [vmem:[%s1191 + $0x98] sm:$0xff]
    %v1212 = vld [vmem:[%s1191 + $0xa0] sm:$0xff]
    %v1213 = vld [vmem:[%s1191 + $0xa8] sm:$0xff]
    %v1214 = vld [vmem:[%s1191 + $0xb0] sm:$0xff]
    %v1215 = vld [vmem:[%s1191 + $0xb8] sm:$0xff]
    %v1240 = vunpack.c.l.b16 %v1192
    %v1241 = vunpack.c.h.b16 %v1192
    %v1242 = vunpack.c.l.b16 %v1193
    %v1243 = vunpack.c.h.b16 %v1193
    %v1244 = vunpack.c.l.b16 %v1194
    %v1245 = vunpack.c.h.b16 %v1194
    %v1246 = vunpack.c.l.b16 %v1195
    %v1247 = vunpack.c.h.b16 %v1195
    %v1248 = vunpack.c.l.b16 %v1196
    %v1249 = vunpack.c.h.b16 %v1196
    %v1250 = vunpack.c.l.b16 %v1197
    %v1251 = vunpack.c.h.b16 %v1197
    %v1252 = vunpack.c.l.b16 %v1198
    %v1253 = vunpack.c.h.b16 %v1198
    %v1254 = vunpack.c.l.b16 %v1199
    %v1255 = vunpack.c.h.b16 %v1199
    %v1256 = vunpack.c.l.b16 %v1200
    %v1257 = vunpack.c.h.b16 %v1200
    %v1258 = vunpack.c.l.b16 %v1201
    %v1259 = vunpack.c.h.b16 %v1201
    %v1260 = vunpack.c.l.b16 %v1202
    %v1261 = vunpack.c.h.b16 %v1202
    %v1262 = vunpack.c.l.b16 %v1203
    %v1263 = vunpack.c.h.b16 %v1203
    %v1264 = vunpack.c.l.b16 %v1204
    %v1265 = vunpack.c.h.b16 %v1204
    %v1266 = vunpack.c.l.b16 %v1205
    %v1267 = vunpack.c.h.b16 %v1205
    %v1268 = vunpack.c.l.b16 %v1206
    %v1269 = vunpack.c.h.b16 %v1206
    %v1270 = vunpack.c.l.b16 %v1207
    %v1271 = vunpack.c.h.b16 %v1207
    %v1272 = vunpack.c.l.b16 %v1208
    %v1273 = vunpack.c.h.b16 %v1208
    %v1274 = vunpack.c.l.b16 %v1209
    %v1275 = vunpack.c.h.b16 %v1209
    %v1276 = vunpack.c.l.b16 %v1210
    %v1277 = vunpack.c.h.b16 %v1210
    %v1278 = vunpack.c.l.b16 %v1211
    %v1279 = vunpack.c.h.b16 %v1211
    %v1280 = vunpack.c.l.b16 %v1212
    %v1281 = vunpack.c.h.b16 %v1212
    %v1282 = vunpack.c.l.b16 %v1213
    %v1283 = vunpack.c.h.b16 %v1213
    %v1284 = vunpack.c.l.b16 %v1214
    %v1285 = vunpack.c.h.b16 %v1214
    %v1286 = vunpack.c.l.b16 %v1215
    %v1287 = vunpack.c.h.b16 %v1215
    %v1288 = vpack.c.b16 %v1242, %v1240
    %v1289 = vpack.c.b16 %v1243, %v1241
    %v1290 = vpack.c.b16 %v1246, %v1244
    %v1291 = vpack.c.b16 %v1247, %v1245
    %v1292 = vpack.c.b16 %v1250, %v1248
    %v1293 = vpack.c.b16 %v1251, %v1249
    %v1294 = vpack.c.b16 %v1254, %v1252
    %v1295 = vpack.c.b16 %v1255, %v1253
    %v1296 = vpack.c.b16 %v1258, %v1256
    %v1297 = vpack.c.b16 %v1259, %v1257
    %v1298 = vpack.c.b16 %v1262, %v1260
    %v1299 = vpack.c.b16 %v1263, %v1261
    %v1300 = vpack.c.b16 %v1266, %v1264
    %v1301 = vpack.c.b16 %v1267, %v1265
    %v1302 = vpack.c.b16 %v1270, %v1268
    %v1303 = vpack.c.b16 %v1271, %v1269
    %v1304 = vpack.c.b16 %v1274, %v1272
    %v1305 = vpack.c.b16 %v1275, %v1273
    %v1306 = vpack.c.b16 %v1278, %v1276
    %v1307 = vpack.c.b16 %v1279, %v1277
    %v1308 = vpack.c.b16 %v1282, %v1280
    %v1309 = vpack.c.b16 %v1283, %v1281
    %v1310 = vpack.c.b16 %v1286, %v1284
    %v1311 = vpack.c.b16 %v1287, %v1285
    %1336 = vmatprep.subr.bf16.mxu0 %v1289
    %1337 = vmatpush1.bf16.msra.mxu0 %v1288
    %1338 = vmatprep.subr.bf16.mxu0 %v1291
    %1339 = vmatpush1.bf16.msra.mxu0 %v1290
    %1340 = vmatprep.subr.bf16.mxu0 %v1293
    %1341 = vmatpush1.bf16.msra.mxu0 %v1292
    %1342 = vmatprep.subr.bf16.mxu0 %v1295
    %1343 = vmatpush1.bf16.msra.mxu0 %v1294
    %1344 = vmatprep.subr.bf16.mxu0 %v1297
    %1345 = vmatpush1.bf16.msra.mxu0 %v1296
    %1346 = vmatprep.subr.bf16.mxu0 %v1299
    %1347 = vmatpush1.bf16.msra.mxu0 %v1298
    %1348 = vmatprep.subr.bf16.mxu0 %v1301
    %1349 = vmatpush1.bf16.msra.mxu0 %v1300
    %1350 = vmatprep.subr.bf16.mxu0 %v1303
    %1351 = vmatpush1.bf16.msra.mxu0 %v1302
    %1352 = vmatprep.subr.bf16.mxu0 %v1305
    %1353 = vmatpush1.bf16.msra.mxu0 %v1304
    %1354 = vmatprep.subr.bf16.mxu0 %v1307
    %1355 = vmatpush1.bf16.msra.mxu0 %v1306
    %1356 = vmatprep.subr.bf16.mxu0 %v1309
    %1357 = vmatpush1.bf16.msra.mxu0 %v1308
    %1358 = vmatprep.subr.bf16.mxu0 %v1311
    %1359 = vmatpush1.bf16.msra.mxu0 %v1310
    %1360 = vmatprep.subr.bf16.mxu0 0
    %1361 = vmatpush1.bf16.msra.mxu0 0
    %1362 = vmatprep.subr.bf16.mxu0 0
    %1363 = vmatpush1.bf16.msra.mxu0 0
    %1364 = vmatprep.subr.bf16.mxu0 0
    %1365 = vmatpush1.bf16.msra.mxu0 0
    %1366 = vmatprep.subr.bf16.mxu0 0
    %1367 = vmatpush1.bf16.msra.mxu0 0
    %1368 = vmatprep.mubr.bf16.mxu0 %v763
    %1369 = vmatmul.mubr.bf16.gmra.mrb[0].mxu0 %v616
    %v1370 = vpop.f32.mrb[0].mxu0
    %v1371 = vadd.f32 0.0, %v1370
    %v1372 = vpop.f32.mrb[0].mxu0
    %v1373 = vadd.f32 0.0, %v1372
    %v1374 = vpop.f32.mrb[0].mxu0
    %v1375 = vpop.f32.mrb[0].mxu0
    %1376 = vdwg.mxu0
    %v1377 = vpack.c.bf16 %v1371, %v1371
    %v1378 = vpack.c.bf16 %v1373, %v1373
    %1379 = vst [vmem:[#allocation2 + $0x30] sm:$0x7] %v1377
    %1380 = vst.msk [vmem:[#allocation2 + $0x38] sm:$0x7] %vm809, %v1378
    %v1381 = vld [vmem:[%s5 + $0x8] sm:$0xf]
    %v1382 = vld [vmem:[%s5 + $0xc] sm:$0x3]
    %v1383 = vld [vmem:[#allocation2] sm:$0xff]
    %v1384 = vld [vmem:[#allocation2 + $0x8] sm:$0xff]
    %v1385 = vld [vmem:[#allocation2 + $0x10] sm:$0xff]
    %v1386 = vld [vmem:[#allocation2 + $0x18] sm:$0xff]
    %v1387 = vld [vmem:[#allocation2 + $0x20] sm:$0xff]
    %v1388 = vld [vmem:[#allocation2 + $0x28] sm:$0xff]
    %v1389 = vld [vmem:[#allocation2 + $0x30] sm:$0xff]
    %v1390 = vld [vmem:[#allocation2 + $0x38] sm:$0xff]
    %v1391 = vld [vmem:[#allocation2 + $0x40] sm:$0xff]
    %v1392 = vld [vmem:[#allocation2 + $0x48] sm:$0xff]
    %v1393 = vld [vmem:[#allocation2 + $0x50] sm:$0xff]
    %v1394 = vld [vmem:[#allocation2 + $0x58] sm:$0xff]
    %v1395 = vld [vmem:[#allocation2 + $0x60] sm:$0xff]
    %v1396 = vld [vmem:[#allocation2 + $0x68] sm:$0xff]
    %v1397 = vld [vmem:[#allocation2 + $0x70] sm:$0xff]
    %v1398 = vld [vmem:[#allocation2 + $0x78] sm:$0xff]
    %v1401 = vunpack.c.l.b16 %v1381
    %v1402 = vunpack.c.l.b16 %v1382
    %v1403 = vpack.c.b16 %v1402, %v1401
    %1405 = vmatprep.subr.bf16.mxu0 %v1384
    %1406 = vmatpush1.bf16.msra.mxu0 %v1383
    %1407 = vmatprep.subr.bf16.mxu0 %v1386
    %1408 = vmatpush1.bf16.msra.mxu0 %v1385
    %1409 = vmatprep.subr.bf16.mxu0 %v1388
    %1410 = vmatpush1.bf16.msra.mxu0 %v1387
    %1411 = vmatprep.subr.bf16.mxu0 %v1390
    %1412 = vmatpush1.bf16.msra.mxu0 %v1389
    %1413 = vmatprep.subr.bf16.mxu0 %v1392
    %1414 = vmatpush1.bf16.msra.mxu0 %v1391
    %1415 = vmatprep.subr.bf16.mxu0 %v1394
    %1416 = vmatpush1.bf16.msra.mxu0 %v1393
    %1417 = vmatprep.subr.bf16.mxu0 %v1396
    %1418 = vmatpush1.bf16.msra.mxu0 %v1395
    %1419 = vmatprep.subr.bf16.mxu0 %v1398
    %1420 = vmatpush1.bf16.msra.mxu0 %v1397
    %1421 = vmatprep.subr.bf16.mxu0 0
    %1422 = vmatpush1.bf16.msra.mxu0 0
    %1423 = vmatprep.subr.bf16.mxu0 0
    %1424 = vmatpush1.bf16.msra.mxu0 0
    %1425 = vmatprep.subr.bf16.mxu0 0
    %1426 = vmatpush1.bf16.msra.mxu0 0
    %1427 = vmatprep.subr.bf16.mxu0 0
    %1428 = vmatpush1.bf16.msra.mxu0 0
    %1429 = vmatprep.subr.bf16.mxu0 0
    %1430 = vmatpush1.bf16.msra.mxu0 0
    %1431 = vmatprep.subr.bf16.mxu0 0
    %1432 = vmatpush1.bf16.msra.mxu0 0
    %1433 = vmatprep.subr.bf16.mxu0 0
    %1434 = vmatpush1.bf16.msra.mxu0 0
    %1435 = vmatprep.subr.bf16.mxu0 0
    %1436 = vmatpush1.bf16.msra.mxu0 0
    %1437 = vmatprep.mubr.bf16.mxu0 0
    %1438 = vmatmul.mubr.bf16.gmra.mrb[0].mxu0 %v1403
    %v1439 = vpop.f32.mrb[0].mxu0
    %v1440 = vadd.f32 0.0, %v1439
    %v1441 = vpop.f32.mrb[0].mxu0
    %v1442 = vadd.f32 0.0, %v1441
    %v1443 = vpop.f32.mrb[0].mxu0
    %v1444 = vadd.f32 0.0, %v1443
    %v1445 = vpop.f32.mrb[0].mxu0
    %v1446 = vadd.f32 0.0, %v1445
    %1447 = vdwg.mxu0
    %s1448 = scalar_lea.vmem %s8, 2
    %v1449 = vld [vmem:[%s1448] ss:$8 sm:$0x3]
    %s1450 = scalar_lea.vmem %s8, 3
    %v1451 = vld [vmem:[%s1450] ss:$8 sm:$0x3]
    %v1452 = vld [vmem:[%s6 + $0xc0] sm:$0xff]
    %v1453 = vld [vmem:[%s6 + $0xc8] sm:$0xff]
    %v1454 = vld [vmem:[%s6 + $0xd0] sm:$0xff]
    %v1455 = vld [vmem:[%s6 + $0xd8] sm:$0xff]
    %v1456 = vld [vmem:[%s6 + $0xe0] sm:$0xff]
    %v1457 = vld [vmem:[%s6 + $0xe8] sm:$0xff]
    %v1458 = vld [vmem:[%s6 + $0xf0] sm:$0xff]
    %v1459 = vld [vmem:[%s6 + $0xf8] sm:$0xff]
    %v1460 = vld [vmem:[%s6 + $0x100] sm:$0xff]
    %v1461 = vld [vmem:[%s6 + $0x108] sm:$0xff]
    %v1462 = vld [vmem:[%s6 + $0x110] sm:$0xff]
    %v1463 = vld [vmem:[%s6 + $0x118] sm:$0xff]
    %v1464 = vld [vmem:[%s6 + $0x120] sm:$0xff]
    %v1465 = vld [vmem:[%s6 + $0x128] sm:$0xff]
    %v1466 = vld [vmem:[%s6 + $0x130] sm:$0xff]
    %v1467 = vld [vmem:[%s6 + $0x138] sm:$0xff]
    %v1468 = vld [vmem:[%s6 + $0x140] sm:$0xff]
    %v1469 = vld [vmem:[%s6 + $0x148] sm:$0xff]
    %v1470 = vld [vmem:[%s6 + $0x150] sm:$0xff]
    %v1471 = vld [vmem:[%s6 + $0x158] sm:$0xff]
    %v1472 = vld [vmem:[%s6 + $0x160] sm:$0xff]
    %v1473 = vld [vmem:[%s6 + $0x168] sm:$0xff]
    %v1474 = vld [vmem:[%s6 + $0x170] sm:$0xff]
    %v1475 = vld [vmem:[%s6 + $0x178] sm:$0xff]
    %v1476 = vld [vmem:[%s7 + $0x80] sm:$0xff]
    %v1477 = vld [vmem:[%s7 + $0x88] sm:$0xff]
    %v1478 = vld [vmem:[%s7 + $0x90] sm:$0xff]
    %v1479 = vld [vmem:[%s7 + $0x98] sm:$0xff]
    %v1480 = vld [vmem:[%s7 + $0xa0] sm:$0xff]
    %v1481 = vld [vmem:[%s7 + $0xa8] sm:$0xff]
    %v1482 = vld [vmem:[%s7 + $0xb0] sm:$0xff]
    %v1483 = vld [vmem:[%s7 + $0xb8] sm:$0xff]
    %vm1484 = vcmask 1043456
    %v1485 = vsel %vm1484, %v1444, 0.0
    %v1486 = vadd.f32 %v1440, %v1485
    %v1487 = vrot.slane %v1486, 4
    %v1488 = vadd.f32 %v1486, %v1487
    %v1489 = vrot.slane %v1488, 2
    %v1490 = vadd.f32 %v1488, %v1489
    %v1491 = vrot.slane %v1490, 1
    %v1492 = vadd.f32 %v1490, %v1491
    %v1493 = vsel %vm394, %v1442, 0.0
    %vm1494 = vcmask 519168
    %v1495 = vsel %vm1494, %v1446, 0.0
    %v1496 = vadd.f32 %v1493, %v1495
    %v1497 = vrot.slane %v1496, 4
    %v1498 = vadd.f32 %v1496, %v1497
    %v1499 = vrot.slane %v1498, 2
    %v1500 = vadd.f32 %v1498, %v1499
    %v1501 = vrot.slane %v1500, 1
    %v1502 = vadd.f32 %v1500, %v1501
    %v1503 = vmul.f32 %v1440, %v1440
    %v1504 = vmul.f32 %v1442, %v1442
    %v1505 = vmul.f32 %v1444, %v1444
    %v1506 = vmul.f32 %v1446, %v1446
    %v1507 = vsel %vm1484, %v1505, 0.0
    %v1508 = vadd.f32 %v1503, %v1507
    %v1509 = vrot.slane %v1508, 4
    %v1510 = vadd.f32 %v1508, %v1509
    %v1511 = vrot.slane %v1510, 2
    %v1512 = vadd.f32 %v1510, %v1511
    %v1513 = vrot.slane %v1512, 1
    %v1514 = vadd.f32 %v1512, %v1513
    %v1515 = vsel %vm394, %v1504, 0.0
    %v1516 = vsel %vm1494, %v1506, 0.0
    %v1517 = vadd.f32 %v1515, %v1516
    %v1518 = vrot.slane %v1517, 4
    %v1519 = vadd.f32 %v1517, %v1518
    %v1520 = vrot.slane %v1519, 2
    %v1521 = vadd.f32 %v1519, %v1520
    %v1522 = vrot.slane %v1521, 1
    %v1523 = vadd.f32 %v1521, %v1522
    %v1524 = vsel %vm391, %v1492, %v1514
    %v1525 = vsel %vm391, %v1502, %v1523
    %v1527 = vsel %vm394, %v1525, 0
    %1529 = vmatprep.subr.mxu0 0.0
    %1530 = vmatpush1.msra.mxu0 %v1452
    %1531 = vmatprep.subr.mxu0 0.0
    %1532 = vmatpush1.msra.mxu0 %v1453
    %1533 = vmatprep.subr.mxu0 0.0
    %1534 = vmatpush1.msra.mxu0 %v1454
    %1535 = vmatprep.subr.mxu0 0.0
    %1536 = vmatpush1.msra.mxu0 %v1455
    %1537 = vmatprep.subr.mxu0 0.0
    %1538 = vmatpush1.msra.mxu0 %v1456
    %1539 = vmatprep.subr.mxu0 0.0
    %1540 = vmatpush1.msra.mxu0 %v1457
    %1541 = vmatprep.subr.mxu0 0.0
    %1542 = vmatpush1.msra.mxu0 %v1458
    %1543 = vmatprep.subr.mxu0 0.0
    %1544 = vmatpush1.msra.mxu0 %v1459
    %1545 = vmatprep.subr.mxu0 0.0
    %1546 = vmatpush1.msra.mxu0 %v1460
    %1547 = vmatprep.subr.mxu0 0.0
    %1548 = vmatpush1.msra.mxu0 %v1461
    %1549 = vmatprep.subr.mxu0 0.0
    %1550 = vmatpush1.msra.mxu0 %v1462
    %1551 = vmatprep.subr.mxu0 0.0
    %1552 = vmatpush1.msra.mxu0 %v1463
    %1553 = vmatprep.subr.mxu0 0.0
    %1554 = vmatpush1.msra.mxu0 %v1464
    %1555 = vmatprep.subr.mxu0 0.0
    %1556 = vmatpush1.msra.mxu0 %v1465
    %1557 = vmatprep.subr.mxu0 0.0
    %1558 = vmatpush1.msra.mxu0 %v1466
    %1559 = vmatprep.subr.mxu0 0.0
    %1560 = vmatpush1.msra.mxu0 %v1467
    %1561 = vmatprep.subr.mxu0 0.0
    %1562 = vmatpush1.msra.mxu0 %v1468
    %1563 = vmatprep.subr.mxu0 0.0
    %1564 = vmatpush1.msra.mxu0 %v1469
    %1565 = vmatprep.subr.mxu0 0.0
    %1566 = vmatpush1.msra.mxu0 %v1470
    %1567 = vmatprep.subr.mxu0 0.0
    %1568 = vmatpush1.msra.mxu0 %v1471
    %1569 = vmatprep.subr.mxu0 0.0
    %1570 = vmatpush1.msra.mxu0 %v1472
    %1571 = vmatprep.subr.mxu0 0.0
    %1572 = vmatpush1.msra.mxu0 %v1473
    %1573 = vmatprep.subr.mxu0 0.0
    %1574 = vmatpush1.msra.mxu0 %v1474
    %1575 = vmatprep.subr.mxu0 0.0
    %1576 = vmatpush1.msra.mxu0 %v1475
    %1577 = vmatprep.subr.mxu0 0.0
    %1578 = vmatpush1.msra.mxu0 0.0
    %1579 = vmatprep.subr.mxu0 0.0
    %1580 = vmatpush1.msra.mxu0 0.0
    %1581 = vmatprep.subr.mxu0 0.0
    %1582 = vmatpush1.msra.mxu0 0.0
    %1583 = vmatprep.subr.mxu0 0.0
    %1584 = vmatpush1.msra.mxu0 0.0
    %1585 = vmatprep.subr.mxu0 0.0
    %1586 = vmatpush1.msra.mxu0 0.0
    %1587 = vmatprep.subr.mxu0 0.0
    %1588 = vmatpush1.msra.mxu0 0.0
    %1589 = vmatprep.subr.mxu0 0.0
    %1590 = vmatpush1.msra.mxu0 0.0
    %1591 = vmatprep.subr.mxu0 0.0
    %1592 = vmatpush1.msra.mxu0 0.0
    %1593 = vmatprep.mubr.f32.mxu0 %v1527
    %1594 = vmatmul.mubr.f32.gmra.mrb[0].mxu0 %v1524
    %v1595 = vpop.f32.mrb[0].mxu0
    %v1596 = vadd.f32 0.0, %v1595
    %v1597 = vpop.f32.mrb[0].mxu0
    %1598 = vdwg.mxu0
    %vm1599 = vcmask 261120
    %v1601 = vsel %vm1599, %v1596, 0
    %1603 = vmatprep.subr.mxu0 %v1477
    %1604 = vmatpush1.msra.mxu0 %v1476
    %1605 = vmatprep.subr.mxu0 %v1479
    %1606 = vmatpush1.msra.mxu0 %v1478
    %1607 = vmatprep.subr.mxu0 %v1481
    %1608 = vmatpush1.msra.mxu0 %v1480
    %1609 = vmatprep.subr.mxu0 %v1483
    %1610 = vmatpush1.msra.mxu0 %v1482
    %1611 = vmatprep.subr.mxu0 0.0
    %1612 = vmatpush1.msra.mxu0 0.0
    %1613 = vmatprep.subr.mxu0 0.0
    %1614 = vmatpush1.msra.mxu0 0.0
    %1615 = vmatprep.subr.mxu0 0.0
    %1616 = vmatpush1.msra.mxu0 0.0
    %1617 = vmatprep.subr.mxu0 0.0
    %1618 = vmatpush1.msra.mxu0 0.0
    %1619 = vmatprep.subr.mxu0 0.0
    %1620 = vmatpush1.msra.mxu0 0.0
    %1621 = vmatprep.subr.mxu0 0.0
    %1622 = vmatpush1.msra.mxu0 0.0
    %1623 = vmatprep.subr.mxu0 0.0
    %1624 = vmatpush1.msra.mxu0 0.0
    %1625 = vmatprep.subr.mxu0 0.0
    %1626 = vmatpush1.msra.mxu0 0.0
    %1627 = vmatprep.subr.mxu0 0.0
    %1628 = vmatpush1.msra.mxu0 0.0
    %1629 = vmatprep.subr.mxu0 0.0
    %1630 = vmatpush1.msra.mxu0 0.0
    %1631 = vmatprep.subr.mxu0 0.0
    %1632 = vmatpush1.msra.mxu0 0.0
    %1633 = vmatprep.subr.mxu0 0.0
    %1634 = vmatpush1.msra.mxu0 0.0
    %1635 = vmatprep.subr.mxu0 0.0
    %1636 = vmatpush1.msra.mxu0 0.0
    %1637 = vmatprep.subr.mxu0 0.0
    %1638 = vmatpush1.msra.mxu0 0.0
    %1639 = vmatprep.subr.mxu0 0.0
    %1640 = vmatpush1.msra.mxu0 0.0
    %1641 = vmatprep.subr.mxu0 0.0
    %1642 = vmatpush1.msra.mxu0 0.0
    %1643 = vmatprep.subr.mxu0 0.0
    %1644 = vmatpush1.msra.mxu0 0.0
    %1645 = vmatprep.subr.mxu0 0.0
    %1646 = vmatpush1.msra.mxu0 0.0
    %1647 = vmatprep.subr.mxu0 0.0
    %1648 = vmatpush1.msra.mxu0 0.0
    %1649 = vmatprep.subr.mxu0 0.0
    %1650 = vmatpush1.msra.mxu0 0.0
    %1651 = vmatprep.subr.mxu0 0.0
    %1652 = vmatpush1.msra.mxu0 0.0
    %1653 = vmatprep.subr.mxu0 0.0
    %1654 = vmatpush1.msra.mxu0 0.0
    %1655 = vmatprep.subr.mxu0 0.0
    %1656 = vmatpush1.msra.mxu0 0.0
    %1657 = vmatprep.subr.mxu0 0.0
    %1658 = vmatpush1.msra.mxu0 0.0
    %1659 = vmatprep.subr.mxu0 0.0
    %1660 = vmatpush1.msra.mxu0 0.0
    %1661 = vmatprep.subr.mxu0 0.0
    %1662 = vmatpush1.msra.mxu0 0.0
    %1663 = vmatprep.subr.mxu0 0.0
    %1664 = vmatpush1.msra.mxu0 0.0
    %1665 = vmatprep.subr.mxu0 0.0
    %1666 = vmatpush1.msra.mxu0 0.0
    %1667 = vmatprep.mubr.f32.mxu0 0.0
    %1668 = vmatmul.mubr.f32.gmra.mrb[0].mxu0 %v1601
    %v1669 = vpop.f32.mrb[0].mxu0
    %v1670 = vadd.f32 0.0, %v1669
    %v1671 = vpop.f32.mrb[0].mxu0
    %v1672 = vadd.f32 0.0, %v1671
    %1673 = vdwg.mxu0
    %v1674 = vmul.f32 %v1670, %v1670
    %v1675 = vmul.f32 %v1672, %v1672
    %v1678 = vrot.slane %v1674, 7
    %v1679 = vrot.slane %v1675, 7
    %v1682 = vsub.f32 %v1670, %v1678
    %v1683 = vsub.f32 %v1672, %v1679
    %v1684 = vmax.f32 %v1682, 0.0
    %v1685 = vmax.f32 %v1683, 0.0
    %v1686 = vadd.f32 %v1684, 1e-05
    %v1687 = vadd.f32 %v1685, 1e-05
    %v1688 = vrsqrt.pop %v1686
    %v1689 = vrsqrt.pop %v1687
    %v1692 = vcombine.low %v1688, %v1689
    %v1694 = vunpack.c.l.s4 1966171168
    %v1695 = vunpack.c.0.s8 %v1694
    %v1696 = vlaneseq
    %v1697 = vshrl.u32 %v1696, 7
    %v1698 = vsub.s32 %v1695, %v1697
    %v1699 = vrot.slane %v1692, %v1698
    %v1700 = vcombine.high %v1699, %v1699
    %v1702 = vunpack.c.l.s4 1966171168
    %v1703 = vunpack.c.0.s8 %v1702
    %v1704 = vlaneseq
    %v1705 = vshrl.u32 %v1704, 7
    %v1706 = vsub.s32 %v1703, %v1705
    %v1707 = vrot.slane %v1700, %v1706
    %v1709 = vmul.f32 %v1449, %v1707
    %v1710 = vlaneseq
    %v1711 = vshrl.u32 %v1710, 7
    %v1712 = vsub.s32 0, %v1711
    %v1713 = vrot.slane %v1670, %v1712
    %v1714 = vlaneseq
    %v1715 = vshrl.u32 %v1714, 7
    %v1716 = vsub.s32 0, %v1715
    %v1717 = vrot.slane %v1672, %v1716
    %v1718 = vsub.f32 %v1440, %v1713
    %v1719 = vsub.f32 %v1442, %v1717
    %v1720 = vsub.f32 %v1444, %v1713
    %v1721 = vsub.f32 %v1446, %v1717
    %v1723 = vlaneseq
    %v1724 = vshrl.u32 %v1723, 7
    %v1725 = vsub.s32 0, %v1724
    %v1726 = vrot.slane %v1709, %v1725
    %v1727 = vlaneseq
    %v1728 = vshrl.u32 %v1727, 7
    %v1729 = vsub.s32 1, %v1728
    %v1730 = vrot.slane %v1709, %v1729
    %v1733 = vmul.f32 %v1718, %v1726
    %v1734 = vmul.f32 %v1719, %v1730
    %v1735 = vmul.f32 %v1720, %v1726
    %v1736 = vmul.f32 %v1721, %v1730
    %v1738 = vlaneseq
    %v1739 = vshrl.u32 %v1738, 7
    %v1740 = vsub.s32 0, %v1739
    %v1741 = vrot.slane %v1451, %v1740
    %v1742 = vlaneseq
    %v1743 = vshrl.u32 %v1742, 7
    %v1744 = vsub.s32 1, %v1743
    %v1745 = vrot.slane %v1451, %v1744
    %v1748 = vadd.f32 %v1733, %v1741
    %v1749 = vadd.f32 %v1734, %v1745
    %v1750 = vadd.f32 %v1735, %v1741
    %v1751 = vadd.f32 %v1736, %v1745
    %v1752 = vmax.f32 %v1748, 0.0
    %v1753 = vmax.f32 %v1749, 0.0
    %v1754 = vmax.f32 %v1750, 0.0
    %v1755 = vmax.f32 %v1751, 0.0
    %v1756 = vpack.c.bf16 %v1754, %v1752
    %v1757 = vpack.c.bf16 %v1755, %v1753
    %v1758 = vld [vmem:[%s3] sm:$0xff]
    %v1759 = vld [vmem:[%s3 + $0x8] sm:$0xff]
    %v1760 = vld [vmem:[%s3 + $0x10] sm:$0xff]
    %v1761 = vld [vmem:[%s3 + $0x18] sm:$0xff]
    %v1762 = vld [vmem:[%s3 + $0x20] sm:$0xff]
    %v1763 = vld [vmem:[%s3 + $0x28] sm:$0xff]
    %v1764 = vld [vmem:[%s3 + $0x30] sm:$0xff]
    %v1765 = vld [vmem:[%s3 + $0x38] sm:$0xff]
    %v1766 = vld [vmem:[%s3 + $0x40] sm:$0xff]
    %v1767 = vld [vmem:[%s3 + $0x48] sm:$0xff]
    %v1768 = vld [vmem:[%s3 + $0x50] sm:$0xff]
    %v1769 = vld [vmem:[%s3 + $0x58] sm:$0xff]
    %v1770 = vld [vmem:[%s3 + $0x60] sm:$0xff]
    %v1771 = vld [vmem:[%s3 + $0x68] sm:$0xff]
    %v1772 = vld [vmem:[%s3 + $0x70] sm:$0xff]
    %v1773 = vld [vmem:[%s3 + $0x78] sm:$0xff]
    %v1774 = vld [vmem:[%s3 + $0x80] sm:$0xff]
    %v1775 = vld [vmem:[%s3 + $0x88] sm:$0xff]
    %v1776 = vld [vmem:[%s3 + $0x90] sm:$0xff]
    %v1777 = vld [vmem:[%s3 + $0x98] sm:$0xff]
    %v1778 = vld [vmem:[%s3 + $0xa0] sm:$0xff]
    %v1779 = vld [vmem:[%s3 + $0xa8] sm:$0xff]
    %v1780 = vld [vmem:[%s3 + $0xb0] sm:$0xff]
    %v1781 = vld [vmem:[%s3 + $0xb8] sm:$0xff]
    %v1806 = vunpack.c.l.b16 %v1758
    %v1807 = vunpack.c.h.b16 %v1758
    %v1808 = vunpack.c.l.b16 %v1759
    %v1809 = vunpack.c.h.b16 %v1759
    %v1810 = vunpack.c.l.b16 %v1760
    %v1811 = vunpack.c.h.b16 %v1760
    %v1812 = vunpack.c.l.b16 %v1761
    %v1813 = vunpack.c.h.b16 %v1761
    %v1814 = vunpack.c.l.b16 %v1762
    %v1815 = vunpack.c.h.b16 %v1762
    %v1816 = vunpack.c.l.b16 %v1763
    %v1817 = vunpack.c.h.b16 %v1763
    %v1818 = vunpack.c.l.b16 %v1764
    %v1819 = vunpack.c.h.b16 %v1764
    %v1820 = vunpack.c.l.b16 %v1765
    %v1821 = vunpack.c.h.b16 %v1765
    %v1822 = vunpack.c.l.b16 %v1766
    %v1823 = vunpack.c.h.b16 %v1766
    %v1824 = vunpack.c.l.b16 %v1767
    %v1825 = vunpack.c.h.b16 %v1767
    %v1826 = vunpack.c.l.b16 %v1768
    %v1827 = vunpack.c.h.b16 %v1768
    %v1828 = vunpack.c.l.b16 %v1769
    %v1829 = vunpack.c.h.b16 %v1769
    %v1830 = vunpack.c.l.b16 %v1770
    %v1831 = vunpack.c.h.b16 %v1770
    %v1832 = vunpack.c.l.b16 %v1771
    %v1833 = vunpack.c.h.b16 %v1771
    %v1834 = vunpack.c.l.b16 %v1772
    %v1835 = vunpack.c.h.b16 %v1772
    %v1836 = vunpack.c.l.b16 %v1773
    %v1837 = vunpack.c.h.b16 %v1773
    %v1838 = vunpack.c.l.b16 %v1774
    %v1839 = vunpack.c.h.b16 %v1774
    %v1840 = vunpack.c.l.b16 %v1775
    %v1841 = vunpack.c.h.b16 %v1775
    %v1842 = vunpack.c.l.b16 %v1776
    %v1843 = vunpack.c.h.b16 %v1776
    %v1844 = vunpack.c.l.b16 %v1777
    %v1845 = vunpack.c.h.b16 %v1777
    %v1846 = vunpack.c.l.b16 %v1778
    %v1847 = vunpack.c.h.b16 %v1778
    %v1848 = vunpack.c.l.b16 %v1779
    %v1849 = vunpack.c.h.b16 %v1779
    %v1850 = vunpack.c.l.b16 %v1780
    %v1851 = vunpack.c.h.b16 %v1780
    %v1852 = vunpack.c.l.b16 %v1781
    %v1853 = vunpack.c.h.b16 %v1781
    %v1854 = vpack.c.b16 %v1808, %v1806
    %v1855 = vpack.c.b16 %v1809, %v1807
    %v1856 = vpack.c.b16 %v1812, %v1810
    %v1857 = vpack.c.b16 %v1813, %v1811
    %v1858 = vpack.c.b16 %v1816, %v1814
    %v1859 = vpack.c.b16 %v1817, %v1815
    %v1860 = vpack.c.b16 %v1820, %v1818
    %v1861 = vpack.c.b16 %v1821, %v1819
    %v1862 = vpack.c.b16 %v1824, %v1822
    %v1863 = vpack.c.b16 %v1825, %v1823
    %v1864 = vpack.c.b16 %v1828, %v1826
    %v1865 = vpack.c.b16 %v1829, %v1827
    %v1866 = vpack.c.b16 %v1832, %v1830
    %v1867 = vpack.c.b16 %v1833, %v1831
    %v1868 = vpack.c.b16 %v1836, %v1834
    %v1869 = vpack.c.b16 %v1837, %v1835
    %v1870 = vpack.c.b16 %v1840, %v1838
    %v1871 = vpack.c.b16 %v1841, %v1839
    %v1872 = vpack.c.b16 %v1844, %v1842
    %v1873 = vpack.c.b16 %v1845, %v1843
    %v1874 = vpack.c.b16 %v1848, %v1846
    %v1875 = vpack.c.b16 %v1849, %v1847
    %v1876 = vpack.c.b16 %v1852, %v1850
    %v1877 = vpack.c.b16 %v1853, %v1851
    %v1903 = vsel %vm394, %v1757, 0
    %1905 = vmatprep.subr.bf16.mxu0 %v1855
    %1906 = vmatpush1.bf16.msra.mxu0 %v1854
    %1907 = vmatprep.subr.bf16.mxu0 %v1857
    %1908 = vmatpush1.bf16.msra.mxu0 %v1856
    %1909 = vmatprep.subr.bf16.mxu0 %v1859
    %1910 = vmatpush1.bf16.msra.mxu0 %v1858
    %1911 = vmatprep.subr.bf16.mxu0 %v1861
    %1912 = vmatpush1.bf16.msra.mxu0 %v1860
    %1913 = vmatprep.subr.bf16.mxu0 %v1863
    %1914 = vmatpush1.bf16.msra.mxu0 %v1862
    %1915 = vmatprep.subr.bf16.mxu0 %v1865
    %1916 = vmatpush1.bf16.msra.mxu0 %v1864
    %1917 = vmatprep.subr.bf16.mxu0 %v1867
    %1918 = vmatpush1.bf16.msra.mxu0 %v1866
    %1919 = vmatprep.subr.bf16.mxu0 %v1869
    %1920 = vmatpush1.bf16.msra.mxu0 %v1868
    %1921 = vmatprep.subr.bf16.mxu0 %v1871
    %1922 = vmatpush1.bf16.msra.mxu0 %v1870
    %1923 = vmatprep.subr.bf16.mxu0 %v1873
    %1924 = vmatpush1.bf16.msra.mxu0 %v1872
    %1925 = vmatprep.subr.bf16.mxu0 %v1875
    %1926 = vmatpush1.bf16.msra.mxu0 %v1874
    %1927 = vmatprep.subr.bf16.mxu0 %v1877
    %1928 = vmatpush1.bf16.msra.mxu0 %v1876
    %1929 = vmatprep.subr.bf16.mxu0 0
    %1930 = vmatpush1.bf16.msra.mxu0 0
    %1931 = vmatprep.subr.bf16.mxu0 0
    %1932 = vmatpush1.bf16.msra.mxu0 0
    %1933 = vmatprep.subr.bf16.mxu0 0
    %1934 = vmatpush1.bf16.msra.mxu0 0
    %1935 = vmatprep.subr.bf16.mxu0 0
    %1936 = vmatpush1.bf16.msra.mxu0 0
    %1937 = vmatprep.mubr.bf16.mxu0 %v1903
    %1938 = vmatmul.mubr.bf16.gmra.mrb[0].mxu0 %v1756
    %v1939 = vpop.f32.mrb[0].mxu0
    %v1940 = vadd.f32 0.0, %v1939
    %v1941 = vpop.f32.mrb[0].mxu0
    %v1942 = vadd.f32 0.0, %v1941
    %v1943 = vpop.f32.mrb[0].mxu0
    %v1944 = vadd.f32 0.0, %v1943
    %v1945 = vpop.f32.mrb[0].mxu0
    %v1946 = vadd.f32 0.0, %v1945
    %1947 = vdwg.mxu0
    %v1948 = vpack.c.bf16 %v1944, %v1940
    %v1949 = vpack.c.bf16 %v1946, %v1942
    %1950 = vst [vmem:[#allocation2] sm:$0x3f] %v1948
    %vm1951 = vcmask 652288
    %1952 = vst.msk [vmem:[#allocation2 + $0x8] sm:$0x3f] %vm1951, %v1949
    %s1953 = scalar_lea.vmem %s3, 192
    %v1954 = vld [vmem:[%s1953] sm:$0xff]
    %v1955 = vld [vmem:[%s1953 + $0x8] sm:$0xff]
    %v1956 = vld [vmem:[%s1953 + $0x10] sm:$0xff]
    %v1957 = vld [vmem:[%s1953 + $0x18] sm:$0xff]
    %v1958 = vld [vmem:[%s1953 + $0x20] sm:$0xff]
    %v1959 = vld [vmem:[%s1953 + $0x28] sm:$0xff]
    %v1960 = vld [vmem:[%s1953 + $0x30] sm:$0xff]
    %v1961 = vld [vmem:[%s1953 + $0x38] sm:$0xff]
    %v1962 = vld [vmem:[%s1953 + $0x40] sm:$0xff]
    %v1963 = vld [vmem:[%s1953 + $0x48] sm:$0xff]
    %v1964 = vld [vmem:[%s1953 + $0x50] sm:$0xff]
    %v1965 = vld [vmem:[%s1953 + $0x58] sm:$0xff]
    %v1966 = vld [vmem:[%s1953 + $0x60] sm:$0xff]
    %v1967 = vld [vmem:[%s1953 + $0x68] sm:$0xff]
    %v1968 = vld [vmem:[%s1953 + $0x70] sm:$0xff]
    %v1969 = vld [vmem:[%s1953 + $0x78] sm:$0xff]
    %v1970 = vld [vmem:[%s1953 + $0x80] sm:$0xff]
    %v1971 = vld [vmem:[%s1953 + $0x88] sm:$0xff]
    %v1972 = vld [vmem:[%s1953 + $0x90] sm:$0xff]
    %v1973 = vld [vmem:[%s1953 + $0x98] sm:$0xff]
    %v1974 = vld [vmem:[%s1953 + $0xa0] sm:$0xff]
    %v1975 = vld [vmem:[%s1953 + $0xa8] sm:$0xff]
    %v1976 = vld [vmem:[%s1953 + $0xb0] sm:$0xff]
    %v1977 = vld [vmem:[%s1953 + $0xb8] sm:$0xff]
    %v2002 = vunpack.c.l.b16 %v1954
    %v2003 = vunpack.c.h.b16 %v1954
    %v2004 = vunpack.c.l.b16 %v1955
    %v2005 = vunpack.c.h.b16 %v1955
    %v2006 = vunpack.c.l.b16 %v1956
    %v2007 = vunpack.c.h.b16 %v1956
    %v2008 = vunpack.c.l.b16 %v1957
    %v2009 = vunpack.c.h.b16 %v1957
    %v2010 = vunpack.c.l.b16 %v1958
    %v2011 = vunpack.c.h.b16 %v1958
    %v2012 = vunpack.c.l.b16 %v1959
    %v2013 = vunpack.c.h.b16 %v1959
    %v2014 = vunpack.c.l.b16 %v1960
    %v2015 = vunpack.c.h.b16 %v1960
    %v2016 = vunpack.c.l.b16 %v1961
    %v2017 = vunpack.c.h.b16 %v1961
    %v2018 = vunpack.c.l.b16 %v1962
    %v2019 = vunpack.c.h.b16 %v1962
    %v2020 = vunpack.c.l.b16 %v1963
    %v2021 = vunpack.c.h.b16 %v1963
    %v2022 = vunpack.c.l.b16 %v1964
    %v2023 = vunpack.c.h.b16 %v1964
    %v2024 = vunpack.c.l.b16 %v1965
    %v2025 = vunpack.c.h.b16 %v1965
    %v2026 = vunpack.c.l.b16 %v1966
    %v2027 = vunpack.c.h.b16 %v1966
    %v2028 = vunpack.c.l.b16 %v1967
    %v2029 = vunpack.c.h.b16 %v1967
    %v2030 = vunpack.c.l.b16 %v1968
    %v2031 = vunpack.c.h.b16 %v1968
    %v2032 = vunpack.c.l.b16 %v1969
    %v2033 = vunpack.c.h.b16 %v1969
    %v2034 = vunpack.c.l.b16 %v1970
    %v2035 = vunpack.c.h.b16 %v1970
    %v2036 = vunpack.c.l.b16 %v1971
    %v2037 = vunpack.c.h.b16 %v1971
    %v2038 = vunpack.c.l.b16 %v1972
    %v2039 = vunpack.c.h.b16 %v1972
    %v2040 = vunpack.c.l.b16 %v1973
    %v2041 = vunpack.c.h.b16 %v1973
    %v2042 = vunpack.c.l.b16 %v1974
    %v2043 = vunpack.c.h.b16 %v1974
    %v2044 = vunpack.c.l.b16 %v1975
    %v2045 = vunpack.c.h.b16 %v1975
    %v2046 = vunpack.c.l.b16 %v1976
    %v2047 = vunpack.c.h.b16 %v1976
    %v2048 = vunpack.c.l.b16 %v1977
    %v2049 = vunpack.c.h.b16 %v1977
    %v2050 = vpack.c.b16 %v2004, %v2002
    %v2051 = vpack.c.b16 %v2005, %v2003
    %v2052 = vpack.c.b16 %v2008, %v2006
    %v2053 = vpack.c.b16 %v2009, %v2007
    %v2054 = vpack.c.b16 %v2012, %v2010
    %v2055 = vpack.c.b16 %v2013, %v2011
    %v2056 = vpack.c.b16 %v2016, %v2014
    %v2057 = vpack.c.b16 %v2017, %v2015
    %v2058 = vpack.c.b16 %v2020, %v2018
    %v2059 = vpack.c.b16 %v2021, %v2019
    %v2060 = vpack.c.b16 %v2024, %v2022
    %v2061 = vpack.c.b16 %v2025, %v2023
    %v2062 = vpack.c.b16 %v2028, %v2026
    %v2063 = vpack.c.b16 %v2029, %v2027
    %v2064 = vpack.c.b16 %v2032, %v2030
    %v2065 = vpack.c.b16 %v2033, %v2031
    %v2066 = vpack.c.b16 %v2036, %v2034
    %v2067 = vpack.c.b16 %v2037, %v2035
    %v2068 = vpack.c.b16 %v2040, %v2038
    %v2069 = vpack.c.b16 %v2041, %v2039
    %v2070 = vpack.c.b16 %v2044, %v2042
    %v2071 = vpack.c.b16 %v2045, %v2043
    %v2072 = vpack.c.b16 %v2048, %v2046
    %v2073 = vpack.c.b16 %v2049, %v2047
    %2098 = vmatprep.subr.bf16.mxu0 %v2051
    %2099 = vmatpush1.bf16.msra.mxu0 %v2050
    %2100 = vmatprep.subr.bf16.mxu0 %v2053
    %2101 = vmatpush1.bf16.msra.mxu0 %v2052
    %2102 = vmatprep.subr.bf16.mxu0 %v2055
    %2103 = vmatpush1.bf16.msra.mxu0 %v2054
    %2104 = vmatprep.subr.bf16.mxu0 %v2057
    %2105 = vmatpush1.bf16.msra.mxu0 %v2056
    %2106 = vmatprep.subr.bf16.mxu0 %v2059
    %2107 = vmatpush1.bf16.msra.mxu0 %v2058
    %2108 = vmatprep.subr.bf16.mxu0 %v2061
    %2109 = vmatpush1.bf16.msra.mxu0 %v2060
    %2110 = vmatprep.subr.bf16.mxu0 %v2063
    %2111 = vmatpush1.bf16.msra.mxu0 %v2062
    %2112 = vmatprep.subr.bf16.mxu0 %v2065
    %2113 = vmatpush1.bf16.msra.mxu0 %v2064
    %2114 = vmatprep.subr.bf16.mxu0 %v2067
    %2115 = vmatpush1.bf16.msra.mxu0 %v2066
    %2116 = vmatprep.subr.bf16.mxu0 %v2069
    %2117 = vmatpush1.bf16.msra.mxu0 %v2068
    %2118 = vmatprep.subr.bf16.mxu0 %v2071
    %2119 = vmatpush1.bf16.msra.mxu0 %v2070
    %2120 = vmatprep.subr.bf16.mxu0 %v2073
    %2121 = vmatpush1.bf16.msra.mxu0 %v2072
    %2122 = vmatprep.subr.bf16.mxu0 0
    %2123 = vmatpush1.bf16.msra.mxu0 0
    %2124 = vmatprep.subr.bf16.mxu0 0
    %2125 = vmatpush1.bf16.msra.mxu0 0
    %2126 = vmatprep.subr.bf16.mxu0 0
    %2127 = vmatpush1.bf16.msra.mxu0 0
    %2128 = vmatprep.subr.bf16.mxu0 0
    %2129 = vmatpush1.bf16.msra.mxu0 0
    %2130 = vmatprep.mubr.bf16.mxu0 %v1903
    %2131 = vmatmul.mubr.bf16.gmra.mrb[0].mxu0 %v1756
    %v2132 = vpop.f32.mrb[0].mxu0
    %v2133 = vadd.f32 0.0, %v2132
    %v2134 = vpop.f32.mrb[0].mxu0
    %v2135 = vadd.f32 0.0, %v2134
    %v2136 = vpop.f32.mrb[0].mxu0
    %v2137 = vadd.f32 0.0, %v2136
    %v2138 = vpop.f32.mrb[0].mxu0
    %v2139 = vadd.f32 0.0, %v2138
    %2140 = vdwg.mxu0
    %v2141 = vpack.c.bf16 %v2137, %v2133
    %v2142 = vpack.c.bf16 %v2139, %v2135
    %2143 = vst [vmem:[#allocation2 + $0x10] sm:$0x3f] %v2141
    %2144 = vst.msk [vmem:[#allocation2 + $0x18] sm:$0x3f] %vm1951, %v2142
    %s2145 = scalar_lea.vmem %s3, 384
    %v2146 = vld [vmem:[%s2145] sm:$0xff]
    %v2147 = vld [vmem:[%s2145 + $0x8] sm:$0xff]
    %v2148 = vld [vmem:[%s2145 + $0x10] sm:$0xff]
    %v2149 = vld [vmem:[%s2145 + $0x18] sm:$0xff]
    %v2150 = vld [vmem:[%s2145 + $0x20] sm:$0xff]
    %v2151 = vld [vmem:[%s2145 + $0x28] sm:$0xff]
    %v2152 = vld [vmem:[%s2145 + $0x30] sm:$0xff]
    %v2153 = vld [vmem:[%s2145 + $0x38] sm:$0xff]
    %v2154 = vld [vmem:[%s2145 + $0x40] sm:$0xff]
    %v2155 = vld [vmem:[%s2145 + $0x48] sm:$0xff]
    %v2156 = vld [vmem:[%s2145 + $0x50] sm:$0xff]
    %v2157 = vld [vmem:[%s2145 + $0x58] sm:$0xff]
    %v2158 = vld [vmem:[%s2145 + $0x60] sm:$0xff]
    %v2159 = vld [vmem:[%s2145 + $0x68] sm:$0xff]
    %v2160 = vld [vmem:[%s2145 + $0x70] sm:$0xff]
    %v2161 = vld [vmem:[%s2145 + $0x78] sm:$0xff]
    %v2162 = vld [vmem:[%s2145 + $0x80] sm:$0xff]
    %v2163 = vld [vmem:[%s2145 + $0x88] sm:$0xff]
    %v2164 = vld [vmem:[%s2145 + $0x90] sm:$0xff]
    %v2165 = vld [vmem:[%s2145 + $0x98] sm:$0xff]
    %v2166 = vld [vmem:[%s2145 + $0xa0] sm:$0xff]
    %v2167 = vld [vmem:[%s2145 + $0xa8] sm:$0xff]
    %v2168 = vld [vmem:[%s2145 + $0xb0] sm:$0xff]
    %v2169 = vld [vmem:[%s2145 + $0xb8] sm:$0xff]
    %v2194 = vunpack.c.l.b16 %v2146
    %v2195 = vunpack.c.h.b16 %v2146
    %v2196 = vunpack.c.l.b16 %v2147
    %v2197 = vunpack.c.h.b16 %v2147
    %v2198 = vunpack.c.l.b16 %v2148
    %v2199 = vunpack.c.h.b16 %v2148
    %v2200 = vunpack.c.l.b16 %v2149
    %v2201 = vunpack.c.h.b16 %v2149
    %v2202 = vunpack.c.l.b16 %v2150
    %v2203 = vunpack.c.h.b16 %v2150
    %v2204 = vunpack.c.l.b16 %v2151
    %v2205 = vunpack.c.h.b16 %v2151
    %v2206 = vunpack.c.l.b16 %v2152
    %v2207 = vunpack.c.h.b16 %v2152
    %v2208 = vunpack.c.l.b16 %v2153
    %v2209 = vunpack.c.h.b16 %v2153
    %v2210 = vunpack.c.l.b16 %v2154
    %v2211 = vunpack.c.h.b16 %v2154
    %v2212 = vunpack.c.l.b16 %v2155
    %v2213 = vunpack.c.h.b16 %v2155
    %v2214 = vunpack.c.l.b16 %v2156
    %v2215 = vunpack.c.h.b16 %v2156
    %v2216 = vunpack.c.l.b16 %v2157
    %v2217 = vunpack.c.h.b16 %v2157
    %v2218 = vunpack.c.l.b16 %v2158
    %v2219 = vunpack.c.h.b16 %v2158
    %v2220 = vunpack.c.l.b16 %v2159
    %v2221 = vunpack.c.h.b16 %v2159
    %v2222 = vunpack.c.l.b16 %v2160
    %v2223 = vunpack.c.h.b16 %v2160
    %v2224 = vunpack.c.l.b16 %v2161
    %v2225 = vunpack.c.h.b16 %v2161
    %v2226 = vunpack.c.l.b16 %v2162
    %v2227 = vunpack.c.h.b16 %v2162
    %v2228 = vunpack.c.l.b16 %v2163
    %v2229 = vunpack.c.h.b16 %v2163
    %v2230 = vunpack.c.l.b16 %v2164
    %v2231 = vunpack.c.h.b16 %v2164
    %v2232 = vunpack.c.l.b16 %v2165
    %v2233 = vunpack.c.h.b16 %v2165
    %v2234 = vunpack.c.l.b16 %v2166
    %v2235 = vunpack.c.h.b16 %v2166
    %v2236 = vunpack.c.l.b16 %v2167
    %v2237 = vunpack.c.h.b16 %v2167
    %v2238 = vunpack.c.l.b16 %v2168
    %v2239 = vunpack.c.h.b16 %v2168
    %v2240 = vunpack.c.l.b16 %v2169
    %v2241 = vunpack.c.h.b16 %v2169
    %v2242 = vpack.c.b16 %v2196, %v2194
    %v2243 = vpack.c.b16 %v2197, %v2195
    %v2244 = vpack.c.b16 %v2200, %v2198
    %v2245 = vpack.c.b16 %v2201, %v2199
    %v2246 = vpack.c.b16 %v2204, %v2202
    %v2247 = vpack.c.b16 %v2205, %v2203
    %v2248 = vpack.c.b16 %v2208, %v2206
    %v2249 = vpack.c.b16 %v2209, %v2207
    %v2250 = vpack.c.b16 %v2212, %v2210
    %v2251 = vpack.c.b16 %v2213, %v2211
    %v2252 = vpack.c.b16 %v2216, %v2214
    %v2253 = vpack.c.b16 %v2217, %v2215
    %v2254 = vpack.c.b16 %v2220, %v2218
    %v2255 = vpack.c.b16 %v2221, %v2219
    %v2256 = vpack.c.b16 %v2224, %v2222
    %v2257 = vpack.c.b16 %v2225, %v2223
    %v2258 = vpack.c.b16 %v2228, %v2226
    %v2259 = vpack.c.b16 %v2229, %v2227
    %v2260 = vpack.c.b16 %v2232, %v2230
    %v2261 = vpack.c.b16 %v2233, %v2231
    %v2262 = vpack.c.b16 %v2236, %v2234
    %v2263 = vpack.c.b16 %v2237, %v2235
    %v2264 = vpack.c.b16 %v2240, %v2238
    %v2265 = vpack.c.b16 %v2241, %v2239
    %2290 = vmatprep.subr.bf16.mxu0 %v2243
    %2291 = vmatpush1.bf16.msra.mxu0 %v2242
    %2292 = vmatprep.subr.bf16.mxu0 %v2245
    %2293 = vmatpush1.bf16.msra.mxu0 %v2244
    %2294 = vmatprep.subr.bf16.mxu0 %v2247
    %2295 = vmatpush1.bf16.msra.mxu0 %v2246
    %2296 = vmatprep.subr.bf16.mxu0 %v2249
    %2297 = vmatpush1.bf16.msra.mxu0 %v2248
    %2298 = vmatprep.subr.bf16.mxu0 %v2251
    %2299 = vmatpush1.bf16.msra.mxu0 %v2250
    %2300 = vmatprep.subr.bf16.mxu0 %v2253
    %2301 = vmatpush1.bf16.msra.mxu0 %v2252
    %2302 = vmatprep.subr.bf16.mxu0 %v2255
    %2303 = vmatpush1.bf16.msra.mxu0 %v2254
    %2304 = vmatprep.subr.bf16.mxu0 %v2257
    %2305 = vmatpush1.bf16.msra.mxu0 %v2256
    %2306 = vmatprep.subr.bf16.mxu0 %v2259
    %2307 = vmatpush1.bf16.msra.mxu0 %v2258
    %2308 = vmatprep.subr.bf16.mxu0 %v2261
    %2309 = vmatpush1.bf16.msra.mxu0 %v2260
    %2310 = vmatprep.subr.bf16.mxu0 %v2263
    %2311 = vmatpush1.bf16.msra.mxu0 %v2262
    %2312 = vmatprep.subr.bf16.mxu0 %v2265
    %2313 = vmatpush1.bf16.msra.mxu0 %v2264
    %2314 = vmatprep.subr.bf16.mxu0 0
    %2315 = vmatpush1.bf16.msra.mxu0 0
    %2316 = vmatprep.subr.bf16.mxu0 0
    %2317 = vmatpush1.bf16.msra.mxu0 0
    %2318 = vmatprep.subr.bf16.mxu0 0
    %2319 = vmatpush1.bf16.msra.mxu0 0
    %2320 = vmatprep.subr.bf16.mxu0 0
    %2321 = vmatpush1.bf16.msra.mxu0 0
    %2322 = vmatprep.mubr.bf16.mxu0 %v1903
    %2323 = vmatmul.mubr.bf16.gmra.mrb[0].mxu0 %v1756
    %v2324 = vpop.f32.mrb[0].mxu0
    %v2325 = vadd.f32 0.0, %v2324
    %v2326 = vpop.f32.mrb[0].mxu0
    %v2327 = vadd.f32 0.0, %v2326
    %v2328 = vpop.f32.mrb[0].mxu0
    %v2329 = vadd.f32 0.0, %v2328
    %v2330 = vpop.f32.mrb[0].mxu0
    %v2331 = vadd.f32 0.0, %v2330
    %2332 = vdwg.mxu0
    %v2333 = vpack.c.bf16 %v2329, %v2325
    %v2334 = vpack.c.bf16 %v2331, %v2327
    %2335 = vst [vmem:[#allocation2 + $0x20] sm:$0x3f] %v2333
    %2336 = vst.msk [vmem:[#allocation2 + $0x28] sm:$0x3f] %vm1951, %v2334
    %v2337 = vld [vmem:[%s5 + $0x10] sm:$0xf]
    %v2338 = vld [vmem:[%s5 + $0x14] sm:$0xf]
    %v2339 = vld [vmem:[%s5 + $0x18] sm:$0xf]
    %v2340 = vld [vmem:[%s5 + $0x1c] sm:$0x1]
    %v2341 = vld [vmem:[#allocation2] sm:$0xff]
    %v2342 = vld [vmem:[#allocation2 + $0x8] sm:$0xff]
    %v2343 = vld [vmem:[#allocation2 + $0x10] sm:$0xff]
    %v2344 = vld [vmem:[#allocation2 + $0x18] sm:$0xff]
    %v2345 = vld [vmem:[#allocation2 + $0x20] sm:$0xff]
    %v2346 = vld [vmem:[#allocation2 + $0x28] sm:$0xff]
    %v2347 = vld [vmem:[#allocation2 + $0x30] sm:$0xff]
    %v2348 = vld [vmem:[#allocation2 + $0x38] sm:$0xff]
    %v2349 = vld [vmem:[#allocation2 + $0x40] sm:$0xff]
    %v2350 = vld [vmem:[#allocation2 + $0x48] sm:$0xff]
    %v2351 = vld [vmem:[#allocation2 + $0x50] sm:$0xff]
    %v2352 = vld [vmem:[#allocation2 + $0x58] sm:$0xff]
    %v2353 = vld [vmem:[#allocation2 + $0x60] sm:$0xff]
    %v2354 = vld [vmem:[#allocation2 + $0x68] sm:$0xff]
    %v2355 = vld [vmem:[#allocation2 + $0x70] sm:$0xff]
    %v2356 = vld [vmem:[#allocation2 + $0x78] sm:$0xff]
    %v2361 = vunpack.c.l.b16 %v2337
    %v2362 = vunpack.c.l.b16 %v2338
    %v2363 = vunpack.c.l.b16 %v2339
    %v2364 = vunpack.c.l.b16 %v2340
    %v2365 = vpack.c.b16 %v2362, %v2361
    %v2366 = vpack.c.b16 %v2364, %v2363
    %2369 = vmatprep.subr.bf16.mxu0 %v2342
    %2370 = vmatpush1.bf16.msra.mxu0 %v2341
    %2371 = vmatprep.subr.bf16.mxu0 %v2344
    %2372 = vmatpush1.bf16.msra.mxu0 %v2343
    %2373 = vmatprep.subr.bf16.mxu0 %v2346
    %2374 = vmatpush1.bf16.msra.mxu0 %v2345
    %2375 = vmatprep.subr.bf16.mxu0 %v2348
    %2376 = vmatpush1.bf16.msra.mxu0 %v2347
    %2377 = vmatprep.subr.bf16.mxu0 %v2350
    %2378 = vmatpush1.bf16.msra.mxu0 %v2349
    %2379 = vmatprep.subr.bf16.mxu0 %v2352
    %2380 = vmatpush1.bf16.msra.mxu0 %v2351
    %2381 = vmatprep.subr.bf16.mxu0 %v2354
    %2382 = vmatpush1.bf16.msra.mxu0 %v2353
    %2383 = vmatprep.subr.bf16.mxu0 %v2356
    %2384 = vmatpush1.bf16.msra.mxu0 %v2355
    %2385 = vmatprep.subr.bf16.mxu0 0
    %2386 = vmatpush1.bf16.msra.mxu0 0
    %2387 = vmatprep.subr.bf16.mxu0 0
    %2388 = vmatpush1.bf16.msra.mxu0 0
    %2389 = vmatprep.subr.bf16.mxu0 0
    %2390 = vmatpush1.bf16.msra.mxu0 0
    %2391 = vmatprep.subr.bf16.mxu0 0
    %2392 = vmatpush1.bf16.msra.mxu0 0
    %2393 = vmatprep.subr.bf16.mxu0 0
    %2394 = vmatpush1.bf16.msra.mxu0 0
    %2395 = vmatprep.subr.bf16.mxu0 0
    %2396 = vmatpush1.bf16.msra.mxu0 0
    %2397 = vmatprep.subr.bf16.mxu0 0
    %2398 = vmatpush1.bf16.msra.mxu0 0
    %2399 = vmatprep.subr.bf16.mxu0 0
    %2400 = vmatpush1.bf16.msra.mxu0 0
    %2401 = vmatprep.mubr.bf16.mxu0 0
    %2402 = vmatmul.mubr.bf16.gmra.mrb[0].mxu0 %v2365
    %v2403 = vpop.f32.mrb[0].mxu0
    %v2404 = vadd.f32 0.0, %v2403
    %v2405 = vpop.f32.mrb[0].mxu0
    %v2406 = vadd.f32 0.0, %v2405
    %v2407 = vpop.f32.mrb[0].mxu0
    %v2408 = vadd.f32 0.0, %v2407
    %v2409 = vpop.f32.mrb[0].mxu0
    %v2410 = vadd.f32 0.0, %v2409
    %2411 = vmatprep.mubr.bf16.mxu0 0
    %2412 = vmatmul.mubr.bf16.gmra.mrb[0].mxu0 %v2366
    %v2413 = vpop.f32.mrb[0].mxu0
    %v2414 = vadd.f32 0.0, %v2413
    %v2415 = vpop.f32.mrb[0].mxu0
    %v2416 = vadd.f32 0.0, %v2415
    %v2417 = vpop.f32.mrb[0].mxu0
    %v2418 = vadd.f32 0.0, %v2417
    %v2419 = vpop.f32.mrb[0].mxu0
    %v2420 = vadd.f32 0.0, %v2419
    %2421 = vdwg.mxu0
    %s2422 = scalar_lea.vmem %s8, 4
    %v2423 = vld [vmem:[%s2422] ss:$8 sm:$0x3]
    %s2424 = scalar_lea.vmem %s8, 5
    %v2425 = vld [vmem:[%s2424] ss:$8 sm:$0x3]
    %v2426 = vld [vmem:[%s6 + $0x180] sm:$0xff]
    %v2427 = vld [vmem:[%s6 + $0x188] sm:$0xff]
    %v2428 = vld [vmem:[%s6 + $0x190] sm:$0xff]
    %v2429 = vld [vmem:[%s6 + $0x198] sm:$0xff]
    %v2430 = vld [vmem:[%s6 + $0x1a0] sm:$0xff]
    %v2431 = vld [vmem:[%s6 + $0x1a8] sm:$0xff]
    %v2432 = vld [vmem:[%s6 + $0x1b0] sm:$0xff]
    %v2433 = vld [vmem:[%s6 + $0x1b8] sm:$0xff]
    %v2434 = vld [vmem:[%s6 + $0x1c0] sm:$0xff]
    %v2435 = vld [vmem:[%s6 + $0x1c8] sm:$0xff]
    %v2436 = vld [vmem:[%s6 + $0x1d0] sm:$0xff]
    %v2437 = vld [vmem:[%s6 + $0x1d8] sm:$0xff]
    %v2438 = vld [vmem:[%s6 + $0x1e0] sm:$0xff]
    %v2439 = vld [vmem:[%s6 + $0x1e8] sm:$0xff]
    %v2440 = vld [vmem:[%s6 + $0x1f0] sm:$0xff]
    %v2441 = vld [vmem:[%s6 + $0x1f8] sm:$0xff]
    %v2442 = vld [vmem:[%s6 + $0x200] sm:$0xff]
    %v2443 = vld [vmem:[%s6 + $0x208] sm:$0xff]
    %v2444 = vld [vmem:[%s6 + $0x210] sm:$0xff]
    %v2445 = vld [vmem:[%s6 + $0x218] sm:$0xff]
    %v2446 = vld [vmem:[%s6 + $0x220] sm:$0xff]
    %v2447 = vld [vmem:[%s6 + $0x228] sm:$0xff]
    %v2448 = vld [vmem:[%s6 + $0x230] sm:$0xff]
    %v2449 = vld [vmem:[%s6 + $0x238] sm:$0xff]
    %v2450 = vld [vmem:[%s6 + $0x240] sm:$0xff]
    %v2451 = vld [vmem:[%s6 + $0x248] sm:$0xff]
    %v2452 = vld [vmem:[%s7 + $0xc0] sm:$0xff]
    %v2453 = vld [vmem:[%s7 + $0xc8] sm:$0xff]
    %v2454 = vld [vmem:[%s7 + $0xd0] sm:$0xff]
    %v2455 = vld [vmem:[%s7 + $0xd8] sm:$0xff]
    %v2456 = vadd.f32 %v2404, %v2408
    %v2457 = vadd.f32 %v2456, %v2414
    %vm2458 = vcmask 1041408
    %v2459 = vsel %vm2458, %v2418, 0.0
    %v2460 = vadd.f32 %v2457, %v2459
    %v2461 = vrot.slane %v2460, 4
    %v2462 = vadd.f32 %v2460, %v2461
    %v2463 = vrot.slane %v2462, 2
    %v2464 = vadd.f32 %v2462, %v2463
    %v2465 = vrot.slane %v2464, 1
    %v2466 = vadd.f32 %v2464, %v2465
    %v2467 = vsel %vm49, %v2406, 0.0
    %v2468 = vsel %vm49, %v2410, 0.0
    %v2469 = vadd.f32 %v2467, %v2468
    %v2470 = vsel %vm49, %v2416, 0.0
    %v2471 = vadd.f32 %v2469, %v2470
    %vm2472 = vcmask 648192
    %v2473 = vsel %vm2472, %v2420, 0.0
    %v2474 = vadd.f32 %v2471, %v2473
    %v2475 = vrot.slane %v2474, 4
    %v2476 = vadd.f32 %v2474, %v2475
    %v2477 = vrot.slane %v2476, 2
    %v2478 = vadd.f32 %v2476, %v2477
    %v2479 = vrot.slane %v2478, 1
    %v2480 = vadd.f32 %v2478, %v2479
    %v2481 = vmul.f32 %v2404, %v2404
    %v2482 = vmul.f32 %v2406, %v2406
    %v2483 = vmul.f32 %v2408, %v2408
    %v2484 = vmul.f32 %v2410, %v2410
    %v2485 = vmul.f32 %v2414, %v2414
    %v2486 = vmul.f32 %v2416, %v2416
    %v2487 = vmul.f32 %v2418, %v2418
    %v2488 = vmul.f32 %v2420, %v2420
    %v2489 = vadd.f32 %v2481, %v2483
    %v2490 = vadd.f32 %v2489, %v2485
    %v2491 = vsel %vm2458, %v2487, 0.0
    %v2492 = vadd.f32 %v2490, %v2491
    %v2493 = vrot.slane %v2492, 4
    %v2494 = vadd.f32 %v2492, %v2493
    %v2495 = vrot.slane %v2494, 2
    %v2496 = vadd.f32 %v2494, %v2495
    %v2497 = vrot.slane %v2496, 1
    %v2498 = vadd.f32 %v2496, %v2497
    %v2499 = vsel %vm49, %v2482, 0.0
    %v2500 = vsel %vm49, %v2484, 0.0
    %v2501 = vadd.f32 %v2499, %v2500
    %v2502 = vsel %vm49, %v2486, 0.0
    %v2503 = vadd.f32 %v2501, %v2502
    %v2504 = vsel %vm2472, %v2488, 0.0
    %v2505 = vadd.f32 %v2503, %v2504
    %v2506 = vrot.slane %v2505, 4
    %v2507 = vadd.f32 %v2505, %v2506
    %v2508 = vrot.slane %v2507, 2
    %v2509 = vadd.f32 %v2507, %v2508
    %v2510 = vrot.slane %v2509, 1
    %v2511 = vadd.f32 %v2509, %v2510
    %v2512 = vsel %vm391, %v2466, %v2498
    %v2513 = vsel %vm391, %v2480, %v2511
    %v2515 = vsel %vm49, %v2513, 0
    %2517 = vmatprep.subr.mxu0 0.0
    %2518 = vmatpush1.msra.mxu0 %v2426
    %2519 = vmatprep.subr.mxu0 0.0
    %2520 = vmatpush1.msra.mxu0 %v2427
    %2521 = vmatprep.subr.mxu0 0.0
    %2522 = vmatpush1.msra.mxu0 %v2428
    %2523 = vmatprep.subr.mxu0 0.0
    %2524 = vmatpush1.msra.mxu0 %v2429
    %2525 = vmatprep.subr.mxu0 0.0
    %2526 = vmatpush1.msra.mxu0 %v2430
    %2527 = vmatprep.subr.mxu0 0.0
    %2528 = vmatpush1.msra.mxu0 %v2431
    %2529 = vmatprep.subr.mxu0 0.0
    %2530 = vmatpush1.msra.mxu0 %v2432
    %2531 = vmatprep.subr.mxu0 0.0
    %2532 = vmatpush1.msra.mxu0 %v2433
    %2533 = vmatprep.subr.mxu0 0.0
    %2534 = vmatpush1.msra.mxu0 %v2434
    %2535 = vmatprep.subr.mxu0 0.0
    %2536 = vmatpush1.msra.mxu0 %v2435
    %2537 = vmatprep.subr.mxu0 0.0
    %2538 = vmatpush1.msra.mxu0 %v2436
    %2539 = vmatprep.subr.mxu0 0.0
    %2540 = vmatpush1.msra.mxu0 %v2437
    %2541 = vmatprep.subr.mxu0 0.0
    %2542 = vmatpush1.msra.mxu0 %v2438
    %2543 = vmatprep.subr.mxu0 0.0
    %2544 = vmatpush1.msra.mxu0 %v2439
    %2545 = vmatprep.subr.mxu0 0.0
    %2546 = vmatpush1.msra.mxu0 %v2440
    %2547 = vmatprep.subr.mxu0 0.0
    %2548 = vmatpush1.msra.mxu0 %v2441
    %2549 = vmatprep.subr.mxu0 0.0
    %2550 = vmatpush1.msra.mxu0 %v2442
    %2551 = vmatprep.subr.mxu0 0.0
    %2552 = vmatpush1.msra.mxu0 %v2443
    %2553 = vmatprep.subr.mxu0 0.0
    %2554 = vmatpush1.msra.mxu0 %v2444
    %2555 = vmatprep.subr.mxu0 0.0
    %2556 = vmatpush1.msra.mxu0 %v2445
    %2557 = vmatprep.subr.mxu0 0.0
    %2558 = vmatpush1.msra.mxu0 %v2446
    %2559 = vmatprep.subr.mxu0 0.0
    %2560 = vmatpush1.msra.mxu0 %v2447
    %2561 = vmatprep.subr.mxu0 0.0
    %2562 = vmatpush1.msra.mxu0 %v2448
    %2563 = vmatprep.subr.mxu0 0.0
    %2564 = vmatpush1.msra.mxu0 %v2449
    %2565 = vmatprep.subr.mxu0 0.0
    %2566 = vmatpush1.msra.mxu0 %v2450
    %2567 = vmatprep.subr.mxu0 0.0
    %2568 = vmatpush1.msra.mxu0 %v2451
    %2569 = vmatprep.subr.mxu0 0.0
    %2570 = vmatpush1.msra.mxu0 0.0
    %2571 = vmatprep.subr.mxu0 0.0
    %2572 = vmatpush1.msra.mxu0 0.0
    %2573 = vmatprep.subr.mxu0 0.0
    %2574 = vmatpush1.msra.mxu0 0.0
    %2575 = vmatprep.subr.mxu0 0.0
    %2576 = vmatpush1.msra.mxu0 0.0
    %2577 = vmatprep.subr.mxu0 0.0
    %2578 = vmatpush1.msra.mxu0 0.0
    %2579 = vmatprep.subr.mxu0 0.0
    %2580 = vmatpush1.msra.mxu0 0.0
    %2581 = vmatprep.mubr.f32.mxu0 %v2515
    %2582 = vmatmul.mubr.f32.gmra.mrb[0].mxu0 %v2512
    %v2583 = vpop.f32.mrb[0].mxu0
    %v2584 = vadd.f32 0.0, %v2583
    %v2585 = vpop.f32.mrb[0].mxu0
    %2586 = vdwg.mxu0
    %vm2587 = vcmask 130048
    %v2589 = vsel %vm2587, %v2584, 0
    %2591 = vmatprep.subr.mxu0 %v2453
    %2592 = vmatpush1.msra.mxu0 %v2452
    %2593 = vmatprep.subr.mxu0 %v2455
    %2594 = vmatpush1.msra.mxu0 %v2454
    %2595 = vmatprep.subr.mxu0 0.0
    %2596 = vmatpush1.msra.mxu0 0.0
    %2597 = vmatprep.subr.mxu0 0.0
    %2598 = vmatpush1.msra.mxu0 0.0
    %2599 = vmatprep.subr.mxu0 0.0
    %2600 = vmatpush1.msra.mxu0 0.0
    %2601 = vmatprep.subr.mxu0 0.0
    %2602 = vmatpush1.msra.mxu0 0.0
    %2603 = vmatprep.subr.mxu0 0.0
    %2604 = vmatpush1.msra.mxu0 0.0
    %2605 = vmatprep.subr.mxu0 0.0
    %2606 = vmatpush1.msra.mxu0 0.0
    %2607 = vmatprep.subr.mxu0 0.0
    %2608 = vmatpush1.msra.mxu0 0.0
    %2609 = vmatprep.subr.mxu0 0.0
    %2610 = vmatpush1.msra.mxu0 0.0
    %2611 = vmatprep.subr.mxu0 0.0
    %2612 = vmatpush1.msra.mxu0 0.0
    %2613 = vmatprep.subr.mxu0 0.0
    %2614 = vmatpush1.msra.mxu0 0.0
    %2615 = vmatprep.subr.mxu0 0.0
    %2616 = vmatpush1.msra.mxu0 0.0
    %2617 = vmatprep.subr.mxu0 0.0
    %2618 = vmatpush1.msra.mxu0 0.0
    %2619 = vmatprep.subr.mxu0 0.0
    %2620 = vmatpush1.msra.mxu0 0.0
    %2621 = vmatprep.subr.mxu0 0.0
    %2622 = vmatpush1.msra.mxu0 0.0
    %2623 = vmatprep.subr.mxu0 0.0
    %2624 = vmatpush1.msra.mxu0 0.0
    %2625 = vmatprep.subr.mxu0 0.0
    %2626 = vmatpush1.msra.mxu0 0.0
    %2627 = vmatprep.subr.mxu0 0.0
    %2628 = vmatpush1.msra.mxu0 0.0
    %2629 = vmatprep.subr.mxu0 0.0
    %2630 = vmatpush1.msra.mxu0 0.0
    %2631 = vmatprep.subr.mxu0 0.0
    %2632 = vmatpush1.msra.mxu0 0.0
    %2633 = vmatprep.subr.mxu0 0.0
    %2634 = vmatpush1.msra.mxu0 0.0
    %2635 = vmatprep.subr.mxu0 0.0
    %2636 = vmatpush1.msra.mxu0 0.0
    %2637 = vmatprep.subr.mxu0 0.0
    %2638 = vmatpush1.msra.mxu0 0.0
    %2639 = vmatprep.subr.mxu0 0.0
    %2640 = vmatpush1.msra.mxu0 0.0
    %2641 = vmatprep.subr.mxu0 0.0
    %2642 = vmatpush1.msra.mxu0 0.0
    %2643 = vmatprep.subr.mxu0 0.0
    %2644 = vmatpush1.msra.mxu0 0.0
    %2645 = vmatprep.subr.mxu0 0.0
    %2646 = vmatpush1.msra.mxu0 0.0
    %2647 = vmatprep.subr.mxu0 0.0
    %2648 = vmatpush1.msra.mxu0 0.0
    %2649 = vmatprep.subr.mxu0 0.0
    %2650 = vmatpush1.msra.mxu0 0.0
    %2651 = vmatprep.subr.mxu0 0.0
    %2652 = vmatpush1.msra.mxu0 0.0
    %2653 = vmatprep.subr.mxu0 0.0
    %2654 = vmatpush1.msra.mxu0 0.0
    %2655 = vmatprep.mubr.f32.mxu0 0.0
    %2656 = vmatmul.mubr.f32.gmra.mrb[0].mxu0 %v2589
    %v2657 = vpop.f32.mrb[0].mxu0
    %v2658 = vadd.f32 0.0, %v2657
    %v2659 = vpop.f32.mrb[0].mxu0
    %v2660 = vadd.f32 0.0, %v2659
    %2661 = vdwg.mxu0
    %v2662 = vmul.f32 %v2658, %v2658
    %v2663 = vmul.f32 %v2660, %v2660
    %v2666 = vrot.slane %v2662, 7
    %v2667 = vrot.slane %v2663, 7
    %v2670 = vsub.f32 %v2658, %v2666
    %v2671 = vsub.f32 %v2660, %v2667
    %v2672 = vmax.f32 %v2670, 0.0
    %v2673 = vmax.f32 %v2671, 0.0
    %v2674 = vadd.f32 %v2672, 1e-05
    %v2675 = vadd.f32 %v2673, 1e-05
    %v2676 = vrsqrt.pop %v2674
    %v2677 = vrsqrt.pop %v2675
    %v2680 = vcombine.low %v2676, %v2677
    %v2682 = vunpack.c.l.s4 1966171168
    %v2683 = vunpack.c.0.s8 %v2682
    %v2684 = vlaneseq
    %v2685 = vshrl.u32 %v2684, 7
    %v2686 = vsub.s32 %v2683, %v2685
    %v2687 = vrot.slane %v2680, %v2686
    %v2688 = vcombine.high %v2687, %v2687
    %v2690 = vunpack.c.l.s4 1966171168
    %v2691 = vunpack.c.0.s8 %v2690
    %v2692 = vlaneseq
    %v2693 = vshrl.u32 %v2692, 7
    %v2694 = vsub.s32 %v2691, %v2693
    %v2695 = vrot.slane %v2688, %v2694
    %v2697 = vmul.f32 %v2423, %v2695
    %v2698 = vlaneseq
    %v2699 = vshrl.u32 %v2698, 7
    %v2700 = vsub.s32 0, %v2699
    %v2701 = vrot.slane %v2658, %v2700
    %v2702 = vlaneseq
    %v2703 = vshrl.u32 %v2702, 7
    %v2704 = vsub.s32 0, %v2703
    %v2705 = vrot.slane %v2660, %v2704
    %v2706 = vsub.f32 %v2404, %v2701
    %v2707 = vsub.f32 %v2406, %v2705
    %v2708 = vsub.f32 %v2408, %v2701
    %v2709 = vsub.f32 %v2410, %v2705
    %v2710 = vsub.f32 %v2414, %v2701
    %v2711 = vsub.f32 %v2416, %v2705
    %v2712 = vsub.f32 %v2418, %v2701
    %v2713 = vsub.f32 %v2420, %v2705
    %v2715 = vlaneseq
    %v2716 = vshrl.u32 %v2715, 7
    %v2717 = vsub.s32 0, %v2716
    %v2718 = vrot.slane %v2697, %v2717
    %v2719 = vlaneseq
    %v2720 = vshrl.u32 %v2719, 7
    %v2721 = vsub.s32 1, %v2720
    %v2722 = vrot.slane %v2697, %v2721
    %v2725 = vmul.f32 %v2706, %v2718
    %v2726 = vmul.f32 %v2707, %v2722
    %v2727 = vmul.f32 %v2708, %v2718
    %v2728 = vmul.f32 %v2709, %v2722
    %v2729 = vmul.f32 %v2710, %v2718
    %v2730 = vmul.f32 %v2711, %v2722
    %v2731 = vmul.f32 %v2712, %v2718
    %v2732 = vmul.f32 %v2713, %v2722
    %v2734 = vlaneseq
    %v2735 = vshrl.u32 %v2734, 7
    %v2736 = vsub.s32 0, %v2735
    %v2737 = vrot.slane %v2425, %v2736
    %v2738 = vlaneseq
    %v2739 = vshrl.u32 %v2738, 7
    %v2740 = vsub.s32 1, %v2739
    %v2741 = vrot.slane %v2425, %v2740
    %v2744 = vadd.f32 %v2725, %v2737
    %v2745 = vadd.f32 %v2726, %v2741
    %v2746 = vadd.f32 %v2727, %v2737
    %v2747 = vadd.f32 %v2728, %v2741
    %v2748 = vadd.f32 %v2729, %v2737
    %v2749 = vadd.f32 %v2730, %v2741
    %v2750 = vadd.f32 %v2731, %v2737
    %v2751 = vadd.f32 %v2732, %v2741
    %v2752 = vmax.f32 %v2744, 0.0
    %v2753 = vmax.f32 %v2745, 0.0
    %v2754 = vmax.f32 %v2746, 0.0
    %v2755 = vmax.f32 %v2747, 0.0
    %v2756 = vmax.f32 %v2748, 0.0
    %v2757 = vmax.f32 %v2749, 0.0
    %v2758 = vmax.f32 %v2750, 0.0
    %v2759 = vmax.f32 %v2751, 0.0
    %v2760 = vpack.c.bf16 %v2754, %v2752
    %v2761 = vpack.c.bf16 %v2755, %v2753
    %v2762 = vpack.c.bf16 %v2758, %v2756
    %v2763 = vpack.c.bf16 %v2759, %v2757
    %v2764 = vld [vmem:[#allocation3] sm:$0xf]
    %v2765 = vld [vmem:[#allocation3 + $0x4] sm:$0xf]
    %v2766 = vld [vmem:[#allocation3 + $0x8] sm:$0xf]
    %v2767 = vld [vmem:[#allocation3 + $0xc] sm:$0xf]
    %v2768 = vld [vmem:[#allocation3 + $0x10] sm:$0xf]
    %v2769 = vld [vmem:[#allocation3 + $0x14] sm:$0xf]
    %v2770 = vld [vmem:[#allocation3 + $0x18] sm:$0xf]
    %v2771 = vld [vmem:[#allocation3 + $0x1c] sm:$0xf]
    %v2772 = vld [vmem:[#allocation3 + $0x20] sm:$0xf]
    %v2773 = vld [vmem:[#allocation3 + $0x24] sm:$0xf]
    %v2774 = vld [vmem:[#allocation3 + $0x28] sm:$0xf]
    %v2775 = vld [vmem:[#allocation3 + $0x2c] sm:$0xf]
    %v2776 = vld [vmem:[#allocation3 + $0x30] sm:$0xf]
    %v2777 = vld [vmem:[#allocation3 + $0x34] sm:$0xf]
    %v2778 = vld [vmem:[#allocation3 + $0x38] sm:$0xf]
    %v2779 = vld [vmem:[#allocation3 + $0x3c] sm:$0xf]
    %v2780 = vld [vmem:[#allocation3 + $0x40] sm:$0xf]
    %v2781 = vld [vmem:[#allocation3 + $0x44] sm:$0xf]
    %v2782 = vld [vmem:[#allocation3 + $0x48] sm:$0xf]
    %v2783 = vld [vmem:[#allocation3 + $0x4c] sm:$0xf]
    %v2784 = vld [vmem:[#allocation3 + $0x50] sm:$0xf]
    %v2785 = vld [vmem:[#allocation3 + $0x54] sm:$0xf]
    %v2786 = vld [vmem:[#allocation3 + $0x58] sm:$0xf]
    %v2787 = vld [vmem:[#allocation3 + $0x5c] sm:$0xf]
    %v2788 = vld [vmem:[#allocation3 + $0x60] sm:$0xf]
    %v2789 = vld [vmem:[#allocation3 + $0x64] sm:$0xf]
    %v2816 = vunpack.c.l.b16 %v2764
    %v2817 = vunpack.c.l.b16 %v2765
    %v2818 = vunpack.c.l.b16 %v2766
    %v2819 = vunpack.c.l.b16 %v2767
    %v2820 = vunpack.c.l.b16 %v2768
    %v2821 = vunpack.c.l.b16 %v2769
    %v2822 = vunpack.c.l.b16 %v2770
    %v2823 = vunpack.c.l.b16 %v2771
    %v2824 = vunpack.c.l.b16 %v2772
    %v2825 = vunpack.c.l.b16 %v2773
    %v2826 = vunpack.c.l.b16 %v2774
    %v2827 = vunpack.c.l.b16 %v2775
    %v2828 = vunpack.c.l.b16 %v2776
    %v2829 = vunpack.c.l.b16 %v2777
    %v2830 = vunpack.c.l.b16 %v2778
    %v2831 = vunpack.c.l.b16 %v2779
    %v2832 = vunpack.c.l.b16 %v2780
    %v2833 = vunpack.c.l.b16 %v2781
    %v2834 = vunpack.c.l.b16 %v2782
    %v2835 = vunpack.c.l.b16 %v2783
    %v2836 = vunpack.c.l.b16 %v2784
    %v2837 = vunpack.c.l.b16 %v2785
    %v2838 = vunpack.c.l.b16 %v2786
    %v2839 = vunpack.c.l.b16 %v2787
    %v2840 = vunpack.c.l.b16 %v2788
    %v2841 = vunpack.c.l.b16 %v2789
    %v2842 = vpack.c.b16 %v2817, %v2816
    %v2843 = vpack.c.b16 %v2819, %v2818
    %v2844 = vpack.c.b16 %v2821, %v2820
    %v2845 = vpack.c.b16 %v2823, %v2822
    %v2846 = vpack.c.b16 %v2825, %v2824
    %v2847 = vpack.c.b16 %v2827, %v2826
    %v2848 = vpack.c.b16 %v2829, %v2828
    %v2849 = vpack.c.b16 %v2831, %v2830
    %v2850 = vpack.c.b16 %v2833, %v2832
    %v2851 = vpack.c.b16 %v2835, %v2834
    %v2852 = vpack.c.b16 %v2837, %v2836
    %v2853 = vpack.c.b16 %v2839, %v2838
    %v2854 = vpack.c.b16 %v2841, %v2840
    %v2869 = vsel %vm49, %v2761, 0
    %v2872 = vsel %vm49, %v2763, 0
    %2874 = vmatprep.subr.bf16.mxu0 0
    %2875 = vmatpush1.bf16.msra.mxu0 %v2842
    %2876 = vmatprep.subr.bf16.mxu0 0
    %2877 = vmatpush1.bf16.msra.mxu0 %v2843
    %2878 = vmatprep.subr.bf16.mxu0 0
    %2879 = vmatpush1.bf16.msra.mxu0 %v2844
    %2880 = vmatprep.subr.bf16.mxu0 0
    %2881 = vmatpush1.bf16.msra.mxu0 %v2845
    %2882 = vmatprep.subr.bf16.mxu0 0
    %2883 = vmatpush1.bf16.msra.mxu0 %v2846
    %2884 = vmatprep.subr.bf16.mxu0 0
    %2885 = vmatpush1.bf16.msra.mxu0 %v2847
    %2886 = vmatprep.subr.bf16.mxu0 0
    %2887 = vmatpush1.bf16.msra.mxu0 %v2848
    %2888 = vmatprep.subr.bf16.mxu0 0
    %2889 = vmatpush1.bf16.msra.mxu0 %v2849
    %2890 = vmatprep.subr.bf16.mxu0 0
    %2891 = vmatpush1.bf16.msra.mxu0 %v2850
    %2892 = vmatprep.subr.bf16.mxu0 0
    %2893 = vmatpush1.bf16.msra.mxu0 %v2851
    %2894 = vmatprep.subr.bf16.mxu0 0
    %2895 = vmatpush1.bf16.msra.mxu0 %v2852
    %2896 = vmatprep.subr.bf16.mxu0 0
    %2897 = vmatpush1.bf16.msra.mxu0 %v2853
    %2898 = vmatprep.subr.bf16.mxu0 0
    %2899 = vmatpush1.bf16.msra.mxu0 %v2854
    %2900 = vmatprep.subr.bf16.mxu0 0
    %2901 = vmatpush1.bf16.msra.mxu0 0
    %2902 = vmatprep.subr.bf16.mxu0 0
    %2903 = vmatpush1.bf16.msra.mxu0 0
    %2904 = vmatprep.subr.bf16.mxu0 0
    %2905 = vmatpush1.bf16.msra.mxu0 0
    %2906 = vmatprep.mubr.bf16.mxu0 %v2869
    %2907 = vmatmul.mubr.bf16.gmra.mrb[0].mxu0 %v2760
    %v2908 = vpop.f32.mrb[0].mxu0
    %v2909 = vadd.f32 0.0, %v2908
    %v2910 = vpop.f32.mrb[0].mxu0
    %v2911 = vpop.f32.mrb[0].mxu0
    %v2912 = vadd.f32 0.0, %v2911
    %v2913 = vpop.f32.mrb[0].mxu0
    %2914 = vmatprep.mubr.bf16.mxu0 %v2872
    %2915 = vmatmul.mubr.bf16.gmra.mrb[0].mxu0 %v2762
    %v2916 = vpop.f32.mrb[0].mxu0
    %v2917 = vadd.f32 0.0, %v2916
    %v2918 = vpop.f32.mrb[0].mxu0
    %v2919 = vpop.f32.mrb[0].mxu0
    %v2920 = vadd.f32 0.0, %v2919
    %v2921 = vpop.f32.mrb[0].mxu0
    %2922 = vdwg.mxu0
    %v2923 = vpack.c.bf16 %v2912, %v2909
    %v2924 = vpack.c.bf16 %v2920, %v2917
    %2925 = vst [vmem:[#allocation2] sm:$0xff] %v2923
    %2926 = vst [vmem:[#allocation2 + $0x10] sm:$0x1f] %v2924
    %s2927 = scalar_lea.vmem [#allocation3], 104
    %v2928 = vld [vmem:[%s2927] sm:$0xf]
    %v2929 = vld [vmem:[%s2927 + $0x4] sm:$0xf]
    %v2930 = vld [vmem:[%s2927 + $0x8] sm:$0xf]
    %v2931 = vld [vmem:[%s2927 + $0xc] sm:$0xf]
    %v2932 = vld [vmem:[%s2927 + $0x10] sm:$0xf]
    %v2933 = vld [vmem:[%s2927 + $0x14] sm:$0xf]
    %v2934 = vld [vmem:[%s2927 + $0x18] sm:$0xf]
    %v2935 = vld [vmem:[%s2927 + $0x1c] sm:$0xf]
    %v2936 = vld [vmem:[%s2927 + $0x20] sm:$0xf]
    %v2937 = vld [vmem:[%s2927 + $0x24] sm:$0xf]
    %v2938 = vld [vmem:[%s2927 + $0x28] sm:$0xf]
    %v2939 = vld [vmem:[%s2927 + $0x2c] sm:$0xf]
    %v2940 = vld [vmem:[%s2927 + $0x30] sm:$0xf]
    %v2941 = vld [vmem:[%s2927 + $0x34] sm:$0xf]
    %v2942 = vld [vmem:[%s2927 + $0x38] sm:$0xf]
    %v2943 = vld [vmem:[%s2927 + $0x3c] sm:$0xf]
    %v2944 = vld [vmem:[%s2927 + $0x40] sm:$0xf]
    %v2945 = vld [vmem:[%s2927 + $0x44] sm:$0xf]
    %v2946 = vld [vmem:[%s2927 + $0x48] sm:$0xf]
    %v2947 = vld [vmem:[%s2927 + $0x4c] sm:$0xf]
    %v2948 = vld [vmem:[%s2927 + $0x50] sm:$0xf]
    %v2949 = vld [vmem:[%s2927 + $0x54] sm:$0xf]
    %v2950 = vld [vmem:[%s2927 + $0x58] sm:$0xf]
    %v2951 = vld [vmem:[%s2927 + $0x5c] sm:$0xf]
    %v2952 = vld [vmem:[%s2927 + $0x60] sm:$0xf]
    %v2953 = vld [vmem:[%s2927 + $0x64] sm:$0xf]
    %v2980 = vunpack.c.l.b16 %v2928
    %v2981 = vunpack.c.l.b16 %v2929
    %v2982 = vunpack.c.l.b16 %v2930
    %v2983 = vunpack.c.l.b16 %v2931
    %v2984 = vunpack.c.l.b16 %v2932
    %v2985 = vunpack.c.l.b16 %v2933
    %v2986 = vunpack.c.l.b16 %v2934
    %v2987 = vunpack.c.l.b16 %v2935
    %v2988 = vunpack.c.l.b16 %v2936
    %v2989 = vunpack.c.l.b16 %v2937
    %v2990 = vunpack.c.l.b16 %v2938
    %v2991 = vunpack.c.l.b16 %v2939
    %v2992 = vunpack.c.l.b16 %v2940
    %v2993 = vunpack.c.l.b16 %v2941
    %v2994 = vunpack.c.l.b16 %v2942
    %v2995 = vunpack.c.l.b16 %v2943
    %v2996 = vunpack.c.l.b16 %v2944
    %v2997 = vunpack.c.l.b16 %v2945
    %v2998 = vunpack.c.l.b16 %v2946
    %v2999 = vunpack.c.l.b16 %v2947
    %v3000 = vunpack.c.l.b16 %v2948
    %v3001 = vunpack.c.l.b16 %v2949
    %v3002 = vunpack.c.l.b16 %v2950
    %v3003 = vunpack.c.l.b16 %v2951
    %v3004 = vunpack.c.l.b16 %v2952
    %v3005 = vunpack.c.l.b16 %v2953
    %v3006 = vpack.c.b16 %v2981, %v2980
    %v3007 = vpack.c.b16 %v2983, %v2982
    %v3008 = vpack.c.b16 %v2985, %v2984
    %v3009 = vpack.c.b16 %v2987, %v2986
    %v3010 = vpack.c.b16 %v2989, %v2988
    %v3011 = vpack.c.b16 %v2991, %v2990
    %v3012 = vpack.c.b16 %v2993, %v2992
    %v3013 = vpack.c.b16 %v2995, %v2994
    %v3014 = vpack.c.b16 %v2997, %v2996
    %v3015 = vpack.c.b16 %v2999, %v2998
    %v3016 = vpack.c.b16 %v3001, %v3000
    %v3017 = vpack.c.b16 %v3003, %v3002
    %v3018 = vpack.c.b16 %v3005, %v3004
    %3032 = vmatprep.subr.bf16.mxu0 0
    %3033 = vmatpush1.bf16.msra.mxu0 %v3006
    %3034 = vmatprep.subr.bf16.mxu0 0
    %3035 = vmatpush1.bf16.msra.mxu0 %v3007
    %3036 = vmatprep.subr.bf16.mxu0 0
    %3037 = vmatpush1.bf16.msra.mxu0 %v3008
    %3038 = vmatprep.subr.bf16.mxu0 0
    %3039 = vmatpush1.bf16.msra.mxu0 %v3009
    %3040 = vmatprep.subr.bf16.mxu0 0
    %3041 = vmatpush1.bf16.msra.mxu0 %v3010
    %3042 = vmatprep.subr.bf16.mxu0 0
    %3043 = vmatpush1.bf16.msra.mxu0 %v3011
    %3044 = vmatprep.subr.bf16.mxu0 0
    %3045 = vmatpush1.bf16.msra.mxu0 %v3012
    %3046 = vmatprep.subr.bf16.mxu0 0
    %3047 = vmatpush1.bf16.msra.mxu0 %v3013
    %3048 = vmatprep.subr.bf16.mxu0 0
    %3049 = vmatpush1.bf16.msra.mxu0 %v3014
    %3050 = vmatprep.subr.bf16.mxu0 0
    %3051 = vmatpush1.bf16.msra.mxu0 %v3015
    %3052 = vmatprep.subr.bf16.mxu0 0
    %3053 = vmatpush1.bf16.msra.mxu0 %v3016
    %3054 = vmatprep.subr.bf16.mxu0 0
    %3055 = vmatpush1.bf16.msra.mxu0 %v3017
    %3056 = vmatprep.subr.bf16.mxu0 0
    %3057 = vmatpush1.bf16.msra.mxu0 %v3018
    %3058 = vmatprep.subr.bf16.mxu0 0
    %3059 = vmatpush1.bf16.msra.mxu0 0
    %3060 = vmatprep.subr.bf16.mxu0 0
    %3061 = vmatpush1.bf16.msra.mxu0 0
    %3062 = vmatprep.subr.bf16.mxu0 0
    %3063 = vmatpush1.bf16.msra.mxu0 0
    %3064 = vmatprep.mubr.bf16.mxu0 %v2869
    %3065 = vmatmul.mubr.bf16.gmra.mrb[0].mxu0 %v2760
    %v3066 = vpop.f32.mrb[0].mxu0
    %v3067 = vadd.f32 0.0, %v3066
    %v3068 = vpop.f32.mrb[0].mxu0
    %v3069 = vpop.f32.mrb[0].mxu0
    %v3070 = vadd.f32 0.0, %v3069
    %v3071 = vpop.f32.mrb[0].mxu0
    %3072 = vmatprep.mubr.bf16.mxu0 %v2872
    %3073 = vmatmul.mubr.bf16.gmra.mrb[0].mxu0 %v2762
    %v3074 = vpop.f32.mrb[0].mxu0
    %v3075 = vadd.f32 0.0, %v3074
    %v3076 = vpop.f32.mrb[0].mxu0
    %v3077 = vpop.f32.mrb[0].mxu0
    %v3078 = vadd.f32 0.0, %v3077
    %v3079 = vpop.f32.mrb[0].mxu0
    %3080 = vdwg.mxu0
    %v3081 = vpack.c.bf16 %v3070, %v3067
    %v3082 = vpack.c.bf16 %v3078, %v3075
    %3083 = vst [vmem:[#allocation2 + $0x20] sm:$0xff] %v3081
    %3084 = vst [vmem:[#allocation2 + $0x30] sm:$0x1f] %v3082
    %s3085 = scalar_lea.vmem [#allocation3], 208
    %v3086 = vld [vmem:[%s3085] sm:$0xf]
    %v3087 = vld [vmem:[%s3085 + $0x4] sm:$0xf]
    %v3088 = vld [vmem:[%s3085 + $0x8] sm:$0xf]
    %v3089 = vld [vmem:[%s3085 + $0xc] sm:$0xf]
    %v3090 = vld [vmem:[%s3085 + $0x10] sm:$0xf]
    %v3091 = vld [vmem:[%s3085 + $0x14] sm:$0xf]
    %v3092 = vld [vmem:[%s3085 + $0x18] sm:$0xf]
    %v3093 = vld [vmem:[%s3085 + $0x1c] sm:$0xf]
    %v3094 = vld [vmem:[%s3085 + $0x20] sm:$0xf]
    %v3095 = vld [vmem:[%s3085 + $0x24] sm:$0xf]
    %v3096 = vld [vmem:[%s3085 + $0x28] sm:$0xf]
    %v3097 = vld [vmem:[%s3085 + $0x2c] sm:$0xf]
    %v3098 = vld [vmem:[%s3085 + $0x30] sm:$0xf]
    %v3099 = vld [vmem:[%s3085 + $0x34] sm:$0xf]
    %v3100 = vld [vmem:[%s3085 + $0x38] sm:$0xf]
    %v3101 = vld [vmem:[%s3085 + $0x3c] sm:$0xf]
    %v3102 = vld [vmem:[%s3085 + $0x40] sm:$0xf]
    %v3103 = vld [vmem:[%s3085 + $0x44] sm:$0xf]
    %v3104 = vld [vmem:[%s3085 + $0x48] sm:$0xf]
    %v3105 = vld [vmem:[%s3085 + $0x4c] sm:$0xf]
    %v3106 = vld [vmem:[%s3085 + $0x50] sm:$0xf]
    %v3107 = vld [vmem:[%s3085 + $0x54] sm:$0xf]
    %v3108 = vld [vmem:[%s3085 + $0x58] sm:$0xf]
    %v3109 = vld [vmem:[%s3085 + $0x5c] sm:$0xf]
    %v3110 = vld [vmem:[%s3085 + $0x60] sm:$0xf]
    %v3111 = vld [vmem:[%s3085 + $0x64] sm:$0xf]
    %v3138 = vunpack.c.l.b16 %v3086
    %v3139 = vunpack.c.l.b16 %v3087
    %v3140 = vunpack.c.l.b16 %v3088
    %v3141 = vunpack.c.l.b16 %v3089
    %v3142 = vunpack.c.l.b16 %v3090
    %v3143 = vunpack.c.l.b16 %v3091
    %v3144 = vunpack.c.l.b16 %v3092
    %v3145 = vunpack.c.l.b16 %v3093
    %v3146 = vunpack.c.l.b16 %v3094
    %v3147 = vunpack.c.l.b16 %v3095
    %v3148 = vunpack.c.l.b16 %v3096
    %v3149 = vunpack.c.l.b16 %v3097
    %v3150 = vunpack.c.l.b16 %v3098
    %v3151 = vunpack.c.l.b16 %v3099
    %v3152 = vunpack.c.l.b16 %v3100
    %v3153 = vunpack.c.l.b16 %v3101
    %v3154 = vunpack.c.l.b16 %v3102
    %v3155 = vunpack.c.l.b16 %v3103
    %v3156 = vunpack.c.l.b16 %v3104
    %v3157 = vunpack.c.l.b16 %v3105
    %v3158 = vunpack.c.l.b16 %v3106
    %v3159 = vunpack.c.l.b16 %v3107
    %v3160 = vunpack.c.l.b16 %v3108
    %v3161 = vunpack.c.l.b16 %v3109
    %v3162 = vunpack.c.l.b16 %v3110
    %v3163 = vunpack.c.l.b16 %v3111
    %v3164 = vpack.c.b16 %v3139, %v3138
    %v3165 = vpack.c.b16 %v3141, %v3140
    %v3166 = vpack.c.b16 %v3143, %v3142
    %v3167 = vpack.c.b16 %v3145, %v3144
    %v3168 = vpack.c.b16 %v3147, %v3146
    %v3169 = vpack.c.b16 %v3149, %v3148
    %v3170 = vpack.c.b16 %v3151, %v3150
    %v3171 = vpack.c.b16 %v3153, %v3152
    %v3172 = vpack.c.b16 %v3155, %v3154
    %v3173 = vpack.c.b16 %v3157, %v3156
    %v3174 = vpack.c.b16 %v3159, %v3158
    %v3175 = vpack.c.b16 %v3161, %v3160
    %v3176 = vpack.c.b16 %v3163, %v3162
    %3190 = vmatprep.subr.bf16.mxu0 0
    %3191 = vmatpush1.bf16.msra.mxu0 %v3164
    %3192 = vmatprep.subr.bf16.mxu0 0
    %3193 = vmatpush1.bf16.msra.mxu0 %v3165
    %3194 = vmatprep.subr.bf16.mxu0 0
    %3195 = vmatpush1.bf16.msra.mxu0 %v3166
    %3196 = vmatprep.subr.bf16.mxu0 0
    %3197 = vmatpush1.bf16.msra.mxu0 %v3167
    %3198 = vmatprep.subr.bf16.mxu0 0
    %3199 = vmatpush1.bf16.msra.mxu0 %v3168
    %3200 = vmatprep.subr.bf16.mxu0 0
    %3201 = vmatpush1.bf16.msra.mxu0 %v3169
    %3202 = vmatprep.subr.bf16.mxu0 0
    %3203 = vmatpush1.bf16.msra.mxu0 %v3170
    %3204 = vmatprep.subr.bf16.mxu0 0
    %3205 = vmatpush1.bf16.msra.mxu0 %v3171
    %3206 = vmatprep.subr.bf16.mxu0 0
    %3207 = vmatpush1.bf16.msra.mxu0 %v3172
    %3208 = vmatprep.subr.bf16.mxu0 0
    %3209 = vmatpush1.bf16.msra.mxu0 %v3173
    %3210 = vmatprep.subr.bf16.mxu0 0
    %3211 = vmatpush1.bf16.msra.mxu0 %v3174
    %3212 = vmatprep.subr.bf16.mxu0 0
    %3213 = vmatpush1.bf16.msra.mxu0 %v3175
    %3214 = vmatprep.subr.bf16.mxu0 0
    %3215 = vmatpush1.bf16.msra.mxu0 %v3176
    %3216 = vmatprep.subr.bf16.mxu0 0
    %3217 = vmatpush1.bf16.msra.mxu0 0
    %3218 = vmatprep.subr.bf16.mxu0 0
    %3219 = vmatpush1.bf16.msra.mxu0 0
    %3220 = vmatprep.subr.bf16.mxu0 0
    %3221 = vmatpush1.bf16.msra.mxu0 0
    %3222 = vmatprep.mubr.bf16.mxu0 %v2869
    %3223 = vmatmul.mubr.bf16.gmra.mrb[0].mxu0 %v2760
    %v3224 = vpop.f32.mrb[0].mxu0
    %v3225 = vadd.f32 0.0, %v3224
    %v3226 = vpop.f32.mrb[0].mxu0
    %v3227 = vpop.f32.mrb[0].mxu0
    %v3228 = vadd.f32 0.0, %v3227
    %v3229 = vpop.f32.mrb[0].mxu0
    %3230 = vmatprep.mubr.bf16.mxu0 %v2872
    %3231 = vmatmul.mubr.bf16.gmra.mrb[0].mxu0 %v2762
    %v3232 = vpop.f32.mrb[0].mxu0
    %v3233 = vadd.f32 0.0, %v3232
    %v3234 = vpop.f32.mrb[0].mxu0
    %v3235 = vpop.f32.mrb[0].mxu0
    %v3236 = vadd.f32 0.0, %v3235
    %v3237 = vpop.f32.mrb[0].mxu0
    %3238 = vdwg.mxu0
    %v3239 = vpack.c.bf16 %v3228, %v3225
    %v3240 = vpack.c.bf16 %v3236, %v3233
    %3241 = vst [vmem:[#allocation2 + $0x40] sm:$0xff] %v3239
    %3242 = vst [vmem:[#allocation2 + $0x50] sm:$0x1f] %v3240
    %s3243 = scalar_lea.vmem [#allocation3], 312
    %v3244 = vld [vmem:[%s3243] sm:$0xf]
    %v3245 = vld [vmem:[%s3243 + $0x4] sm:$0xf]
    %v3246 = vld [vmem:[%s3243 + $0x8] sm:$0xf]
    %v3247 = vld [vmem:[%s3243 + $0xc] sm:$0xf]
    %v3248 = vld [vmem:[%s3243 + $0x10] sm:$0xf]
    %v3249 = vld [vmem:[%s3243 + $0x14] sm:$0xf]
    %v3250 = vld [vmem:[%s3243 + $0x18] sm:$0xf]
    %v3251 = vld [vmem:[%s3243 + $0x1c] sm:$0xf]
    %v3252 = vld [vmem:[%s3243 + $0x20] sm:$0xf]
    %v3253 = vld [vmem:[%s3243 + $0x24] sm:$0xf]
    %v3254 = vld [vmem:[%s3243 + $0x28] sm:$0xf]
    %v3255 = vld [vmem:[%s3243 + $0x2c] sm:$0xf]
    %v3256 = vld [vmem:[%s3243 + $0x30] sm:$0xf]
    %v3257 = vld [vmem:[%s3243 + $0x34] sm:$0xf]
    %v3258 = vld [vmem:[%s3243 + $0x38] sm:$0xf]
    %v3259 = vld [vmem:[%s3243 + $0x3c] sm:$0xf]
    %v3260 = vld [vmem:[%s3243 + $0x40] sm:$0xf]
    %v3261 = vld [vmem:[%s3243 + $0x44] sm:$0xf]
    %v3262 = vld [vmem:[%s3243 + $0x48] sm:$0xf]
    %v3263 = vld [vmem:[%s3243 + $0x4c] sm:$0xf]
    %v3264 = vld [vmem:[%s3243 + $0x50] sm:$0xf]
    %v3265 = vld [vmem:[%s3243 + $0x54] sm:$0xf]
    %v3266 = vld [vmem:[%s3243 + $0x58] sm:$0xf]
    %v3267 = vld [vmem:[%s3243 + $0x5c] sm:$0xf]
    %v3268 = vld [vmem:[%s3243 + $0x60] sm:$0xf]
    %v3269 = vld [vmem:[%s3243 + $0x64] sm:$0xf]
    %v3296 = vunpack.c.l.b16 %v3244
    %v3297 = vunpack.c.l.b16 %v3245
    %v3298 = vunpack.c.l.b16 %v3246
    %v3299 = vunpack.c.l.b16 %v3247
    %v3300 = vunpack.c.l.b16 %v3248
    %v3301 = vunpack.c.l.b16 %v3249
    %v3302 = vunpack.c.l.b16 %v3250
    %v3303 = vunpack.c.l.b16 %v3251
    %v3304 = vunpack.c.l.b16 %v3252
    %v3305 = vunpack.c.l.b16 %v3253
    %v3306 = vunpack.c.l.b16 %v3254
    %v3307 = vunpack.c.l.b16 %v3255
    %v3308 = vunpack.c.l.b16 %v3256
    %v3309 = vunpack.c.l.b16 %v3257
    %v3310 = vunpack.c.l.b16 %v3258
    %v3311 = vunpack.c.l.b16 %v3259
    %v3312 = vunpack.c.l.b16 %v3260
    %v3313 = vunpack.c.l.b16 %v3261
    %v3314 = vunpack.c.l.b16 %v3262
    %v3315 = vunpack.c.l.b16 %v3263
    %v3316 = vunpack.c.l.b16 %v3264
    %v3317 = vunpack.c.l.b16 %v3265
    %v3318 = vunpack.c.l.b16 %v3266
    %v3319 = vunpack.c.l.b16 %v3267
    %v3320 = vunpack.c.l.b16 %v3268
    %v3321 = vunpack.c.l.b16 %v3269
    %v3322 = vpack.c.b16 %v3297, %v3296
    %v3323 = vpack.c.b16 %v3299, %v3298
    %v3324 = vpack.c.b16 %v3301, %v3300
    %v3325 = vpack.c.b16 %v3303, %v3302
    %v3326 = vpack.c.b16 %v3305, %v3304
    %v3327 = vpack.c.b16 %v3307, %v3306
    %v3328 = vpack.c.b16 %v3309, %v3308
    %v3329 = vpack.c.b16 %v3311, %v3310
    %v3330 = vpack.c.b16 %v3313, %v3312
    %v3331 = vpack.c.b16 %v3315, %v3314
    %v3332 = vpack.c.b16 %v3317, %v3316
    %v3333 = vpack.c.b16 %v3319, %v3318
    %v3334 = vpack.c.b16 %v3321, %v3320
    %3348 = vmatprep.subr.bf16.mxu0 0
    %3349 = vmatpush1.bf16.msra.mxu0 %v3322
    %3350 = vmatprep.subr.bf16.mxu0 0
    %3351 = vmatpush1.bf16.msra.mxu0 %v3323
    %3352 = vmatprep.subr.bf16.mxu0 0
    %3353 = vmatpush1.bf16.msra.mxu0 %v3324
    %3354 = vmatprep.subr.bf16.mxu0 0
    %3355 = vmatpush1.bf16.msra.mxu0 %v3325
    %3356 = vmatprep.subr.bf16.mxu0 0
    %3357 = vmatpush1.bf16.msra.mxu0 %v3326
    %3358 = vmatprep.subr.bf16.mxu0 0
    %3359 = vmatpush1.bf16.msra.mxu0 %v3327
    %3360 = vmatprep.subr.bf16.mxu0 0
    %3361 = vmatpush1.bf16.msra.mxu0 %v3328
    %3362 = vmatprep.subr.bf16.mxu0 0
    %3363 = vmatpush1.bf16.msra.mxu0 %v3329
    %3364 = vmatprep.subr.bf16.mxu0 0
    %3365 = vmatpush1.bf16.msra.mxu0 %v3330
    %3366 = vmatprep.subr.bf16.mxu0 0
    %3367 = vmatpush1.bf16.msra.mxu0 %v3331
    %3368 = vmatprep.subr.bf16.mxu0 0
    %3369 = vmatpush1.bf16.msra.mxu0 %v3332
    %3370 = vmatprep.subr.bf16.mxu0 0
    %3371 = vmatpush1.bf16.msra.mxu0 %v3333
    %3372 = vmatprep.subr.bf16.mxu0 0
    %3373 = vmatpush1.bf16.msra.mxu0 %v3334
    %3374 = vmatprep.subr.bf16.mxu0 0
    %3375 = vmatpush1.bf16.msra.mxu0 0
    %3376 = vmatprep.subr.bf16.mxu0 0
    %3377 = vmatpush1.bf16.msra.mxu0 0
    %3378 = vmatprep.subr.bf16.mxu0 0
    %3379 = vmatpush1.bf16.msra.mxu0 0
    %3380 = vmatprep.mubr.bf16.mxu0 %v2869
    %3381 = vmatmul.mubr.bf16.gmra.mrb[0].mxu0 %v2760
    %v3382 = vpop.f32.mrb[0].mxu0
    %v3383 = vadd.f32 0.0, %v3382
    %v3384 = vpop.f32.mrb[0].mxu0
    %v3385 = vpop.f32.mrb[0].mxu0
    %v3386 = vadd.f32 0.0, %v3385
    %v3387 = vpop.f32.mrb[0].mxu0
    %3388 = vmatprep.mubr.bf16.mxu0 %v2872
    %3389 = vmatmul.mubr.bf16.gmra.mrb[0].mxu0 %v2762
    %v3390 = vpop.f32.mrb[0].mxu0
    %v3391 = vadd.f32 0.0, %v3390
    %v3392 = vpop.f32.mrb[0].mxu0
    %v3393 = vpop.f32.mrb[0].mxu0
    %v3394 = vadd.f32 0.0, %v3393
    %v3395 = vpop.f32.mrb[0].mxu0
    %3396 = vdwg.mxu0
    %v3397 = vpack.c.bf16 %v3386, %v3383
    %v3398 = vpack.c.bf16 %v3394, %v3391
    %3399 = vst [vmem:[#allocation2 + $0x60] sm:$0xff] %v3397
    %3400 = vst [vmem:[#allocation2 + $0x70] sm:$0x1f] %v3398
    %v3401 = vld [vmem:[%s5 + $0x20] sm:$0xf]
    %v3402 = vld [vmem:[%s5 + $0x24] sm:$0xf]
    %v3403 = vld [vmem:[%s5 + $0x28] sm:$0xf]
    %v3404 = vld [vmem:[%s5 + $0x2c] sm:$0xf]
    %v3405 = vld [vmem:[%s5 + $0x30] sm:$0xf]
    %v3406 = vld [vmem:[%s5 + $0x34] sm:$0xf]
    %v3407 = vld [vmem:[%s5 + $0x38] sm:$0xf]
    %v3408 = vld [vmem:[#allocation2] sm:$0xff]
    %v3409 = vld [vmem:[#allocation2 + $0x10] sm:$0xff]
    %v3410 = vld [vmem:[#allocation2 + $0x20] sm:$0xff]
    %v3411 = vld [vmem:[#allocation2 + $0x30] sm:$0xff]
    %v3412 = vld [vmem:[#allocation2 + $0x40] sm:$0xff]
    %v3413 = vld [vmem:[#allocation2 + $0x50] sm:$0xff]
    %v3414 = vld [vmem:[#allocation2 + $0x60] sm:$0xff]
    %v3415 = vld [vmem:[#allocation2 + $0x70] sm:$0xff]
    %v3416 = vld [vmem:[%s8 + $0x6] ss:$0 sm:$0xff]
    %v3424 = vunpack.c.l.b16 %v3401
    %v3425 = vunpack.c.l.b16 %v3402
    %v3426 = vunpack.c.l.b16 %v3403
    %v3427 = vunpack.c.l.b16 %v3404
    %v3428 = vunpack.c.l.b16 %v3405
    %v3429 = vunpack.c.l.b16 %v3406
    %v3430 = vunpack.c.l.b16 %v3407
    %v3431 = vpack.c.b16 %v3425, %v3424
    %v3432 = vpack.c.b16 %v3427, %v3426
    %v3433 = vpack.c.b16 %v3429, %v3428
    %v3434 = vpack.c.b16 %v3430, %v3430
    %3439 = vmatprep.subr.bf16.mxu0 0
    %3440 = vmatpush1.bf16.msra.mxu0 %v3408
    %3441 = vmatprep.subr.bf16.mxu0 0
    %3442 = vmatpush1.bf16.msra.mxu0 %v3409
    %3443 = vmatprep.subr.bf16.mxu0 0
    %3444 = vmatpush1.bf16.msra.mxu0 %v3410
    %3445 = vmatprep.subr.bf16.mxu0 0
    %3446 = vmatpush1.bf16.msra.mxu0 %v3411
    %3447 = vmatprep.subr.bf16.mxu0 0
    %3448 = vmatpush1.bf16.msra.mxu0 %v3412
    %3449 = vmatprep.subr.bf16.mxu0 0
    %3450 = vmatpush1.bf16.msra.mxu0 %v3413
    %3451 = vmatprep.subr.bf16.mxu0 0
    %3452 = vmatpush1.bf16.msra.mxu0 %v3414
    %3453 = vmatprep.subr.bf16.mxu0 0
    %3454 = vmatpush1.bf16.msra.mxu0 %v3415
    %3455 = vmatprep.subr.bf16.mxu0 0
    %3456 = vmatpush1.bf16.msra.mxu0 0
    %3457 = vmatprep.subr.bf16.mxu0 0
    %3458 = vmatpush1.bf16.msra.mxu0 0
    %3459 = vmatprep.subr.bf16.mxu0 0
    %3460 = vmatpush1.bf16.msra.mxu0 0
    %3461 = vmatprep.subr.bf16.mxu0 0
    %3462 = vmatpush1.bf16.msra.mxu0 0
    %3463 = vmatprep.subr.bf16.mxu0 0
    %3464 = vmatpush1.bf16.msra.mxu0 0
    %3465 = vmatprep.subr.bf16.mxu0 0
    %3466 = vmatpush1.bf16.msra.mxu0 0
    %3467 = vmatprep.subr.bf16.mxu0 0
    %3468 = vmatpush1.bf16.msra.mxu0 0
    %3469 = vmatprep.subr.bf16.mxu0 0
    %3470 = vmatpush1.bf16.msra.mxu0 0
    %3471 = vmatprep.mubr.bf16.mxu0 0
    %3472 = vmatmul.mubr.bf16.gmra.mrb[0].mxu0 %v3431
    %v3473 = vpop.f32.mrb[0].mxu0
    %v3474 = vadd.f32 %v3416, %v3473
    %v3475 = vpop.f32.mrb[0].mxu0
    %v3476 = vpop.f32.mrb[0].mxu0
    %v3477 = vadd.f32 %v3416, %v3476
    %v3478 = vpop.f32.mrb[0].mxu0
    %3479 = vmatprep.mubr.bf16.mxu0 0
    %3480 = vmatmul.mubr.bf16.gmra.mrb[0].mxu0 %v3432
    %v3481 = vpop.f32.mrb[0].mxu0
    %v3482 = vadd.f32 %v3416, %v3481
    %v3483 = vpop.f32.mrb[0].mxu0
    %v3484 = vpop.f32.mrb[0].mxu0
    %v3485 = vadd.f32 %v3416, %v3484
    %v3486 = vpop.f32.mrb[0].mxu0
    %3487 = vmatprep.mubr.bf16.mxu0 0
    %3488 = vmatmul.mubr.bf16.gmra.mrb[0].mxu0 %v3433
    %v3489 = vpop.f32.mrb[0].mxu0
    %v3490 = vadd.f32 %v3416, %v3489
    %v3491 = vpop.f32.mrb[0].mxu0
    %v3492 = vpop.f32.mrb[0].mxu0
    %v3493 = vadd.f32 %v3416, %v3492
    %v3494 = vpop.f32.mrb[0].mxu0
    %3495 = vmatprep.mubr.bf16.mxu0 0
    %3496 = vmatmul.mubr.bf16.gmra.mrb[0].mxu0 %v3434
    %v3497 = vpop.f32.mrb[0].mxu0
    %v3498 = vadd.f32 %v3416, %v3497
    %v3499 = vpop.f32.mrb[0].mxu0
    %v3500 = vpop.f32.mrb[0].mxu0
    %v3501 = vpop.f32.mrb[0].mxu0
    %3502 = vdwg.mxu0
    %v3503 = vtanh.pop %v3474
    %v3504 = vtanh.pop %v3477
    %v3505 = vtanh.pop %v3482
    %v3506 = vtanh.pop %v3485
    %v3507 = vtanh.pop %v3490
    %v3508 = vtanh.pop %v3493
    %v3509 = vtanh.pop %v3498
    %3510 = vst [vmem:[#allocation6] sm:$0xff] %v3503
    %3511 = vst [vmem:[#allocation6 + $0x8] sm:$0xff] %v3504
    %3512 = vst [vmem:[#allocation6 + $0x10] sm:$0xff] %v3505
    %3513 = vst [vmem:[#allocation6 + $0x18] sm:$0xff] %v3506
    %3514 = vst [vmem:[#allocation6 + $0x20] sm:$0xff] %v3507
    %3515 = vst [vmem:[#allocation6 + $0x28] sm:$0xff] %v3508
    %3516 = vst [vmem:[#allocation6 + $0x30] sm:$0xff] %v3509
    // Predicated region
    $region42: #{tpu_custom_call.1} parent=1 // pred_check
      _
    $region43: #{tpu_custom_call.1} parent=1 // pred_check_branch
      %3518 = sbr.rel (0) target = $region45
    $region44: #{tpu_custom_call.1} parent=1 // pred_region
      %s3520 = ssub.s32 896, 896
      %3521 = vsyncadd [#allocation5], %s3520
      %s3522 = sshll.u32 [#allocation6], 4
      %s3523 = int_to_ptr.vmem [resolvable:$true] %s3522
      %3528 = dma.vmem_to_hbm [thread:$0]  %s3523, 896, %s9, [#allocation5], 128, 128, 8
    $region45: #{tpu_custom_call.1} parent=1 // pred_fallthru
      _
    // Predicated region
    $region46: #{tpu_custom_call.1} parent=1 // pred_check
      _
    $region47: #{tpu_custom_call.1} parent=1 // pred_check_branch
      %3530 = sbr.rel (0) target = $region49
    $region48: #{tpu_custom_call.1} parent=1 // pred_region
      %3531 = dma.done [#allocation5], 896
    $region49: #{tpu_custom_call.1} parent=1 // pred_fallthru
      _
    %3532 = vsyncpa [#allocation4], 1
    %3533 = vsyncpa [#allocation5], 1

</llo_original>
